<compile_context>
chip_gen: v6e
topology: v6e:2x2x1
jax: 0.10.0
libtpu: 0.0.40
codegen_flags: <defaults>
</compile_context>

<pallas_src>
import math
import functools

import jax
import jax.numpy as jnp
from jax.scipy.linalg import expm
from jax.experimental import pallas as pl
from jax.experimental.pallas import tpu as pltpu

SHT_SPLIT = 2      # leading "parallel" grid axis for the SHT reduction (v7x 2 TCs)


# ----------------------------------------------------------------------------
# Tiling / VMEM policy
# ----------------------------------------------------------------------------

def _round_up(x, m):
    return ((x + m - 1) // m) * m


def choose_tiling(n, target=1024, split=SHT_SPLIT):
    """Vertex-axis tile (multiple of 128) and padded vertex count.

    n_pad is a multiple of split*tile so the SHT reduction splits evenly across
    TensorCores.  Real icosphere meshes (10242 / 40962 / 163842 vertices) are
    not multiples of 128, so we always pad instead of falling back to one
    giant un-pipelined block.
    """
    tile = min(_round_up(target, 128), _round_up(pl.cdiv(n, split), 128))
    tile = max(tile, 128)
    n_pad = _round_up(n, split * tile)
    return tile, n_pad


def _vmem_limit_bytes():
    try:
        kind = jax.devices()[0].device_kind.lower()
    except Exception:
        kind = ""
    if ("v5" in kind) or ("v6" in kind):
        return 64 << 20            # 128 MiB physical VMEM parts
    return 32 << 20                # v7x-safe default (64 MiB physical VMEM)


VMEM_LIMIT = _vmem_limit_bytes()


def _pad_cols(a, n_pad):
    n = a.shape[-1]
    if n == n_pad:
        return a
    pad = [(0, 0)] * (a.ndim - 1) + [(0, n_pad - n)]
    return jnp.pad(a, pad)


def _full(a):
    nd = a.ndim
    return pl.BlockSpec(a.shape, lambda *args: (0,) * nd)


# ----------------------------------------------------------------------------
# Pallas kernels (channels-major tiles: (C, TILE_N), lane axis = vertices)
# ----------------------------------------------------------------------------

def _vel_sht_kernel(x_ref, area_ref, y_ref, w1_ref, b1_ref, w2_ref, b2_ref,
                    wl_ref, bl_ref, part_ref, acc_ref):
    """Fused: velocity MLP -> relu -> linear -> *area -> SHT accumulation."""
    i = pl.program_id(1)

    @pl.when(i == 0)
    def _():
        acc_ref[...] = jnp.zeros_like(acc_ref)

    # TODO(synk): SPHARM_Net velocity (spectral-conv U-Net) not provided in the
    # reference; stand-in is a 2-layer pointwise MLP, fused with F.relu+linear.
    xb = x_ref[...].astype(jnp.bfloat16)
    h = jnp.dot(w1_ref[...], xb, preferred_element_type=jnp.float32) + b1_ref[...]
    h = jnp.maximum(h, 0.0)
    h = jnp.dot(w2_ref[...], h.astype(jnp.bfloat16),
                preferred_element_type=jnp.float32) + b2_ref[...]
    h = jnp.maximum(h, 0.0)                                  # F.relu(velocity(x))
    vel = jnp.dot(wl_ref[...], h.astype(jnp.bfloat16),
                  preferred_element_type=jnp.float32) + bl_ref[...]   # (6, t)
    # SHT partial: (vel * area) @ Y_tile -- f32 operands (accuracy-critical).
    acc_ref[...] += jnp.dot(vel * area_ref[...], y_ref[...],
                            preferred_element_type=jnp.float32)       # (6, k_dl)

    @pl.when(i == pl.num_programs(1) - 1)
    def _():
        part_ref[...] = acc_ref[...]


def vel_sht_fused(x, area_p, y_p, P, tile):
    """coeff = ((Wl @ relu(MLP(x))) * area) @ Y, partials per TC; affine outside.

    Grid = (2, n_tiles/2): the leading "parallel" axis splits the vertex range
    across both v7x TensorCores; the (6, N) velocity never touches HBM.
    """
    cin, n_pad = x.shape
    k_dl = y_p.shape[1]
    c = P["vel_w1"].shape[0]
    n_half = (n_pad // tile) // SHT_SPLIT
    bf = jnp.bfloat16

    w1 = P["vel_w1"].astype(bf)
    w2 = P["vel_w2"].astype(bf)
    wl = P["lin_w"].astype(bf)
    b1 = P["vel_b1"].reshape(c, 1)
    b2 = P["vel_b2"].reshape(c, 1)
    bl = P["lin_b"].reshape(6, 1)
    area2 = area_p.reshape(1, n_pad)

    flops = 2 * n_pad * (c * cin + c * c + 6 * c + 6 * k_dl)
    bytes_acc = 4 * n_pad * (cin + 1 + k_dl) + 2 * (w1.size + w2.size + wl.size)

    col = lambda p, i: (0, p * n_half + i)
    parts = pl.pallas_call(
        _vel_sht_kernel,
        grid=(SHT_SPLIT, n_half),
        in_specs=[
            pl.BlockSpec((cin, tile), col),
            pl.BlockSpec((1, tile), col),
            pl.BlockSpec((tile, k_dl), lambda p, i: (p * n_half + i, 0)),
            _full(w1), _full(b1), _full(w2), _full(b2), _full(wl), _full(bl),
        ],
        out_specs=pl.BlockSpec((None, 6, k_dl), lambda p, i: (p, 0, 0)),
        out_shape=jax.ShapeDtypeStruct((SHT_SPLIT, 6, k_dl), jnp.float32),
        scratch_shapes=[pltpu.VMEM((6, k_dl), jnp.float32)],
        compiler_params=pltpu.CompilerParams(
            dimension_semantics=("parallel", "arbitrary"),
            vmem_limit_bytes=VMEM_LIMIT),
        cost_estimate=pl.CostEstimate(flops=int(flops), transcendentals=0,
                                      bytes_accessed=int(bytes_acc)),
    )(x, area2, y_p, w1, b1, w2, b2, wl, bl)
    coeff = jnp.sum(parts, axis=0)                       # (6, k_dl)
    return coeff * P["warp_w"] + P["warp_b"]             # fused per-coeff affine


def _isht_kernel(coeff_ref, yt_ref, o_ref):
    # spat_tile (6, t) = coeff (6, k_dl) @ Yt_tile (k_dl, t): lane-dense RHS and
    # lane-dense output, no per-step transpose.
    o_ref[...] = jnp.dot(coeff_ref[...], yt_ref[...],
                         preferred_element_type=jnp.float32)


def isht(coeff, yt_p, tile):
    c6, k_dl = coeff.shape
    n_pad = yt_p.shape[1]
    flops = 2 * n_pad * c6 * k_dl
    bytes_acc = 4 * (n_pad * (k_dl + c6) + c6 * k_dl)
    return pl.pallas_call(
        _isht_kernel,
        grid=(n_pad // tile,),
        in_specs=[
            _full(coeff),
            pl.BlockSpec((k_dl, tile), lambda i: (0, i)),
        ],
        out_specs=pl.BlockSpec((c6, tile), lambda i: (0, i)),
        out_shape=jax.ShapeDtypeStruct((c6, n_pad), jnp.float32),
        compiler_params=pltpu.CompilerParams(
            dimension_semantics=("parallel",), vmem_limit_bytes=VMEM_LIMIT),
        cost_estimate=pl.CostEstimate(flops=int(flops), transcendentals=0,
                                      bytes_accessed=int(bytes_acc)),
    )(coeff, yt_p)


def _guided_parc_kernel(dfeat_ref, darea_ref, wstk_ref, w3_ref, pack_ref,
                        b3_ref, wq1_ref, bq1_ref, wq2_ref, bq2_ref,
                        dproj_ref, dout_ref):
    hd = w3_ref.shape[1]
    proj = wq1_ref.shape[1]
    dfeat = dfeat_ref[...].astype(jnp.bfloat16)                 # (cin, t)
    # Single stacked (hd+proj, cin) @ (cin, t) matmul covers both the attention
    # hidden layer and the projection (sa is per-column: wp@(sa*x) == sa*(wp@x)).
    z = jnp.dot(wstk_ref[...], dfeat, preferred_element_type=jnp.float32)
    b1 = pack_ref[0:hd, :]
    w1b = pack_ref[hd:2 * hd, :]
    bp = pack_ref[2 * hd:2 * hd + proj, :]
    h = jnp.tanh(z[:hd] + w1b * darea_ref[...] + b1)            # (hd, t)
    # cross-sublane reduce moved onto the MXU: (1, hd) @ (hd, t)
    sa = jax.nn.sigmoid(
        jnp.dot(w3_ref[...], h.astype(jnp.bfloat16),
                preferred_element_type=jnp.float32) + b3_ref[...])   # (1, t)
    dproj = jnp.maximum(sa * z[hd:] + bp, 0.0)                  # (proj, t)
    dproj_ref[...] = dproj.astype(dproj_ref.dtype)              # bf16 store
    # TODO(synk): parc SPHARM_Net not provided; stand-in 2-layer pointwise MLP,
    # fused here so the (proj, N) tensor is written once (bf16) and never re-read.
    p1 = jnp.maximum(
        jnp.dot(wq1_ref[...], dproj.astype(jnp.bfloat16),
                preferred_element_type=jnp.float32) + bq1_ref[...], 0.0)
    dout_ref[...] = jnp.dot(wq2_ref[...], p1.astype(jnp.bfloat16),
                            preferred_element_type=jnp.float32) + bq2_ref[...]


def guided_att_parc(dfeat, darea, P, tile, n_pad):
    cin, n = dfeat.shape
    hd = P["ga_w1"].shape[0]
    proj = P["ga_wp"].shape[0]
    c_parc = P["parc_w1"].shape[0]
    n_class = P["parc_w2"].shape[0]
    bf = jnp.bfloat16

    dfeat_p = _pad_cols(dfeat, n_pad)
    darea_p = _pad_cols(darea.reshape(1, n), n_pad)

    wstk = jnp.concatenate([P["ga_w1"][:, :cin], P["ga_wp"]], axis=0).astype(bf)
    w3 = P["ga_w3"].reshape(1, hd).astype(bf)
    pack = jnp.concatenate([P["ga_b1"].reshape(hd, 1),
                            P["ga_w1"][:, cin:].reshape(hd, 1),
                            P["ga_bp"].reshape(proj, 1)], axis=0)   # (2hd+proj, 1)
    b3 = P["ga_b3"].reshape(1, 1)
    wq1 = P["parc_w1"].astype(bf)
    bq1 = P["parc_b1"].reshape(c_parc, 1)
    wq2 = P["parc_w2"].astype(bf)
    bq2 = P["parc_b2"].reshape(n_class, 1)

    flops = 2 * n_pad * ((hd + proj) * cin + hd + c_parc * proj + n_class * c_parc)
    transc = n_pad * (hd + 1)
    bytes_acc = 4 * n_pad * (cin + 1 + n_class) + 2 * n_pad * proj

    dproj, dout = pl.pallas_call(
        _guided_parc_kernel,
        grid=(n_pad // tile,),
        in_specs=[
            pl.BlockSpec((cin, tile), lambda i: (0, i)),
            pl.BlockSpec((1, tile), lambda i: (0, i)),
            _full(wstk), _full(w3), _full(pack), _full(b3),
            _full(wq1), _full(bq1), _full(wq2), _full(bq2),
        ],
        out_specs=[
            pl.BlockSpec((proj, tile), lambda i: (0, i)),
            pl.BlockSpec((n_class, tile), lambda i: (0, i)),
        ],
        out_shape=(jax.ShapeDtypeStruct((proj, n_pad), jnp.bfloat16),
                   jax.ShapeDtypeStruct((n_class, n_pad), jnp.float32)),
        compiler_params=pltpu.CompilerParams(
            dimension_semantics=("parallel",), vmem_limit_bytes=VMEM_LIMIT),
        cost_estimate=pl.CostEstimate(flops=int(flops), transcendentals=int(transc),
                                      bytes_accessed=int(bytes_acc)),
    )(dfeat_p, darea_p, wstk, w3, pack, b3, wq1, bq1, wq2, bq2)
    return dproj[:, :n], dout[:, :n]


# ----------------------------------------------------------------------------
# JAX glue: synthetic mesh, spatial search, deformation, barycentric resample
# ----------------------------------------------------------------------------

def build_mesh(n, k_dl, key, n_pad):
    # deterministic Fibonacci sphere
    i = jnp.arange(n, dtype=jnp.float32)
    phi = jnp.arccos(1.0 - 2.0 * (i + 0.5) / n)
    theta = jnp.pi * (1.0 + 5.0 ** 0.5) * i
    v = jnp.stack([jnp.sin(phi) * jnp.cos(theta),
                   jnp.sin(phi) * jnp.sin(theta),
                   jnp.cos(phi)], axis=-1)                      # (N, 3)
    idx = jnp.arange(n, dtype=jnp.int32)
    f = jnp.stack([idx, (idx + 1) % n, (idx + 3) % n], axis=-1)
    vfids = jnp.stack([idx, (idx - 1) % n, (idx - 3) % n], axis=-1)
    a = v[f[:, 0]]; b = v[f[:, 1]]; c = v[f[:, 2]]
    fa = 0.5 * jnp.linalg.norm(jnp.cross(b - a, c - a), axis=-1)
    area = jnp.sum(fa[vfids], axis=-1) / 3.0                    # (N,)
    # TODO(synk): spharm_real (true real SH basis) not reproduced; synthetic
    # deterministic basis of the same shape, kept f32 for SHT/ISHT accuracy.
    y = jax.random.normal(key, (n, k_dl), jnp.float32) / math.sqrt(n)
    area_p = _pad_cols(area.reshape(1, n), n_pad)[0]            # zero-padded -> no SHT contrib
    y_p = jnp.pad(y, ((0, n_pad - n), (0, 0)))                  # (n_pad, k_dl)  SHT layout
    yt_p = y_p.T                                                # (k_dl, n_pad)  ISHT layout
    return dict(v=v, f=f, vfids=vfids, area=area, area_p=area_p, Y=y_p, Yt=yt_p)


def tree_query(mesh_v, mesh_f, vfids, q):
    # TODO(synk): TriangleSearch (KD-tree closest-triangle query) has no clean
    # Pallas equivalent; approximated by nearest vertex + barycentric projection.
    # NOTE: O(N^2) pairwise distances -- fine at demo scale, the real scaling
    # hazard at production mesh sizes.
    d2 = jnp.sum((q[:, None, :] - mesh_v[None, :, :]) ** 2, axis=-1)
    nv = jnp.argmin(d2, axis=-1)
    fid = vfids[nv, 0]
    tri = mesh_f[fid]
    A = mesh_v[tri[:, 0]]; B = mesh_v[tri[:, 1]]; C = mesh_v[tri[:, 2]]
    v0 = B - A; v1 = C - A; v2 = q - A
    d00 = jnp.sum(v0 * v0, -1); d01 = jnp.sum(v0 * v1, -1)
    d11 = jnp.sum(v1 * v1, -1); d20 = jnp.sum(v2 * v0, -1); d21 = jnp.sum(v2 * v1, -1)
    denom = d00 * d11 - d01 * d01 + 1e-12
    bv = (d11 * d20 - d01 * d21) / denom
    bw = (d00 * d21 - d01 * d20) / denom
    bu = 1.0 - bv - bw
    bary = jnp.clip(jnp.stack([bu, bv, bw], axis=-1), 0.0, None)
    bary = bary / jnp.clip(jnp.sum(bary, -1, keepdims=True), 1e-12)
    return fid, bary


def resample(feat_ncn, mesh_f, fid, bary):
    """Barycentric resample: (1, C, N), fid (M,), bary (M, 3) -> (1, C, M)."""
    # TODO(synk): data-dependent gather kept in XLA (fused with the weighted
    # sum so the (C, M, 3) expansion is never materialized in HBM).
    vidx = mesh_f[fid]                                  # (M, 3)
    g = feat_ncn[0][:, vidx]                            # (C, M, 3)
    out = jnp.sum(g * bary[None, :, :], axis=-1)        # (C, M)
    return out[None]


def deform_apply(mesh_v, p):
    # TODO(synk): Deform (k-NN-smoothed spherical warp) not provided; interpreted
    # as a per-vertex 6D-rotation-representation warp reprojected onto the sphere.
    if p.shape[0] == 1:
        p = jnp.broadcast_to(p, (mesh_v.shape[0], 6))
    r1 = p[:, 0:3]
    r1 = r1 / (jnp.linalg.norm(r1, axis=-1, keepdims=True) + 1e-12)
    r2 = p[:, 3:6]
    r2 = r2 - jnp.sum(r2 * r1, -1, keepdims=True) * r1
    r2 = r2 / (jnp.linalg.norm(r2, axis=-1, keepdims=True) + 1e-12)
    r3 = jnp.cross(r1, r2)
    vnew = jnp.stack([jnp.sum(r1 * mesh_v, -1),
                      jnp.sum(r2 * mesh_v, -1),
                      jnp.sum(r3 * mesh_v, -1)], axis=-1)
    vnew = vnew / (jnp.linalg.norm(vnew, axis=-1, keepdims=True) + 1e-12)
    return vnew                                         # (N, 3)


def varea_jax(vnew, mesh_f, vfids):
    """Faithful port of GuidedAtt.varea_torch (icosphere-specific correction kept)."""
    u = vnew / jnp.linalg.norm(vnew, axis=-1, keepdims=True)
    a = u[:, mesh_f[:, 0], :]; b = u[:, mesh_f[:, 1], :]; c = u[:, mesh_f[:, 2], :]
    normal = jnp.cross(a - b, a - c)
    farea = jnp.linalg.norm(normal, axis=-1)            # (1, F)
    vareas = farea[:, vfids]                            # (1, N, deg)
    varea = jnp.sum(vareas, axis=-1)
    varea = varea.at[:, :12].add(-farea[:, 0:1])
    varea = varea / 6.0
    return varea                                        # (1, N)


# ----------------------------------------------------------------------------
# Forward pass (SHWarpBlock -> resample -> GuidedAtt + parc -> resample)
# ----------------------------------------------------------------------------

def shwarp_forward(inp, P, mesh, tile, n_pad):
    v, f, vfids = mesh["v"], mesh["f"], mesh["vfids"]
    n = v.shape[0]
    # rigid pre-alignment: tiny scalar path -> plain JAX glue
    x = (inp @ jnp.abs(P["w0"])) * 0.001                                   # (1, in_ch, 1)
    x = jnp.einsum("oi,bil->bol", P["lin0_w"], x) + P["lin0_b"][None, :, None]  # (1, 6, 1)
    xr = deform_apply(v, x[0, :, 0][None, :])                              # (N, 3)
    fid, bary = tree_query(v, f, vfids, xr)
    x = resample(inp, f, fid, bary)                                        # (1, in_ch, N)
    xp = _pad_cols(x[0], n_pad)                                            # (in_ch, n_pad)
    coeff = vel_sht_fused(xp, mesh["area_p"], mesh["Y"], P, tile)          # (6, kdl)  [Pallas fused]
    spat = isht(coeff, mesh["Yt"], tile)[:, :n]                            # (6, N)    [Pallas]
    vnew = deform_apply(v, spat.T)                                         # (N, 3)
    return vnew[None]                                                      # (1, N, 3)


def dspharm_forward(inp, P, mesh, tile, n_pad):
    v, f, vfids, area = mesh["v"], mesh["f"], mesh["vfids"], mesh["area"]
    vnew = shwarp_forward(inp, P, mesh, tile, n_pad)
    fid, bary = tree_query(vnew[0], f, vfids, v)
    dfeat0 = resample(inp, f, fid, bary)                                   # (1, in_ch, N)
    darea = varea_jax(vnew, f, vfids) - area[None, :]                      # (1, N)
    dproj, dout = guided_att_parc(dfeat0[0], darea[0], P, tile, n_pad)     # [Pallas fused]
    fid2, bary2 = tree_query(v, f, vfids, vnew[0])
    output = resample(dout[None], f, fid2, bary2)                          # (1, n_class, N)
    return output, vnew, dproj[None]


# ----------------------------------------------------------------------------
# Driver
# ----------------------------------------------------------------------------

if __name__ == "__main__":
    N = 1024        # vertices
    IN_CH = 3       # input channels
    N_CLASS = 4
    C = 16          # velocity / parc width
    D_DL = 4        # warp SH bandwidth
    K_DL = (D_DL + 1) ** 2
    HD = 64         # GuidedAtt hidden
    PROJ = 64       # GuidedAtt projection channels

    TILE, N_PAD = choose_tiling(N, target=1024)

    key = jax.random.PRNGKey(0)
    keys = jax.random.split(key, 16)
    mesh = build_mesh(N, K_DL, keys[0], N_PAD)

    def rnd(k, shape, s=0.1):
        return jax.random.normal(k, shape, jnp.float32) * s

    # linear0 bias: first two rows of expm of skew([0.05, 0, 0])
    a0 = jnp.array([1.0, 0.0, 0.0], jnp.float32) * 0.05
    skew = jnp.array([[0.0, -a0[2], a0[1]],
                      [a0[2], 0.0, -a0[0]],
                      [-a0[1], a0[0], 0.0]], jnp.float32)
    rot = expm(skew)
    lin0_b = rot[:2, :].reshape(-1)

    warp_b = jax.random.uniform(keys[1], (6, K_DL), jnp.float32, -0.005, 0.005)
    warp_b = warp_b.at[0, 0].set((4 * math.pi) ** 0.5)
    warp_b = warp_b.at[4, 0].set((4 * math.pi) ** 0.5)

    # All weights stored (out, in) == PyTorch Linear/Conv1d layout (channels-major).
    P = dict(
        w0=(mesh["area"].reshape(-1, 1) / jnp.sum(mesh["area"])).astype(jnp.float32),
        lin0_w=jnp.zeros((6, IN_CH), jnp.float32),
        lin0_b=lin0_b,
        vel_w1=rnd(keys[2], (C, IN_CH)), vel_b1=rnd(keys[3], (C,)),
        vel_w2=rnd(keys[4], (C, C)),     vel_b2=rnd(keys[5], (C,)),
        lin_w=rnd(keys[6], (6, C)),      lin_b=rnd(keys[7], (6,)),
        warp_w=jnp.zeros((6, K_DL), jnp.float32),
        warp_b=warp_b,
        ga_w1=rnd(keys[8], (HD, IN_CH + 1)), ga_b1=rnd(keys[9], (HD,)),
        ga_w3=rnd(keys[10], (HD,)),          ga_b3=jnp.zeros((1,), jnp.float32),
        ga_wp=rnd(keys[11], (PROJ, IN_CH)),  ga_bp=rnd(keys[12], (PROJ,)),
        parc_w1=rnd(keys[13], (C, PROJ)),    parc_b1=jnp.zeros((C,), jnp.float32),
        parc_w2=rnd(keys[14], (N_CLASS, C)), parc_b2=jnp.zeros((N_CLASS,), jnp.float32),
    )

    x = jax.random.normal(keys[15], (1, IN_CH, N), jnp.float32)

    fwd = jax.jit(functools.partial(dspharm_forward, mesh=mesh, tile=TILE, n_pad=N_PAD))
    output, vnew, dfeat = jax.block_until_ready(fwd(x, P))

    assert output.shape == (1, N_CLASS, N)
    assert vnew.shape == (1, N, 3)
    assert dfeat.shape == (1, PROJ, N)
    assert bool(jnp.all(jnp.isfinite(output)))
    assert bool(jnp.all(jnp.isfinite(vnew)))
    assert bool(jnp.all(jnp.isfinite(dfeat.astype(jnp.float32))))
    print("KERNEL_OK")
</pallas_src>

<mosaic_0001>
module attributes {stable_mosaic.version = 11 : i64} {
  func.func @_vel_sht_kernel(%arg0: i32, %arg1: i32, %arg2: memref<3x512xf32, #tpu.memory_space<vmem>>, %arg3: memref<1x512xf32, #tpu.memory_space<vmem>>, %arg4: memref<512x25xf32, #tpu.memory_space<vmem>>, %arg5: memref<16x3xbf16, #tpu.memory_space<vmem>>, %arg6: memref<16x1xf32, #tpu.memory_space<vmem>>, %arg7: memref<16x16xbf16, #tpu.memory_space<vmem>>, %arg8: memref<16x1xf32, #tpu.memory_space<vmem>>, %arg9: memref<6x16xbf16, #tpu.memory_space<vmem>>, %arg10: memref<6x1xf32, #tpu.memory_space<vmem>>, %arg11: memref<1x6x25xf32, #tpu.memory_space<vmem>>, %arg12: memref<6x25xf32, #tpu.memory_space<vmem>>) attributes {dimension_semantics = [#tpu.dimension_semantics<parallel>, #tpu.dimension_semantics<arbitrary>], iteration_bounds = array<i64: 2, 1>, scalar_prefetch = 0 : i64, scratch_operands = 1 : i64, tpu.core_type = #tpu.core_type<tc>, window_params = [{transform_indices = @transform_0, window_bounds = array<i64: 3, 512>}, {transform_indices = @transform_1, window_bounds = array<i64: 1, 512>}, {transform_indices = @transform_2, window_bounds = array<i64: 512, 25>}, {pipeline_mode = #tpu.pipeline_mode<synchronous>, transform_indices = @transform_3, window_bounds = array<i64: 16, 3>}, {pipeline_mode = #tpu.pipeline_mode<synchronous>, transform_indices = @transform_4, window_bounds = array<i64: 16, 1>}, {pipeline_mode = #tpu.pipeline_mode<synchronous>, transform_indices = @transform_5, window_bounds = array<i64: 16, 16>}, {pipeline_mode = #tpu.pipeline_mode<synchronous>, transform_indices = @transform_6, window_bounds = array<i64: 16, 1>}, {pipeline_mode = #tpu.pipeline_mode<synchronous>, transform_indices = @transform_7, window_bounds = array<i64: 6, 16>}, {pipeline_mode = #tpu.pipeline_mode<synchronous>, transform_indices = @transform_8, window_bounds = array<i64: 6, 1>}, {transform_indices = @transform_9, window_bounds = array<i64: 1, 6, 25>}]} {
    %c0_i32 = arith.constant 0 : i32
    %0 = arith.cmpi eq, %arg1, %c0_i32 : i32
    %1 = arith.extui %0 : i1 to i32
    %c0_i32_0 = arith.constant 0 : i32
    %2 = arith.cmpi ne, %1, %c0_i32_0 : i32
    scf.if %2 {
      %cst_29 = arith.constant 0.000000e+00 : f32
      %37 = vector.broadcast %cst_29 : f32 to vector<6x25xf32>
      %c0_30 = arith.constant 0 : index
      %c0_31 = arith.constant 0 : index
      %38 = vector.load %arg12[%c0_30, %c0_31] : memref<6x25xf32, #tpu.memory_space<vmem>>, vector<6x25xf32>
      tpu.vector_store %arg12[%c0_30, %c0_31], %37 {strides = array<i32>} : memref<6x25xf32, #tpu.memory_space<vmem>>, vector<6x25xf32>,
    } else {
    }
    %c0 = arith.constant 0 : index
    %c0_1 = arith.constant 0 : index
    %3 = vector.load %arg2[%c0, %c0_1] : memref<3x512xf32, #tpu.memory_space<vmem>>, vector<3x512xf32>
    %4 = arith.truncf %3 : vector<3x512xf32> to vector<3x512xbf16>
    %c0_2 = arith.constant 0 : index
    %c0_3 = arith.constant 0 : index
    %5 = vector.load %arg5[%c0_2, %c0_3] : memref<16x3xbf16, #tpu.memory_space<vmem>>, vector<16x3xbf16>
    %cst = arith.constant dense<0.000000e+00> : vector<16x512xf32>
    %6 = tpu.matmul %5, %4, %cst {dimension_numbers = #tpu.dot_dimension_numbers<[1], [0], [0], [1], [0, 0, 1, 1], [], []>} : vector<16x3xbf16>, vector<3x512xbf16>, vector<16x512xf32> -> vector<16x512xf32>
    %c0_4 = arith.constant 0 : index
    %c0_5 = arith.constant 0 : index
    %7 = vector.load %arg6[%c0_4, %c0_5] : memref<16x1xf32, #tpu.memory_space<vmem>>, vector<16x1xf32>
    %8 = vector.broadcast %7 : vector<16x1xf32> to vector<16x512xf32>
    %9 = arith.addf %6, %8 : vector<16x512xf32>
    %cst_6 = arith.constant 0.000000e+00 : f32
    %10 = vector.broadcast %cst_6 : f32 to vector<16x512xf32>
    %11 = arith.maximumf %9, %10 : vector<16x512xf32>
    %c0_7 = arith.constant 0 : index
    %c0_8 = arith.constant 0 : index
    %12 = vector.load %arg7[%c0_7, %c0_8] : memref<16x16xbf16, #tpu.memory_space<vmem>>, vector<16x16xbf16>
    %13 = arith.truncf %11 : vector<16x512xf32> to vector<16x512xbf16>
    %cst_9 = arith.constant dense<0.000000e+00> : vector<16x512xf32>
    %14 = tpu.matmul %12, %13, %cst_9 {dimension_numbers = #tpu.dot_dimension_numbers<[1], [0], [0], [1], [0, 0, 1, 1], [], []>} : vector<16x16xbf16>, vector<16x512xbf16>, vector<16x512xf32> -> vector<16x512xf32>
    %c0_10 = arith.constant 0 : index
    %c0_11 = arith.constant 0 : index
    %15 = vector.load %arg8[%c0_10, %c0_11] : memref<16x1xf32, #tpu.memory_space<vmem>>, vector<16x1xf32>
    %16 = vector.broadcast %15 : vector<16x1xf32> to vector<16x512xf32>
    %17 = arith.addf %14, %16 : vector<16x512xf32>
    %cst_12 = arith.constant 0.000000e+00 : f32
    %18 = vector.broadcast %cst_12 : f32 to vector<16x512xf32>
    %19 = arith.maximumf %17, %18 : vector<16x512xf32>
    %c0_13 = arith.constant 0 : index
    %c0_14 = arith.constant 0 : index
    %20 = vector.load %arg9[%c0_13, %c0_14] : memref<6x16xbf16, #tpu.memory_space<vmem>>, vector<6x16xbf16>
    %21 = arith.truncf %19 : vector<16x512xf32> to vector<16x512xbf16>
    %cst_15 = arith.constant dense<0.000000e+00> : vector<6x512xf32>
    %22 = tpu.matmul %20, %21, %cst_15 {dimension_numbers = #tpu.dot_dimension_numbers<[1], [0], [0], [1], [0, 0, 1, 1], [], []>} : vector<6x16xbf16>, vector<16x512xbf16>, vector<6x512xf32> -> vector<6x512xf32>
    %c0_16 = arith.constant 0 : index
    %c0_17 = arith.constant 0 : index
    %23 = vector.load %arg10[%c0_16, %c0_17] : memref<6x1xf32, #tpu.memory_space<vmem>>, vector<6x1xf32>
    %24 = vector.broadcast %23 : vector<6x1xf32> to vector<6x512xf32>
    %25 = arith.addf %22, %24 : vector<6x512xf32>
    %c0_18 = arith.constant 0 : index
    %c0_19 = arith.constant 0 : index
    %26 = vector.load %arg12[%c0_18, %c0_19] : memref<6x25xf32, #tpu.memory_space<vmem>>, vector<6x25xf32>
    %c0_20 = arith.constant 0 : index
    %c0_21 = arith.constant 0 : index
    %27 = vector.load %arg3[%c0_20, %c0_21] : memref<1x512xf32, #tpu.memory_space<vmem>>, vector<1x512xf32>
    %28 = vector.broadcast %27 : vector<1x512xf32> to vector<6x512xf32>
    %29 = arith.mulf %25, %28 : vector<6x512xf32>
    %c0_22 = arith.constant 0 : index
    %c0_23 = arith.constant 0 : index
    %30 = vector.load %arg4[%c0_22, %c0_23] : memref<512x25xf32, #tpu.memory_space<vmem>>, vector<512x25xf32>
    %cst_24 = arith.constant dense<0.000000e+00> : vector<6x25xf32>
    %31 = tpu.matmul %29, %30, %cst_24 {dimension_numbers = #tpu.dot_dimension_numbers<[1], [0], [0], [1], [0, 0, 1, 1], [], []>} : vector<6x512xf32>, vector<512x25xf32>, vector<6x25xf32> -> vector<6x25xf32>
    %32 = arith.addf %26, %31 : vector<6x25xf32>
    %c0_25 = arith.constant 0 : index
    %c0_26 = arith.constant 0 : index
    %33 = vector.load %arg12[%c0_25, %c0_26] : memref<6x25xf32, #tpu.memory_space<vmem>>, vector<6x25xf32>
    tpu.vector_store %arg12[%c0_25, %c0_26], %32 {strides = array<i32>} : memref<6x25xf32, #tpu.memory_space<vmem>>, vector<6x25xf32>,
    %c0_i32_27 = arith.constant 0 : i32
    %34 = arith.cmpi eq, %arg1, %c0_i32_27 : i32
    %35 = arith.extui %34 : i1 to i32
    %c0_i32_28 = arith.constant 0 : i32
    %36 = arith.cmpi ne, %35, %c0_i32_28 : i32
    scf.if %36 {
      %c0_29 = arith.constant 0 : index
      %c0_30 = arith.constant 0 : index
      %37 = vector.load %arg12[%c0_29, %c0_30] : memref<6x25xf32, #tpu.memory_space<vmem>>, vector<6x25xf32>
      %c0_31 = arith.constant 0 : index
      %c0_32 = arith.constant 0 : index
      %c0_33 = arith.constant 0 : index
      %38 = vector.load %arg11[%c0_31, %c0_32, %c0_33] : memref<1x6x25xf32, #tpu.memory_space<vmem>>, vector<1x6x25xf32>
      %39 = vector.shape_cast %38 : vector<1x6x25xf32> to vector<6x25xf32>
      %40 = vector.shape_cast %37 : vector<6x25xf32> to vector<1x6x25xf32>
      tpu.vector_store %arg11[%c0_31, %c0_32, %c0_33], %40 {strides = array<i32>} : memref<1x6x25xf32, #tpu.memory_space<vmem>>, vector<1x6x25xf32>,
    } else {
    }
    return
  }
  func.func @transform_0(%arg0: i32, %arg1: i32) -> (i32, i32) {
    %c1_i32 = arith.constant 1 : i32
    %0 = arith.muli %arg0, %c1_i32 : i32
    %1 = arith.addi %0, %arg1 : i32
    %c0_i32 = arith.constant 0 : i32
    %c0_i32_0 = arith.constant 0 : i32
    return %c0_i32, %1 : i32, i32
  }
  func.func @transform_1(%arg0: i32, %arg1: i32) -> (i32, i32) {
    %c1_i32 = arith.constant 1 : i32
    %0 = arith.muli %arg0, %c1_i32 : i32
    %1 = arith.addi %0, %arg1 : i32
    %c0_i32 = arith.constant 0 : i32
    %c0_i32_0 = arith.constant 0 : i32
    return %c0_i32, %1 : i32, i32
  }
  func.func @transform_2(%arg0: i32, %arg1: i32) -> (i32, i32) {
    %c1_i32 = arith.constant 1 : i32
    %0 = arith.muli %arg0, %c1_i32 : i32
    %1 = arith.addi %0, %arg1 : i32
    %c0_i32 = arith.constant 0 : i32
    %c0_i32_0 = arith.constant 0 : i32
    return %1, %c0_i32 : i32, i32
  }
  func.func @transform_3(%arg0: i32, %arg1: i32) -> (i32, i32) {
    %c0_i32 = arith.constant 0 : i32
    %c0_i32_0 = arith.constant 0 : i32
    %c0_i32_1 = arith.constant 0 : i32
    return %c0_i32, %c0_i32_0 : i32, i32
  }
  func.func @transform_4(%arg0: i32, %arg1: i32) -> (i32, i32) {
    %c0_i32 = arith.constant 0 : i32
    %c0_i32_0 = arith.constant 0 : i32
    %c0_i32_1 = arith.constant 0 : i32
    return %c0_i32, %c0_i32_0 : i32, i32
  }
  func.func @transform_5(%arg0: i32, %arg1: i32) -> (i32, i32) {
    %c0_i32 = arith.constant 0 : i32
    %c0_i32_0 = arith.constant 0 : i32
    %c0_i32_1 = arith.constant 0 : i32
    return %c0_i32, %c0_i32_0 : i32, i32
  }
  func.func @transform_6(%arg0: i32, %arg1: i32) -> (i32, i32) {
    %c0_i32 = arith.constant 0 : i32
    %c0_i32_0 = arith.constant 0 : i32
    %c0_i32_1 = arith.constant 0 : i32
    return %c0_i32, %c0_i32_0 : i32, i32
  }
  func.func @transform_7(%arg0: i32, %arg1: i32) -> (i32, i32) {
    %c0_i32 = arith.constant 0 : i32
    %c0_i32_0 = arith.constant 0 : i32
    %c0_i32_1 = arith.constant 0 : i32
    return %c0_i32, %c0_i32_0 : i32, i32
  }
  func.func @transform_8(%arg0: i32, %arg1: i32) -> (i32, i32) {
    %c0_i32 = arith.constant 0 : i32
    %c0_i32_0 = arith.constant 0 : i32
    %c0_i32_1 = arith.constant 0 : i32
    return %c0_i32, %c0_i32_0 : i32, i32
  }
  func.func @transform_9(%arg0: i32, %arg1: i32) -> (i32, i32, i32) {
    %c0_i32 = arith.constant 0 : i32
    %c0_i32_0 = arith.constant 0 : i32
    %c0_i32_1 = arith.constant 0 : i32
    return %arg0, %c0_i32, %c0_i32_0 : i32, i32, i32
  }
}

module attributes {stable_mosaic.version = 11 : i64} {
  func.func @_isht_kernel(%arg0: i32, %arg1: memref<6x25xf32, #tpu.memory_space<vmem>>, %arg2: memref<25x512xf32, #tpu.memory_space<vmem>>, %arg3: memref<6x512xf32, #tpu.memory_space<vmem>>) attributes {dimension_semantics = [#tpu.dimension_semantics<parallel>], iteration_bounds = array<i64: 2>, scalar_prefetch = 0 : i64, scratch_operands = 0 : i64, tpu.core_type = #tpu.core_type<tc>, window_params = [{pipeline_mode = #tpu.pipeline_mode<synchronous>, transform_indices = @transform_0, window_bounds = array<i64: 6, 25>}, {transform_indices = @transform_1, window_bounds = array<i64: 25, 512>}, {transform_indices = @transform_2, window_bounds = array<i64: 6, 512>}]} {
    %c0 = arith.constant 0 : index
    %c0_0 = arith.constant 0 : index
    %0 = vector.load %arg1[%c0, %c0_0] : memref<6x25xf32, #tpu.memory_space<vmem>>, vector<6x25xf32>
    %c0_1 = arith.constant 0 : index
    %c0_2 = arith.constant 0 : index
    %1 = vector.load %arg2[%c0_1, %c0_2] : memref<25x512xf32, #tpu.memory_space<vmem>>, vector<25x512xf32>
    %cst = arith.constant dense<0.000000e+00> : vector<6x512xf32>
    %2 = tpu.matmul %0, %1, %cst {dimension_numbers = #tpu.dot_dimension_numbers<[1], [0], [0], [1], [0, 0, 1, 1], [], []>} : vector<6x25xf32>, vector<25x512xf32>, vector<6x512xf32> -> vector<6x512xf32>
    %c0_3 = arith.constant 0 : index
    %c0_4 = arith.constant 0 : index
    %3 = vector.load %arg3[%c0_3, %c0_4] : memref<6x512xf32, #tpu.memory_space<vmem>>, vector<6x512xf32>
    tpu.vector_store %arg3[%c0_3, %c0_4], %2 {strides = array<i32>} : memref<6x512xf32, #tpu.memory_space<vmem>>, vector<6x512xf32>,
    return
  }
  func.func @transform_0(%arg0: i32) -> (i32, i32) {
    %c0_i32 = arith.constant 0 : i32
    %c0_i32_0 = arith.constant 0 : i32
    %c0_i32_1 = arith.constant 0 : i32
    return %c0_i32, %c0_i32_0 : i32, i32
  }
  func.func @transform_1(%arg0: i32) -> (i32, i32) {
    %c0_i32 = arith.constant 0 : i32
    %c0_i32_0 = arith.constant 0 : i32
    return %c0_i32, %arg0 : i32, i32
  }
  func.func @transform_2(%arg0: i32) -> (i32, i32) {
    %c0_i32 = arith.constant 0 : i32
    %c0_i32_0 = arith.constant 0 : i32
    return %c0_i32, %arg0 : i32, i32
  }
}

module attributes {stable_mosaic.version = 11 : i64} {
  func.func @_guided_parc_kernel(%arg0: i32, %arg1: memref<3x512xf32, #tpu.memory_space<vmem>>, %arg2: memref<1x512xf32, #tpu.memory_space<vmem>>, %arg3: memref<128x3xbf16, #tpu.memory_space<vmem>>, %arg4: memref<1x64xbf16, #tpu.memory_space<vmem>>, %arg5: memref<192x1xf32, #tpu.memory_space<vmem>>, %arg6: memref<1x1xf32, #tpu.memory_space<vmem>>, %arg7: memref<16x64xbf16, #tpu.memory_space<vmem>>, %arg8: memref<16x1xf32, #tpu.memory_space<vmem>>, %arg9: memref<4x16xbf16, #tpu.memory_space<vmem>>, %arg10: memref<4x1xf32, #tpu.memory_space<vmem>>, %arg11: memref<64x512xbf16, #tpu.memory_space<vmem>>, %arg12: memref<4x512xf32, #tpu.memory_space<vmem>>) attributes {dimension_semantics = [#tpu.dimension_semantics<parallel>], iteration_bounds = array<i64: 2>, scalar_prefetch = 0 : i64, scratch_operands = 0 : i64, tpu.core_type = #tpu.core_type<tc>, window_params = [{transform_indices = @transform_0, window_bounds = array<i64: 3, 512>}, {transform_indices = @transform_1, window_bounds = array<i64: 1, 512>}, {pipeline_mode = #tpu.pipeline_mode<synchronous>, transform_indices = @transform_2, window_bounds = array<i64: 128, 3>}, {pipeline_mode = #tpu.pipeline_mode<synchronous>, transform_indices = @transform_3, window_bounds = array<i64: 1, 64>}, {pipeline_mode = #tpu.pipeline_mode<synchronous>, transform_indices = @transform_4, window_bounds = array<i64: 192, 1>}, {pipeline_mode = #tpu.pipeline_mode<synchronous>, transform_indices = @transform_5, window_bounds = array<i64: 1, 1>}, {pipeline_mode = #tpu.pipeline_mode<synchronous>, transform_indices = @transform_6, window_bounds = array<i64: 16, 64>}, {pipeline_mode = #tpu.pipeline_mode<synchronous>, transform_indices = @transform_7, window_bounds = array<i64: 16, 1>}, {pipeline_mode = #tpu.pipeline_mode<synchronous>, transform_indices = @transform_8, window_bounds = array<i64: 4, 16>}, {pipeline_mode = #tpu.pipeline_mode<synchronous>, transform_indices = @transform_9, window_bounds = array<i64: 4, 1>}, {transform_indices = @transform_10, window_bounds = array<i64: 64, 512>}, {transform_indices = @transform_11, window_bounds = array<i64: 4, 512>}]} {
    %c0 = arith.constant 0 : index
    %c0_0 = arith.constant 0 : index
    %0 = vector.load %arg1[%c0, %c0_0] : memref<3x512xf32, #tpu.memory_space<vmem>>, vector<3x512xf32>
    %1 = arith.truncf %0 : vector<3x512xf32> to vector<3x512xbf16>
    %c0_1 = arith.constant 0 : index
    %c0_2 = arith.constant 0 : index
    %2 = vector.load %arg3[%c0_1, %c0_2] : memref<128x3xbf16, #tpu.memory_space<vmem>>, vector<128x3xbf16>
    %cst = arith.constant dense<0.000000e+00> : vector<128x512xf32>
    %3 = tpu.matmul %2, %1, %cst {dimension_numbers = #tpu.dot_dimension_numbers<[1], [0], [0], [1], [0, 0, 1, 1], [], []>} : vector<128x3xbf16>, vector<3x512xbf16>, vector<128x512xf32> -> vector<128x512xf32>
    %c0_3 = arith.constant 0 : index
    %c0_4 = arith.constant 0 : index
    %4 = vector.load %arg5[%c0_3, %c0_4] : memref<192x1xf32, #tpu.memory_space<vmem>>, vector<64x1xf32>
    %c64 = arith.constant 64 : index
    %c0_5 = arith.constant 0 : index
    %5 = vector.load %arg5[%c64, %c0_5] : memref<192x1xf32, #tpu.memory_space<vmem>>, vector<64x1xf32>
    %c128 = arith.constant 128 : index
    %c0_6 = arith.constant 0 : index
    %6 = vector.load %arg5[%c128, %c0_6] : memref<192x1xf32, #tpu.memory_space<vmem>>, vector<64x1xf32>
    %7 = vector.extract_strided_slice %3 {offsets = [0, 0], sizes = [64, 512], strides = [1, 1]} : vector<128x512xf32> to vector<64x512xf32>
    %c0_7 = arith.constant 0 : index
    %c0_8 = arith.constant 0 : index
    %8 = vector.load %arg2[%c0_7, %c0_8] : memref<1x512xf32, #tpu.memory_space<vmem>>, vector<1x512xf32>
    %9 = vector.broadcast %5 : vector<64x1xf32> to vector<64x512xf32>
    %10 = vector.broadcast %8 : vector<1x512xf32> to vector<64x512xf32>
    %11 = arith.mulf %9, %10 : vector<64x512xf32>
    %12 = arith.addf %7, %11 : vector<64x512xf32>
    %13 = vector.broadcast %4 : vector<64x1xf32> to vector<64x512xf32>
    %14 = arith.addf %12, %13 : vector<64x512xf32>
    %15 = math.tanh %14 : vector<64x512xf32>
    %c0_9 = arith.constant 0 : index
    %c0_10 = arith.constant 0 : index
    %16 = vector.load %arg4[%c0_9, %c0_10] : memref<1x64xbf16, #tpu.memory_space<vmem>>, vector<1x64xbf16>
    %17 = arith.truncf %15 : vector<64x512xf32> to vector<64x512xbf16>
    %cst_11 = arith.constant dense<0.000000e+00> : vector<1x512xf32>
    %18 = tpu.matmul %16, %17, %cst_11 {dimension_numbers = #tpu.dot_dimension_numbers<[1], [0], [0], [1], [0, 0, 1, 1], [], []>} : vector<1x64xbf16>, vector<64x512xbf16>, vector<1x512xf32> -> vector<1x512xf32>
    %c0_12 = arith.constant 0 : index
    %c0_13 = arith.constant 0 : index
    %19 = vector.load %arg6[%c0_12, %c0_13] : memref<1x1xf32, #tpu.memory_space<vmem>>, vector<1x1xf32>
    %20 = vector.broadcast %19 : vector<1x1xf32> to vector<1x512xf32>
    %21 = arith.addf %18, %20 : vector<1x512xf32>
    %22 = arith.negf %21 : vector<1x512xf32>
    %23 = math.exp %22 : vector<1x512xf32>
    %cst_14 = arith.constant 1.000000e+00 : f32
    %24 = vector.broadcast %cst_14 : f32 to vector<1x512xf32>
    %25 = arith.addf %24, %23 : vector<1x512xf32>
    %26 = arith.divf %24, %25 : vector<1x512xf32>
    %27 = vector.extract_strided_slice %3 {offsets = [64, 0], sizes = [64, 512], strides = [1, 1]} : vector<128x512xf32> to vector<64x512xf32>
    %28 = vector.broadcast %26 : vector<1x512xf32> to vector<64x512xf32>
    %29 = arith.mulf %28, %27 : vector<64x512xf32>
    %30 = vector.broadcast %6 : vector<64x1xf32> to vector<64x512xf32>
    %31 = arith.addf %29, %30 : vector<64x512xf32>
    %cst_15 = arith.constant 0.000000e+00 : f32
    %32 = vector.broadcast %cst_15 : f32 to vector<64x512xf32>
    %33 = arith.maximumf %31, %32 : vector<64x512xf32>
    %34 = arith.truncf %33 : vector<64x512xf32> to vector<64x512xbf16>
    %c0_16 = arith.constant 0 : index
    %c0_17 = arith.constant 0 : index
    %35 = vector.load %arg11[%c0_16, %c0_17] : memref<64x512xbf16, #tpu.memory_space<vmem>>, vector<64x512xbf16>
    tpu.vector_store %arg11[%c0_16, %c0_17], %34 {strides = array<i32>} : memref<64x512xbf16, #tpu.memory_space<vmem>>, vector<64x512xbf16>,
    %c0_18 = arith.constant 0 : index
    %c0_19 = arith.constant 0 : index
    %36 = vector.load %arg7[%c0_18, %c0_19] : memref<16x64xbf16, #tpu.memory_space<vmem>>, vector<16x64xbf16>
    %37 = arith.truncf %33 : vector<64x512xf32> to vector<64x512xbf16>
    %cst_20 = arith.constant dense<0.000000e+00> : vector<16x512xf32>
    %38 = tpu.matmul %36, %37, %cst_20 {dimension_numbers = #tpu.dot_dimension_numbers<[1], [0], [0], [1], [0, 0, 1, 1], [], []>} : vector<16x64xbf16>, vector<64x512xbf16>, vector<16x512xf32> -> vector<16x512xf32>
    %c0_21 = arith.constant 0 : index
    %c0_22 = arith.constant 0 : index
    %39 = vector.load %arg8[%c0_21, %c0_22] : memref<16x1xf32, #tpu.memory_space<vmem>>, vector<16x1xf32>
    %40 = vector.broadcast %39 : vector<16x1xf32> to vector<16x512xf32>
    %41 = arith.addf %38, %40 : vector<16x512xf32>
    %cst_23 = arith.constant 0.000000e+00 : f32
    %42 = vector.broadcast %cst_23 : f32 to vector<16x512xf32>
    %43 = arith.maximumf %41, %42 : vector<16x512xf32>
    %c0_24 = arith.constant 0 : index
    %c0_25 = arith.constant 0 : index
    %44 = vector.load %arg9[%c0_24, %c0_25] : memref<4x16xbf16, #tpu.memory_space<vmem>>, vector<4x16xbf16>
    %45 = arith.truncf %43 : vector<16x512xf32> to vector<16x512xbf16>
    %cst_26 = arith.constant dense<0.000000e+00> : vector<4x512xf32>
    %46 = tpu.matmul %44, %45, %cst_26 {dimension_numbers = #tpu.dot_dimension_numbers<[1], [0], [0], [1], [0, 0, 1, 1], [], []>} : vector<4x16xbf16>, vector<16x512xbf16>, vector<4x512xf32> -> vector<4x512xf32>
    %c0_27 = arith.constant 0 : index
    %c0_28 = arith.constant 0 : index
    %47 = vector.load %arg10[%c0_27, %c0_28] : memref<4x1xf32, #tpu.memory_space<vmem>>, vector<4x1xf32>
    %48 = vector.broadcast %47 : vector<4x1xf32> to vector<4x512xf32>
    %49 = arith.addf %46, %48 : vector<4x512xf32>
    %c0_29 = arith.constant 0 : index
    %c0_30 = arith.constant 0 : index
    %50 = vector.load %arg12[%c0_29, %c0_30] : memref<4x512xf32, #tpu.memory_space<vmem>>, vector<4x512xf32>
    tpu.vector_store %arg12[%c0_29, %c0_30], %49 {strides = array<i32>} : memref<4x512xf32, #tpu.memory_space<vmem>>, vector<4x512xf32>,
    return
  }
  func.func @transform_0(%arg0: i32) -> (i32, i32) {
    %c0_i32 = arith.constant 0 : i32
    %c0_i32_0 = arith.constant 0 : i32
    return %c0_i32, %arg0 : i32, i32
  }
  func.func @transform_1(%arg0: i32) -> (i32, i32) {
    %c0_i32 = arith.constant 0 : i32
    %c0_i32_0 = arith.constant 0 : i32
    return %c0_i32, %arg0 : i32, i32
  }
  func.func @transform_2(%arg0: i32) -> (i32, i32) {
    %c0_i32 = arith.constant 0 : i32
    %c0_i32_0 = arith.constant 0 : i32
    %c0_i32_1 = arith.constant 0 : i32
    return %c0_i32, %c0_i32_0 : i32, i32
  }
  func.func @transform_3(%arg0: i32) -> (i32, i32) {
    %c0_i32 = arith.constant 0 : i32
    %c0_i32_0 = arith.constant 0 : i32
    %c0_i32_1 = arith.constant 0 : i32
    return %c0_i32, %c0_i32_0 : i32, i32
  }
  func.func @transform_4(%arg0: i32) -> (i32, i32) {
    %c0_i32 = arith.constant 0 : i32
    %c0_i32_0 = arith.constant 0 : i32
    %c0_i32_1 = arith.constant 0 : i32
    return %c0_i32, %c0_i32_0 : i32, i32
  }
  func.func @transform_5(%arg0: i32) -> (i32, i32) {
    %c0_i32 = arith.constant 0 : i32
    %c0_i32_0 = arith.constant 0 : i32
    %c0_i32_1 = arith.constant 0 : i32
    return %c0_i32, %c0_i32_0 : i32, i32
  }
  func.func @transform_6(%arg0: i32) -> (i32, i32) {
    %c0_i32 = arith.constant 0 : i32
    %c0_i32_0 = arith.constant 0 : i32
    %c0_i32_1 = arith.constant 0 : i32
    return %c0_i32, %c0_i32_0 : i32, i32
  }
  func.func @transform_7(%arg0: i32) -> (i32, i32) {
    %c0_i32 = arith.constant 0 : i32
    %c0_i32_0 = arith.constant 0 : i32
    %c0_i32_1 = arith.constant 0 : i32
    return %c0_i32, %c0_i32_0 : i32, i32
  }
  func.func @transform_8(%arg0: i32) -> (i32, i32) {
    %c0_i32 = arith.constant 0 : i32
    %c0_i32_0 = arith.constant 0 : i32
    %c0_i32_1 = arith.constant 0 : i32
    return %c0_i32, %c0_i32_0 : i32, i32
  }
  func.func @transform_9(%arg0: i32) -> (i32, i32) {
    %c0_i32 = arith.constant 0 : i32
    %c0_i32_0 = arith.constant 0 : i32
    %c0_i32_1 = arith.constant 0 : i32
    return %c0_i32, %c0_i32_0 : i32, i32
  }
  func.func @transform_10(%arg0: i32) -> (i32, i32) {
    %c0_i32 = arith.constant 0 : i32
    %c0_i32_0 = arith.constant 0 : i32
    return %c0_i32, %arg0 : i32, i32
  }
  func.func @transform_11(%arg0: i32) -> (i32, i32) {
    %c0_i32 = arith.constant 0 : i32
    %c0_i32_0 = arith.constant 0 : i32
    return %c0_i32, %arg0 : i32, i32
  }
}

</mosaic_0001>

<llo_original>
// kernel: dspharm_forward.3
$region0: #{dspharm_forward.3}
  #allocation0 [shape = 'u32[]', space=smem, size = 0x4, offset = 0x4, fixed_abs, tag = 'smem constant byte address 0x4 - core index']
  #allocation1 [shape = 'u32[144,128]{1,0:T(1,128)}', space=vmem, size = 0x12000, scoped, tag = 'internal scratch']
  #allocation2 [shape = 'f32[6,25]{1,0:T(8,128)}', space=vmem, size = 0x1000, scoped, tag = 'scratch operand']
  %s0 = inlined_call_operand.vmem [shape: f32[3,1024], index: 0, kind: input, shape index: {}]
  %s1 = inlined_call_operand.vmem [shape: f32[1,1024], index: 1, kind: input, shape index: {}]
  %s2 = inlined_call_operand.vmem [shape: f32[1024,25], index: 2, kind: input, shape index: {}]
  %s3 = inlined_call_operand.vmem [shape: bf16[16,3], index: 3, kind: input, shape index: {}]
  %s4 = inlined_call_operand.vmem [shape: f32[16,1], index: 4, kind: input, shape index: {}]
  %s5 = inlined_call_operand.vmem [shape: bf16[16,16], index: 5, kind: input, shape index: {}]
  %s6 = inlined_call_operand.vmem [shape: f32[16,1], index: 6, kind: input, shape index: {}]
  %s7 = inlined_call_operand.vmem [shape: bf16[6,16], index: 7, kind: input, shape index: {}]
  %s8 = inlined_call_operand.vmem [shape: f32[6,1], index: 8, kind: input, shape index: {}]
  %s9 = inlined_call_operand.vmem [shape: f32[2,6,25], index: 9, kind: output, shape index: {}]
  %s10 = sld [smem:[#allocation0]]
  $region77: #{dspharm_forward.3} parent=0
    _
  %s12 = ssub.s32 1, %s10
  %s13 = scalar_select 0, %s12, %s10
  loop: start=0, step=1, limit=4
  $region2: #{dspharm_forward.3} parent=0 // loop_pre_header
    _
  $region3: #{dspharm_forward.3} parent=0 // loop_header
    %s15 = sphi 0, %s19
    %p16 = scmp.ge.s32.totalorder %s15, 4
    %s22 = sphi 0, %s34
    %s23 = sphi 0, %s30
    %s24 = sphi 0, %s22
    %s25 = sphi 0, %s23
    %s26 = sphi 0, %s24
    %s27 = sphi 0, %s25
    %s39 = sphi 0, %s41
    %s42 = sphi 0, %s39
    %s43 = sphi 0, %s42
    %s59 = sphi 0, %s43
    %s67 = sphi 0, %s69
    %s70 = sphi 0, %s67
    %s71 = sphi 0, %s70
    %s87 = sphi 0, %s71
    %s95 = sphi 0, %s97
    %s98 = sphi 0, %s95
    %s99 = sphi 0, %s98
    %s115 = sphi 0, %s99
    %s119 = sphi 0, %s119
    %s121 = sphi 0, %s119
    %s122 = sphi 0, %s121
    %s136 = sphi 0, %s122
    %s140 = sphi 0, %s140
    %s142 = sphi 0, %s140
    %s143 = sphi 0, %s142
    %s157 = sphi 0, %s143
    %s161 = sphi 0, %s161
    %s163 = sphi 0, %s161
    %s164 = sphi 0, %s163
    %s178 = sphi 0, %s164
    %s182 = sphi 0, %s182
    %s184 = sphi 0, %s182
    %s185 = sphi 0, %s184
    %s199 = sphi 0, %s185
    %s203 = sphi 0, %s203
    %s205 = sphi 0, %s203
    %s206 = sphi 0, %s205
    %s220 = sphi 0, %s206
    %s224 = sphi 0, %s224
    %s226 = sphi 0, %s224
    %s227 = sphi 0, %s226
    %s241 = sphi 0, %s227
    %s247 = sphi 0, %s249
    %s250 = sphi 0, %s247
    %s251 = sphi 0, %s250
    %s267 = sphi 0, %s251
  $region4: #{dspharm_forward.3} parent=0 // loop_header_branch
    %18 = sbr.rel (%p16) target = $region8
  $region5: #{dspharm_forward.3} parent=0 // loop_body
    %s20 = ssub.s32 %s15, 1
    %s21 = ssub.s32 %s15, 2
    %s28 = sadd.s32 1, %s23
    %p29 = scmp.ge.s32.totalorder %s28, 1
    %s30 = scalar_select %p29, 0, %s28
    %s31 = sadd.s32 1, %s22
    %s32 = scalar_select %p29, %s31, %s22
    %p33 = scmp.ge.s32.totalorder %s32, 2
    %s34 = scalar_select %p33, 0, %s32
    %s35 = sadd.s32 %s22, %s23
    %s36 = sadd.s32 %s34, %s30
    %s37 = ssub.s32 %s35, %s36
    %p38 = scmp.eq.s32.totalorder %s37, 0
    %s40 = sadd.s32 %s39, 1
    %s41 = scalar_select %p38, %s39, %s40
    %p44 = pneg %p38
    %p45 = scmp.eq.s32.totalorder %s15, 1
    %p46 = por %p44, %p45
    %p47 = scmp.ne.s32.totalorder %s39, %s42
    %p48 = scmp.eq.s32.totalorder %s15, 0
    %p49 = por %p47, %p48
    %p50 = scmp.ne.s32.totalorder %s39, %s42
    %p51 = scmp.eq.s32.totalorder %s20, 1
    %p52 = por %p50, %p51
    %p53 = scmp.ne.s32.totalorder %s42, %s43
    %p54 = scmp.eq.s32.totalorder %s20, 0
    %p55 = por %p53, %p54
    %p56 = scmp.ne.s32.totalorder %s42, %s43
    %p57 = scmp.eq.s32.totalorder %s21, 1
    %p58 = por %p56, %p57
    %p60 = scmp.ne.s32.totalorder %s43, %s59
    %p61 = scmp.eq.s32.totalorder %s21, 0
    %p62 = por %p60, %p61
    %s63 = sadd.s32 %s22, %s23
    %s64 = sadd.s32 %s34, %s30
    %s65 = ssub.s32 %s63, %s64
    %p66 = scmp.eq.s32.totalorder %s65, 0
    %s68 = sadd.s32 %s67, 1
    %s69 = scalar_select %p66, %s67, %s68
    %p72 = pneg %p66
    %p73 = scmp.eq.s32.totalorder %s15, 1
    %p74 = por %p72, %p73
    %p75 = scmp.ne.s32.totalorder %s67, %s70
    %p76 = scmp.eq.s32.totalorder %s15, 0
    %p77 = por %p75, %p76
    %p78 = scmp.ne.s32.totalorder %s67, %s70
    %p79 = scmp.eq.s32.totalorder %s20, 1
    %p80 = por %p78, %p79
    %p81 = scmp.ne.s32.totalorder %s70, %s71
    %p82 = scmp.eq.s32.totalorder %s20, 0
    %p83 = por %p81, %p82
    %p84 = scmp.ne.s32.totalorder %s70, %s71
    %p85 = scmp.eq.s32.totalorder %s21, 1
    %p86 = por %p84, %p85
    %p88 = scmp.ne.s32.totalorder %s71, %s87
    %p89 = scmp.eq.s32.totalorder %s21, 0
    %p90 = por %p88, %p89
    %s91 = sadd.s32 %s22, %s23
    %s92 = sadd.s32 %s34, %s30
    %s93 = ssub.s32 %s91, %s92
    %p94 = scmp.eq.s32.totalorder %s93, 0
    %s96 = sadd.s32 %s95, 1
    %s97 = scalar_select %p94, %s95, %s96
    %p100 = pneg %p94
    %p101 = scmp.eq.s32.totalorder %s15, 1
    %p102 = por %p100, %p101
    %p103 = scmp.ne.s32.totalorder %s95, %s98
    %p104 = scmp.eq.s32.totalorder %s15, 0
    %p105 = por %p103, %p104
    %p106 = scmp.ne.s32.totalorder %s95, %s98
    %p107 = scmp.eq.s32.totalorder %s20, 1
    %p108 = por %p106, %p107
    %p109 = scmp.ne.s32.totalorder %s98, %s99
    %p110 = scmp.eq.s32.totalorder %s20, 0
    %p111 = por %p109, %p110
    %p112 = scmp.ne.s32.totalorder %s98, %s99
    %p113 = scmp.eq.s32.totalorder %s21, 1
    %p114 = por %p112, %p113
    %p116 = scmp.ne.s32.totalorder %s99, %s115
    %p117 = scmp.eq.s32.totalorder %s21, 0
    %p118 = por %p116, %p117
    %s120 = sadd.s32 %s119, 1
    %p123 = scmp.eq.s32.totalorder %s15, 1
    %p124 = scmp.ne.s32.totalorder %s119, %s121
    %p125 = scmp.eq.s32.totalorder %s15, 0
    %p126 = por %p124, %p125
    %p127 = scmp.ne.s32.totalorder %s119, %s121
    %p128 = scmp.eq.s32.totalorder %s20, 1
    %p129 = por %p127, %p128
    %p130 = scmp.ne.s32.totalorder %s121, %s122
    %p131 = scmp.eq.s32.totalorder %s20, 0
    %p132 = por %p130, %p131
    %p133 = scmp.ne.s32.totalorder %s121, %s122
    %p134 = scmp.eq.s32.totalorder %s21, 1
    %p135 = por %p133, %p134
    %p137 = scmp.ne.s32.totalorder %s122, %s136
    %p138 = scmp.eq.s32.totalorder %s21, 0
    %p139 = por %p137, %p138
    %s141 = sadd.s32 %s140, 1
    %p144 = scmp.eq.s32.totalorder %s15, 1
    %p145 = scmp.ne.s32.totalorder %s140, %s142
    %p146 = scmp.eq.s32.totalorder %s15, 0
    %p147 = por %p145, %p146
    %p148 = scmp.ne.s32.totalorder %s140, %s142
    %p149 = scmp.eq.s32.totalorder %s20, 1
    %p150 = por %p148, %p149
    %p151 = scmp.ne.s32.totalorder %s142, %s143
    %p152 = scmp.eq.s32.totalorder %s20, 0
    %p153 = por %p151, %p152
    %p154 = scmp.ne.s32.totalorder %s142, %s143
    %p155 = scmp.eq.s32.totalorder %s21, 1
    %p156 = por %p154, %p155
    %p158 = scmp.ne.s32.totalorder %s143, %s157
    %p159 = scmp.eq.s32.totalorder %s21, 0
    %p160 = por %p158, %p159
    %s162 = sadd.s32 %s161, 1
    %p165 = scmp.eq.s32.totalorder %s15, 1
    %p166 = scmp.ne.s32.totalorder %s161, %s163
    %p167 = scmp.eq.s32.totalorder %s15, 0
    %p168 = por %p166, %p167
    %p169 = scmp.ne.s32.totalorder %s161, %s163
    %p170 = scmp.eq.s32.totalorder %s20, 1
    %p171 = por %p169, %p170
    %p172 = scmp.ne.s32.totalorder %s163, %s164
    %p173 = scmp.eq.s32.totalorder %s20, 0
    %p174 = por %p172, %p173
    %p175 = scmp.ne.s32.totalorder %s163, %s164
    %p176 = scmp.eq.s32.totalorder %s21, 1
    %p177 = por %p175, %p176
    %p179 = scmp.ne.s32.totalorder %s164, %s178
    %p180 = scmp.eq.s32.totalorder %s21, 0
    %p181 = por %p179, %p180
    %s183 = sadd.s32 %s182, 1
    %p186 = scmp.eq.s32.totalorder %s15, 1
    %p187 = scmp.ne.s32.totalorder %s182, %s184
    %p188 = scmp.eq.s32.totalorder %s15, 0
    %p189 = por %p187, %p188
    %p190 = scmp.ne.s32.totalorder %s182, %s184
    %p191 = scmp.eq.s32.totalorder %s20, 1
    %p192 = por %p190, %p191
    %p193 = scmp.ne.s32.totalorder %s184, %s185
    %p194 = scmp.eq.s32.totalorder %s20, 0
    %p195 = por %p193, %p194
    %p196 = scmp.ne.s32.totalorder %s184, %s185
    %p197 = scmp.eq.s32.totalorder %s21, 1
    %p198 = por %p196, %p197
    %p200 = scmp.ne.s32.totalorder %s185, %s199
    %p201 = scmp.eq.s32.totalorder %s21, 0
    %p202 = por %p200, %p201
    %s204 = sadd.s32 %s203, 1
    %p207 = scmp.eq.s32.totalorder %s15, 1
    %p208 = scmp.ne.s32.totalorder %s203, %s205
    %p209 = scmp.eq.s32.totalorder %s15, 0
    %p210 = por %p208, %p209
    %p211 = scmp.ne.s32.totalorder %s203, %s205
    %p212 = scmp.eq.s32.totalorder %s20, 1
    %p213 = por %p211, %p212
    %p214 = scmp.ne.s32.totalorder %s205, %s206
    %p215 = scmp.eq.s32.totalorder %s20, 0
    %p216 = por %p214, %p215
    %p217 = scmp.ne.s32.totalorder %s205, %s206
    %p218 = scmp.eq.s32.totalorder %s21, 1
    %p219 = por %p217, %p218
    %p221 = scmp.ne.s32.totalorder %s206, %s220
    %p222 = scmp.eq.s32.totalorder %s21, 0
    %p223 = por %p221, %p222
    %s225 = sadd.s32 %s224, 1
    %p228 = scmp.eq.s32.totalorder %s15, 1
    %p229 = scmp.ne.s32.totalorder %s224, %s226
    %p230 = scmp.eq.s32.totalorder %s15, 0
    %p231 = por %p229, %p230
    %p232 = scmp.ne.s32.totalorder %s224, %s226
    %p233 = scmp.eq.s32.totalorder %s20, 1
    %p234 = por %p232, %p233
    %p235 = scmp.ne.s32.totalorder %s226, %s227
    %p236 = scmp.eq.s32.totalorder %s20, 0
    %p237 = por %p235, %p236
    %p238 = scmp.ne.s32.totalorder %s226, %s227
    %p239 = scmp.eq.s32.totalorder %s21, 1
    %p240 = por %p238, %p239
    %p242 = scmp.ne.s32.totalorder %s227, %s241
    %p243 = scmp.eq.s32.totalorder %s21, 0
    %p244 = por %p242, %p243
    %s245 = ssub.s32 %s22, %s34
    %p246 = scmp.eq.s32.totalorder %s245, 0
    %s248 = sadd.s32 %s247, 1
    %s249 = scalar_select %p246, %s247, %s248
    %p252 = pneg %p246
    %p253 = scmp.eq.s32.totalorder %s15, 1
    %p254 = por %p252, %p253
    %p255 = scmp.ne.s32.totalorder %s247, %s250
    %p256 = scmp.eq.s32.totalorder %s15, 0
    %p257 = por %p255, %p256
    %p258 = scmp.ne.s32.totalorder %s247, %s250
    %p259 = scmp.eq.s32.totalorder %s20, 1
    %p260 = por %p258, %p259
    %p261 = scmp.ne.s32.totalorder %s250, %s251
    %p262 = scmp.eq.s32.totalorder %s20, 0
    %p263 = por %p261, %p262
    %p264 = scmp.ne.s32.totalorder %s250, %s251
    %p265 = scmp.eq.s32.totalorder %s21, 1
    %p266 = por %p264, %p265
    %p268 = scmp.ne.s32.totalorder %s251, %s267
    %p269 = scmp.eq.s32.totalorder %s21, 0
    %p270 = por %p268, %p269
    %p271 = scmp.le.s32.totalorder 1, %s15
    %p272 = scmp.lt.s32.totalorder %s15, 3
    %p273 = pnand %p271, %p272
    %p274 = pneg %p273
    // Predicated region
    $region9: #{dspharm_forward.3} parent=5 // pred_check
      _
    $region10: #{dspharm_forward.3} parent=5 // pred_check_branch
      %276 = sbr.rel (%p273) target = $region12
    $region11: #{dspharm_forward.3} parent=5 // pred_region
      %s277 = ssub.s32 %s15, 1
      // Predicated region
      $region13: #{dspharm_forward.3} parent=11 // pred_check
        %p278 = pneg %p132
      $region14: #{dspharm_forward.3} parent=11 // pred_check_branch
        %280 = sbr.rel (%p278) target = $region16
      $region15: #{dspharm_forward.3} parent=11 // pred_region
        _
      $region16: #{dspharm_forward.3} parent=11 // pred_fallthru
        _
      // Predicated region
      $region17: #{dspharm_forward.3} parent=11 // pred_check
        %p281 = pneg %p153
      $region18: #{dspharm_forward.3} parent=11 // pred_check_branch
        %283 = sbr.rel (%p281) target = $region20
      $region19: #{dspharm_forward.3} parent=11 // pred_region
        _
      $region20: #{dspharm_forward.3} parent=11 // pred_fallthru
        _
      // Predicated region
      $region21: #{dspharm_forward.3} parent=11 // pred_check
        %p284 = pneg %p174
      $region22: #{dspharm_forward.3} parent=11 // pred_check_branch
        %286 = sbr.rel (%p284) target = $region24
      $region23: #{dspharm_forward.3} parent=11 // pred_region
        _
      $region24: #{dspharm_forward.3} parent=11 // pred_fallthru
        _
      // Predicated region
      $region25: #{dspharm_forward.3} parent=11 // pred_check
        %p287 = pneg %p195
      $region26: #{dspharm_forward.3} parent=11 // pred_check_branch
        %289 = sbr.rel (%p287) target = $region28
      $region27: #{dspharm_forward.3} parent=11 // pred_region
        _
      $region28: #{dspharm_forward.3} parent=11 // pred_fallthru
        _
      // Predicated region
      $region29: #{dspharm_forward.3} parent=11 // pred_check
        %p290 = pneg %p216
      $region30: #{dspharm_forward.3} parent=11 // pred_check_branch
        %292 = sbr.rel (%p290) target = $region32
      $region31: #{dspharm_forward.3} parent=11 // pred_region
        _
      $region32: #{dspharm_forward.3} parent=11 // pred_fallthru
        _
      // Predicated region
      $region33: #{dspharm_forward.3} parent=11 // pred_check
        %p293 = pneg %p237
      $region34: #{dspharm_forward.3} parent=11 // pred_check_branch
        %295 = sbr.rel (%p293) target = $region36
      $region35: #{dspharm_forward.3} parent=11 // pred_region
        _
      $region36: #{dspharm_forward.3} parent=11 // pred_fallthru
        _
    $region12: #{dspharm_forward.3} parent=5 // pred_fallthru
      _
    %p296 = scmp.lt.s32.totalorder %s15, 2
    // Predicated region
    $region37: #{dspharm_forward.3} parent=5 // pred_check
      %p297 = pneg %p296
    $region38: #{dspharm_forward.3} parent=5 // pred_check_branch
      %299 = sbr.rel (%p297) target = $region40
    $region39: #{dspharm_forward.3} parent=5 // pred_region
      // Predicated region
      $region41: #{dspharm_forward.3} parent=39 // pred_check
        %p300 = pneg %p49
      $region42: #{dspharm_forward.3} parent=39 // pred_check_branch
        %302 = sbr.rel (%p300) target = $region44
      $region43: #{dspharm_forward.3} parent=39 // pred_region
        %s303 = sadd.s32 %s22, %s23
        %s304 = smul.u32 4, %s303
        %p305 = scmp.lt.s32.totalorder %s304, 7
        %s306 = scalar_select %p305, %s304, 7
        %s307 = smul.addr %s306, 4
        %s308 = scalar_lea.vmem %s0, %s307
        %s309 = sadd.s32 %s22, %s23
        %s310 = smul.u32 4, %s309
      $region44: #{dspharm_forward.3} parent=39 // pred_fallthru
        _
      // Predicated region
      $region45: #{dspharm_forward.3} parent=39 // pred_check
        %p311 = pneg %p77
      $region46: #{dspharm_forward.3} parent=39 // pred_check_branch
        %313 = sbr.rel (%p311) target = $region48
      $region47: #{dspharm_forward.3} parent=39 // pred_region
        %s314 = sadd.s32 %s22, %s23
        %s315 = smul.u32 4, %s314
        %p316 = scmp.lt.s32.totalorder %s315, 7
        %s317 = scalar_select %p316, %s315, 7
        %s318 = scalar_lea.vmem %s1, %s317
        %s319 = sadd.s32 %s22, %s23
        %s320 = smul.u32 4, %s319
      $region48: #{dspharm_forward.3} parent=39 // pred_fallthru
        _
      // Predicated region
      $region49: #{dspharm_forward.3} parent=39 // pred_check
        %p321 = pneg %p105
      $region50: #{dspharm_forward.3} parent=39 // pred_check_branch
        %323 = sbr.rel (%p321) target = $region52
      $region51: #{dspharm_forward.3} parent=39 // pred_region
        %s324 = sadd.s32 %s22, %s23
        %s325 = smul.u32 64, %s324
        %p326 = scmp.lt.s32.totalorder %s325, 127
        %s327 = scalar_select %p326, %s325, 127
        %s328 = smul.addr %s327, 8
        %s329 = scalar_lea.vmem %s2, %s328
        %s330 = sadd.s32 %s22, %s23
        %s331 = smul.u32 64, %s330
      $region52: #{dspharm_forward.3} parent=39 // pred_fallthru
        _
    $region40: #{dspharm_forward.3} parent=5 // pred_fallthru
      _
    %p332 = scmp.le.s32.totalorder 1, %s15
    %p333 = scmp.lt.s32.totalorder %s15, 3
    %p334 = pnand %p332, %p333
    %p335 = pneg %p334
    // Predicated region
    $region53: #{dspharm_forward.3} parent=5 // pred_check
      _
    $region54: #{dspharm_forward.3} parent=5 // pred_check_branch
      %337 = sbr.rel (%p334) target = $region56
    $region55: #{dspharm_forward.3} parent=5 // pred_region
      %s338 = ssub.s32 %s15, 1
      %s339 = sadd.s32 %s24, %s25
      %s340 = smul.u32 4, %s339
      %p341 = scmp.lt.s32.totalorder %s340, 7
      %s342 = scalar_select %p341, %s340, 7
      %s343 = smul.addr %s342, 4
      %s344 = scalar_lea.vmem %s0, %s343
      %p345 = pneg %p55
      %p346 = pneg %p52
      %s347 = sadd.s32 %s24, %s25
      %s348 = smul.u32 4, %s347
      %p349 = scmp.lt.s32.totalorder %s348, 7
      %s350 = scalar_select %p349, %s348, 7
      %s351 = scalar_lea.vmem %s1, %s350
      %p352 = pneg %p83
      %p353 = pneg %p80
      %s354 = sadd.s32 %s24, %s25
      %s355 = smul.u32 64, %s354
      %p356 = scmp.lt.s32.totalorder %s355, 127
      %s357 = scalar_select %p356, %s355, 127
      %s358 = smul.addr %s357, 8
      %s359 = scalar_lea.vmem %s2, %s358
      %p360 = pneg %p111
      %p361 = pneg %p108
      %p362 = pneg %p132
      %p363 = pneg %p129
      %p364 = pneg %p153
      %p365 = pneg %p150
      %p366 = pneg %p174
      %p367 = pneg %p171
      %p368 = pneg %p195
      %p369 = pneg %p192
      %p370 = pneg %p216
      %p371 = pneg %p213
      %p372 = pneg %p237
      %p373 = pneg %p234
      %p374 = pneg %p263
      %p375 = pneg %p260
      %p376 = scmp.lt.s32.totalorder %s24, 1
      %s377 = scalar_select %p376, %s24, 1
      %s378 = smul.addr %s377, 8
      %s379 = scalar_lea.vmem %s9, %s378
      %s380 = sadd.s32 %s24, %s25
      %s381 = smul.u32 4, %s380
      %p382 = scmp.lt.s32.totalorder %s381, 7
      %s383 = scalar_select %p382, %s381, 7
      %s384 = smul.addr %s383, 4
      %s385 = scalar_lea.vmem %s0, %s384
      %s386 = sadd.s32 %s24, %s25
      %s387 = smul.u32 4, %s386
      %s388 = sadd.s32 %s24, %s25
      %s389 = smul.u32 4, %s388
      %p390 = scmp.lt.s32.totalorder %s389, 7
      %s391 = scalar_select %p390, %s389, 7
      %s392 = scalar_lea.vmem %s1, %s391
      %s393 = sadd.s32 %s24, %s25
      %s394 = smul.u32 4, %s393
      %s395 = sadd.s32 %s24, %s25
      %s396 = smul.u32 64, %s395
      %p397 = scmp.lt.s32.totalorder %s396, 127
      %s398 = scalar_select %p397, %s396, 127
      %s399 = smul.addr %s398, 8
      %s400 = scalar_lea.vmem %s2, %s399
      %s401 = sadd.s32 %s24, %s25
      %s402 = smul.u32 64, %s401
      %p403 = scmp.lt.s32.totalorder %s24, 1
      %s404 = scalar_select %p403, %s24, 1
      %s405 = smul.addr %s404, 8
      %s406 = scalar_lea.vmem %s9, %s405
      %p408 = scmp.eq.s32.totalorder %s25, 0
      // Predicated region
      $region57: #{dspharm_forward.3} parent=55 // pred_check
        %p409 = pneg %p408
      $region58: #{dspharm_forward.3} parent=55 // pred_check_branch
        %411 = sbr.rel (%p409) target = $region60
      $region59: #{dspharm_forward.3} parent=55 // pred_region
        %vm412 = vcmask 201728
        %413 = vst.msk [vmem:[#allocation2] sm:$0x3f] %vm412, 0.0
      $region60: #{dspharm_forward.3} parent=55 // pred_fallthru
        _
      %v414 = vld [vmem:[%s385] sm:$0x77]
      %v415 = vld [vmem:[%s385 + $0x8] sm:$0x77]
      %v418 = vcombine.high %v414, %v414
      %v419 = vcombine.high %v415, %v415
      %v422 = vpack.c.bf16 %v414, %v414
      %v423 = vpack.c.bf16 %v418, %v418
      %v424 = vpack.c.bf16 %v415, %v415
      %v425 = vpack.c.bf16 %v419, %v419
      %v426 = vld [vmem:[%s3] sm:$0xf]
      %v427 = vld [vmem:[%s3 + $0x4] sm:$0xf]
      %v428 = vld [vmem:[%s4] sm:$0xff]
      %v429 = vld [vmem:[%s4 + $0x8] sm:$0xff]
      %431 = vset.pattern.permute.xlu0 0
      %432 = vperm.xlu0 %431, %v428
      %v433 = vpop.permute.xlu0 %432
      %436 = vset.pattern.permute.xlu0 0
      %437 = vperm.xlu0 %436, %v429
      %v438 = vpop.permute.xlu0 %437
      %v442 = vunpack.c.l.b16 %v426
      %v443 = vunpack.c.l.b16 %v427
      %v444 = vpack.c.b16 %v443, %v442
      %vm445 = vcmask 23552
      %v447 = vsel %vm445, %v444, 0
      %vm449 = vcmask 1040384
      %vm450 = vcmask 1041408
      %v451 = vsel %vm449, 4294967295, 65535
      %v452 = vsel %vm450, %v451, 0
      %v454 = vand.u32 %v422, %v452
      %v457 = vand.u32 %v423, %v452
      %v460 = vand.u32 %v424, %v452
      %v463 = vand.u32 %v425, %v452
      %465 = vmatprep.subr.bf16.mxu0 0
      %466 = vmatpush1.bf16.msra.mxu0 0
      %467 = vmatprep.subr.bf16.mxu0 0
      %468 = vmatpush1.bf16.msra.mxu0 0
      %469 = vmatprep.subr.bf16.mxu0 0
      %470 = vmatpush1.bf16.msra.mxu0 0
      %471 = vmatprep.subr.bf16.mxu0 0
      %472 = vmatpush1.bf16.msra.mxu0 0
      %473 = vmatprep.subr.bf16.mxu0 0
      %474 = vmatpush1.bf16.msra.mxu0 0
      %475 = vmatprep.subr.bf16.mxu0 0
      %476 = vmatpush1.bf16.msra.mxu0 0
      %477 = vmatprep.subr.bf16.mxu0 0
      %478 = vmatpush1.bf16.msra.mxu0 0
      %479 = vmatprep.subr.bf16.mxu0 %v457
      %480 = vmatpush1.bf16.msra.mxu0 %v454
      %481 = vmatprep.subr.bf16.mxu0 0
      %482 = vmatpush2.bf16.msra.mxu0 0
      %483 = vmatprep.subr.bf16.mxu0 0
      %484 = vmatpush2.bf16.msra.mxu0 0
      %485 = vmatprep.subr.bf16.mxu0 0
      %486 = vmatpush2.bf16.msra.mxu0 0
      %487 = vmatprep.subr.bf16.mxu0 0
      %488 = vmatpush2.bf16.msra.mxu0 0
      %489 = vmatprep.subr.bf16.mxu0 0
      %490 = vmatpush2.bf16.msra.mxu0 0
      %491 = vmatprep.subr.bf16.mxu0 0
      %492 = vmatpush2.bf16.msra.mxu0 0
      %493 = vmatprep.subr.bf16.mxu0 0
      %494 = vmatpush2.bf16.msra.mxu0 0
      %495 = vmatprep.subr.bf16.mxu0 0
      %496 = vmatpush2.bf16.msra.mxu0 0
      %497 = vmatprep.mubr.bf16.mxu0 0
      %498 = vmatmul.mubr.bf16.gmra.mxu0 %v447
      %v499 = vpop.f32.mrf.mxu0
      %v500 = vadd.f32 %v433, %v499
      %v501 = vpop.f32.mrf.mxu0
      %v502 = vadd.f32 %v433, %v501
      %v503 = vpop.f32.mrf.mxu0
      %v504 = vadd.f32 %v438, %v503
      %v505 = vpop.f32.mrf.mxu0
      %v506 = vadd.f32 %v438, %v505
      %507 = vdwg.mxu0
      %508 = vmatprep.subr.bf16.mxu0 0
      %509 = vmatpush1.bf16.msra.mxu0 0
      %510 = vmatprep.subr.bf16.mxu0 0
      %511 = vmatpush1.bf16.msra.mxu0 0
      %512 = vmatprep.subr.bf16.mxu0 0
      %513 = vmatpush1.bf16.msra.mxu0 0
      %514 = vmatprep.subr.bf16.mxu0 0
      %515 = vmatpush1.bf16.msra.mxu0 0
      %516 = vmatprep.subr.bf16.mxu0 0
      %517 = vmatpush1.bf16.msra.mxu0 0
      %518 = vmatprep.subr.bf16.mxu0 0
      %519 = vmatpush1.bf16.msra.mxu0 0
      %520 = vmatprep.subr.bf16.mxu0 0
      %521 = vmatpush1.bf16.msra.mxu0 0
      %522 = vmatprep.subr.bf16.mxu0 %v463
      %523 = vmatpush1.bf16.msra.mxu0 %v460
      %524 = vmatprep.subr.bf16.mxu0 0
      %525 = vmatpush2.bf16.msra.mxu0 0
      %526 = vmatprep.subr.bf16.mxu0 0
      %527 = vmatpush2.bf16.msra.mxu0 0
      %528 = vmatprep.subr.bf16.mxu0 0
      %529 = vmatpush2.bf16.msra.mxu0 0
      %530 = vmatprep.subr.bf16.mxu0 0
      %531 = vmatpush2.bf16.msra.mxu0 0
      %532 = vmatprep.subr.bf16.mxu0 0
      %533 = vmatpush2.bf16.msra.mxu0 0
      %534 = vmatprep.subr.bf16.mxu0 0
      %535 = vmatpush2.bf16.msra.mxu0 0
      %536 = vmatprep.subr.bf16.mxu0 0
      %537 = vmatpush2.bf16.msra.mxu0 0
      %538 = vmatprep.subr.bf16.mxu0 0
      %539 = vmatpush2.bf16.msra.mxu0 0
      %540 = vmatprep.mubr.bf16.mxu0 0
      %541 = vmatmul.mubr.bf16.gmra.mxu0 %v447
      %v542 = vpop.f32.mrf.mxu0
      %v543 = vadd.f32 %v433, %v542
      %v544 = vpop.f32.mrf.mxu0
      %v545 = vadd.f32 %v433, %v544
      %v546 = vpop.f32.mrf.mxu0
      %v547 = vadd.f32 %v438, %v546
      %v548 = vpop.f32.mrf.mxu0
      %v549 = vadd.f32 %v438, %v548
      %550 = vdwg.mxu0
      %v551 = vmax.f32 %v500, 0.0
      %v552 = vmax.f32 %v502, 0.0
      %v553 = vmax.f32 %v543, 0.0
      %v554 = vmax.f32 %v545, 0.0
      %v555 = vmax.f32 %v504, 0.0
      %v556 = vmax.f32 %v506, 0.0
      %v557 = vmax.f32 %v547, 0.0
      %v558 = vmax.f32 %v549, 0.0
      %v559 = vld [vmem:[%s5] sm:$0xf]
      %v560 = vld [vmem:[%s5 + $0x4] sm:$0xf]
      %v561 = vpack.c.bf16 %v555, %v551
      %v562 = vpack.c.bf16 %v556, %v552
      %v563 = vpack.c.bf16 %v557, %v553
      %v564 = vpack.c.bf16 %v558, %v554
      %v565 = vld [vmem:[%s6] sm:$0xff]
      %v566 = vld [vmem:[%s6 + $0x8] sm:$0xff]
      %568 = vset.pattern.permute.xlu0 0
      %569 = vperm.xlu0 %568, %v565
      %v570 = vpop.permute.xlu0 %569
      %573 = vset.pattern.permute.xlu0 0
      %574 = vperm.xlu0 %573, %v566
      %v575 = vpop.permute.xlu0 %574
      %v579 = vunpack.c.l.b16 %v559
      %v580 = vunpack.c.l.b16 %v560
      %v581 = vpack.c.b16 %v580, %v579
      %vm582 = vcmask 130048
      %v584 = vsel %vm582, %v581, 0
      %586 = vmatprep.subr.bf16.mxu0 0
      %587 = vmatpush1.bf16.msra.mxu0 0
      %588 = vmatprep.subr.bf16.mxu0 0
      %589 = vmatpush1.bf16.msra.mxu0 0
      %590 = vmatprep.subr.bf16.mxu0 0
      %591 = vmatpush1.bf16.msra.mxu0 0
      %592 = vmatprep.subr.bf16.mxu0 0
      %593 = vmatpush1.bf16.msra.mxu0 0
      %594 = vmatprep.subr.bf16.mxu0 0
      %595 = vmatpush1.bf16.msra.mxu0 0
      %596 = vmatprep.subr.bf16.mxu0 0
      %597 = vmatpush1.bf16.msra.mxu0 0
      %598 = vmatprep.subr.bf16.mxu0 0
      %599 = vmatpush1.bf16.msra.mxu0 0
      %600 = vmatprep.subr.bf16.mxu0 %v562
      %601 = vmatpush1.bf16.msra.mxu0 %v561
      %602 = vmatprep.subr.bf16.mxu0 0
      %603 = vmatpush2.bf16.msra.mxu0 0
      %604 = vmatprep.subr.bf16.mxu0 0
      %605 = vmatpush2.bf16.msra.mxu0 0
      %606 = vmatprep.subr.bf16.mxu0 0
      %607 = vmatpush2.bf16.msra.mxu0 0
      %608 = vmatprep.subr.bf16.mxu0 0
      %609 = vmatpush2.bf16.msra.mxu0 0
      %610 = vmatprep.subr.bf16.mxu0 0
      %611 = vmatpush2.bf16.msra.mxu0 0
      %612 = vmatprep.subr.bf16.mxu0 0
      %613 = vmatpush2.bf16.msra.mxu0 0
      %614 = vmatprep.subr.bf16.mxu0 0
      %615 = vmatpush2.bf16.msra.mxu0 0
      %616 = vmatprep.subr.bf16.mxu0 0
      %617 = vmatpush2.bf16.msra.mxu0 0
      %618 = vmatprep.mubr.bf16.mxu0 0
      %619 = vmatmul.mubr.bf16.gmra.mxu0 %v584
      %v620 = vpop.f32.mrf.mxu0
      %v621 = vadd.f32 %v570, %v620
      %v622 = vpop.f32.mrf.mxu0
      %v623 = vadd.f32 %v570, %v622
      %v624 = vpop.f32.mrf.mxu0
      %v625 = vadd.f32 %v575, %v624
      %v626 = vpop.f32.mrf.mxu0
      %v627 = vadd.f32 %v575, %v626
      %628 = vdwg.mxu0
      %629 = vmatprep.subr.bf16.mxu0 0
      %630 = vmatpush1.bf16.msra.mxu0 0
      %631 = vmatprep.subr.bf16.mxu0 0
      %632 = vmatpush1.bf16.msra.mxu0 0
      %633 = vmatprep.subr.bf16.mxu0 0
      %634 = vmatpush1.bf16.msra.mxu0 0
      %635 = vmatprep.subr.bf16.mxu0 0
      %636 = vmatpush1.bf16.msra.mxu0 0
      %637 = vmatprep.subr.bf16.mxu0 0
      %638 = vmatpush1.bf16.msra.mxu0 0
      %639 = vmatprep.subr.bf16.mxu0 0
      %640 = vmatpush1.bf16.msra.mxu0 0
      %641 = vmatprep.subr.bf16.mxu0 0
      %642 = vmatpush1.bf16.msra.mxu0 0
      %643 = vmatprep.subr.bf16.mxu0 %v564
      %644 = vmatpush1.bf16.msra.mxu0 %v563
      %645 = vmatprep.subr.bf16.mxu0 0
      %646 = vmatpush2.bf16.msra.mxu0 0
      %647 = vmatprep.subr.bf16.mxu0 0
      %648 = vmatpush2.bf16.msra.mxu0 0
      %649 = vmatprep.subr.bf16.mxu0 0
      %650 = vmatpush2.bf16.msra.mxu0 0
      %651 = vmatprep.subr.bf16.mxu0 0
      %652 = vmatpush2.bf16.msra.mxu0 0
      %653 = vmatprep.subr.bf16.mxu0 0
      %654 = vmatpush2.bf16.msra.mxu0 0
      %655 = vmatprep.subr.bf16.mxu0 0
      %656 = vmatpush2.bf16.msra.mxu0 0
      %657 = vmatprep.subr.bf16.mxu0 0
      %658 = vmatpush2.bf16.msra.mxu0 0
      %659 = vmatprep.subr.bf16.mxu0 0
      %660 = vmatpush2.bf16.msra.mxu0 0
      %661 = vmatprep.mubr.bf16.mxu0 0
      %662 = vmatmul.mubr.bf16.gmra.mxu0 %v584
      %v663 = vpop.f32.mrf.mxu0
      %v664 = vadd.f32 %v570, %v663
      %v665 = vpop.f32.mrf.mxu0
      %v666 = vadd.f32 %v570, %v665
      %v667 = vpop.f32.mrf.mxu0
      %v668 = vadd.f32 %v575, %v667
      %v669 = vpop.f32.mrf.mxu0
      %v670 = vadd.f32 %v575, %v669
      %671 = vdwg.mxu0
      %v672 = vmax.f32 %v621, 0.0
      %v673 = vmax.f32 %v623, 0.0
      %v674 = vmax.f32 %v664, 0.0
      %v675 = vmax.f32 %v666, 0.0
      %v676 = vmax.f32 %v625, 0.0
      %v677 = vmax.f32 %v627, 0.0
      %v678 = vmax.f32 %v668, 0.0
      %v679 = vmax.f32 %v670, 0.0
      %v680 = vld [vmem:[%s7] sm:$0x7]
      %v681 = vpack.c.bf16 %v676, %v672
      %v682 = vpack.c.bf16 %v677, %v673
      %v683 = vpack.c.bf16 %v678, %v674
      %v684 = vpack.c.bf16 %v679, %v675
      %v685 = vld [vmem:[%s8] sm:$0x3f]
      %687 = vset.pattern.permute.xlu0 0
      %688 = vperm.xlu0 %687, %v685
      %v689 = vpop.permute.xlu0 %688
      %v692 = vsel %vm582, %v680, 0
      %694 = vmatprep.subr.bf16.mxu0 0
      %695 = vmatpush1.bf16.msra.mxu0 0
      %696 = vmatprep.subr.bf16.mxu0 0
      %697 = vmatpush1.bf16.msra.mxu0 0
      %698 = vmatprep.subr.bf16.mxu0 0
      %699 = vmatpush1.bf16.msra.mxu0 0
      %700 = vmatprep.subr.bf16.mxu0 0
      %701 = vmatpush1.bf16.msra.mxu0 0
      %702 = vmatprep.subr.bf16.mxu0 0
      %703 = vmatpush1.bf16.msra.mxu0 0
      %704 = vmatprep.subr.bf16.mxu0 0
      %705 = vmatpush1.bf16.msra.mxu0 0
      %706 = vmatprep.subr.bf16.mxu0 0
      %707 = vmatpush1.bf16.msra.mxu0 0
      %708 = vmatprep.subr.bf16.mxu0 %v682
      %709 = vmatpush1.bf16.msra.mxu0 %v681
      %710 = vmatprep.subr.bf16.mxu0 0
      %711 = vmatpush2.bf16.msra.mxu0 0
      %712 = vmatprep.subr.bf16.mxu0 0
      %713 = vmatpush2.bf16.msra.mxu0 0
      %714 = vmatprep.subr.bf16.mxu0 0
      %715 = vmatpush2.bf16.msra.mxu0 0
      %716 = vmatprep.subr.bf16.mxu0 0
      %717 = vmatpush2.bf16.msra.mxu0 0
      %718 = vmatprep.subr.bf16.mxu0 0
      %719 = vmatpush2.bf16.msra.mxu0 0
      %720 = vmatprep.subr.bf16.mxu0 0
      %721 = vmatpush2.bf16.msra.mxu0 0
      %722 = vmatprep.subr.bf16.mxu0 0
      %723 = vmatpush2.bf16.msra.mxu0 0
      %724 = vmatprep.subr.bf16.mxu0 0
      %725 = vmatpush2.bf16.msra.mxu0 0
      %726 = vmatprep.mubr.bf16.mxu0 0
      %727 = vmatmul.mubr.bf16.gmra.mxu0 %v692
      %v728 = vpop.f32.mrf.mxu0
      %v729 = vadd.f32 %v689, %v728
      %v730 = vpop.f32.mrf.mxu0
      %v731 = vadd.f32 %v689, %v730
      %v732 = vpop.f32.mrf.mxu0
      %v733 = vpop.f32.mrf.mxu0
      %734 = vdwg.mxu0
      %735 = vmatprep.subr.bf16.mxu0 0
      %736 = vmatpush1.bf16.msra.mxu0 0
      %737 = vmatprep.subr.bf16.mxu0 0
      %738 = vmatpush1.bf16.msra.mxu0 0
      %739 = vmatprep.subr.bf16.mxu0 0
      %740 = vmatpush1.bf16.msra.mxu0 0
      %741 = vmatprep.subr.bf16.mxu0 0
      %742 = vmatpush1.bf16.msra.mxu0 0
      %743 = vmatprep.subr.bf16.mxu0 0
      %744 = vmatpush1.bf16.msra.mxu0 0
      %745 = vmatprep.subr.bf16.mxu0 0
      %746 = vmatpush1.bf16.msra.mxu0 0
      %747 = vmatprep.subr.bf16.mxu0 0
      %748 = vmatpush1.bf16.msra.mxu0 0
      %749 = vmatprep.subr.bf16.mxu0 %v684
      %750 = vmatpush1.bf16.msra.mxu0 %v683
      %751 = vmatprep.subr.bf16.mxu0 0
      %752 = vmatpush2.bf16.msra.mxu0 0
      %753 = vmatprep.subr.bf16.mxu0 0
      %754 = vmatpush2.bf16.msra.mxu0 0
      %755 = vmatprep.subr.bf16.mxu0 0
      %756 = vmatpush2.bf16.msra.mxu0 0
      %757 = vmatprep.subr.bf16.mxu0 0
      %758 = vmatpush2.bf16.msra.mxu0 0
      %759 = vmatprep.subr.bf16.mxu0 0
      %760 = vmatpush2.bf16.msra.mxu0 0
      %761 = vmatprep.subr.bf16.mxu0 0
      %762 = vmatpush2.bf16.msra.mxu0 0
      %763 = vmatprep.subr.bf16.mxu0 0
      %764 = vmatpush2.bf16.msra.mxu0 0
      %765 = vmatprep.subr.bf16.mxu0 0
      %766 = vmatpush2.bf16.msra.mxu0 0
      %767 = vmatprep.mubr.bf16.mxu0 0
      %768 = vmatmul.mubr.bf16.gmra.mxu0 %v692
      %v769 = vpop.f32.mrf.mxu0
      %v770 = vadd.f32 %v689, %v769
      %v771 = vpop.f32.mrf.mxu0
      %v772 = vadd.f32 %v689, %v771
      %v773 = vpop.f32.mrf.mxu0
      %v774 = vpop.f32.mrf.mxu0
      %775 = vdwg.mxu0
      %v776 = vld [vmem:[#allocation2] sm:$0x3f]
      %v777 = vld [vmem:[%s392] sm:$0xf]
      %v779 = vlaneseq
      %v780 = vshrl.u32 %v779, 7
      %v781 = vsub.s32 0, %v780
      %v782 = vrot.slane %v777, %v781
      %v783 = vlaneseq
      %v784 = vshrl.u32 %v783, 7
      %v785 = vsub.s32 1, %v784
      %v786 = vrot.slane %v777, %v785
      %v787 = vlaneseq
      %v788 = vshrl.u32 %v787, 7
      %v789 = vsub.s32 2, %v788
      %v790 = vrot.slane %v777, %v789
      %v791 = vlaneseq
      %v792 = vshrl.u32 %v791, 7
      %v793 = vsub.s32 3, %v792
      %v794 = vrot.slane %v777, %v793
      %v799 = vmul.f32 %v729, %v782
      %v800 = vmul.f32 %v731, %v786
      %v801 = vmul.f32 %v770, %v790
      %v802 = vmul.f32 %v772, %v794
      %v803 = vld [vmem:[%s400] sm:$0xff]
      %v804 = vld [vmem:[%s400 + $0x8] sm:$0xff]
      %v805 = vld [vmem:[%s400 + $0x10] sm:$0xff]
      %v806 = vld [vmem:[%s400 + $0x18] sm:$0xff]
      %v807 = vld [vmem:[%s400 + $0x20] sm:$0xff]
      %v808 = vld [vmem:[%s400 + $0x28] sm:$0xff]
      %v809 = vld [vmem:[%s400 + $0x30] sm:$0xff]
      %v810 = vld [vmem:[%s400 + $0x38] sm:$0xff]
      %v811 = vld [vmem:[%s400 + $0x40] sm:$0xff]
      %v812 = vld [vmem:[%s400 + $0x48] sm:$0xff]
      %v813 = vld [vmem:[%s400 + $0x50] sm:$0xff]
      %v814 = vld [vmem:[%s400 + $0x58] sm:$0xff]
      %v815 = vld [vmem:[%s400 + $0x60] sm:$0xff]
      %v816 = vld [vmem:[%s400 + $0x68] sm:$0xff]
      %v817 = vld [vmem:[%s400 + $0x70] sm:$0xff]
      %v818 = vld [vmem:[%s400 + $0x78] sm:$0xff]
      %v819 = vld [vmem:[%s400 + $0x80] sm:$0xff]
      %v820 = vld [vmem:[%s400 + $0x88] sm:$0xff]
      %v821 = vld [vmem:[%s400 + $0x90] sm:$0xff]
      %v822 = vld [vmem:[%s400 + $0x98] sm:$0xff]
      %v823 = vld [vmem:[%s400 + $0xa0] sm:$0xff]
      %v824 = vld [vmem:[%s400 + $0xa8] sm:$0xff]
      %v825 = vld [vmem:[%s400 + $0xb0] sm:$0xff]
      %v826 = vld [vmem:[%s400 + $0xb8] sm:$0xff]
      %v827 = vld [vmem:[%s400 + $0xc0] sm:$0xff]
      %v828 = vld [vmem:[%s400 + $0xc8] sm:$0xff]
      %v829 = vld [vmem:[%s400 + $0xd0] sm:$0xff]
      %v830 = vld [vmem:[%s400 + $0xd8] sm:$0xff]
      %v831 = vld [vmem:[%s400 + $0xe0] sm:$0xff]
      %v832 = vld [vmem:[%s400 + $0xe8] sm:$0xff]
      %v833 = vld [vmem:[%s400 + $0xf0] sm:$0xff]
      %v834 = vld [vmem:[%s400 + $0xf8] sm:$0xff]
      %v835 = vld [vmem:[%s400 + $0x100] sm:$0xff]
      %v836 = vld [vmem:[%s400 + $0x108] sm:$0xff]
      %v837 = vld [vmem:[%s400 + $0x110] sm:$0xff]
      %v838 = vld [vmem:[%s400 + $0x118] sm:$0xff]
      %v839 = vld [vmem:[%s400 + $0x120] sm:$0xff]
      %v840 = vld [vmem:[%s400 + $0x128] sm:$0xff]
      %v841 = vld [vmem:[%s400 + $0x130] sm:$0xff]
      %v842 = vld [vmem:[%s400 + $0x138] sm:$0xff]
      %v843 = vld [vmem:[%s400 + $0x140] sm:$0xff]
      %v844 = vld [vmem:[%s400 + $0x148] sm:$0xff]
      %v845 = vld [vmem:[%s400 + $0x150] sm:$0xff]
      %v846 = vld [vmem:[%s400 + $0x158] sm:$0xff]
      %v847 = vld [vmem:[%s400 + $0x160] sm:$0xff]
      %v848 = vld [vmem:[%s400 + $0x168] sm:$0xff]
      %v849 = vld [vmem:[%s400 + $0x170] sm:$0xff]
      %v850 = vld [vmem:[%s400 + $0x178] sm:$0xff]
      %v851 = vld [vmem:[%s400 + $0x180] sm:$0xff]
      %v852 = vld [vmem:[%s400 + $0x188] sm:$0xff]
      %v853 = vld [vmem:[%s400 + $0x190] sm:$0xff]
      %v854 = vld [vmem:[%s400 + $0x198] sm:$0xff]
      %v855 = vld [vmem:[%s400 + $0x1a0] sm:$0xff]
      %v856 = vld [vmem:[%s400 + $0x1a8] sm:$0xff]
      %v857 = vld [vmem:[%s400 + $0x1b0] sm:$0xff]
      %v858 = vld [vmem:[%s400 + $0x1b8] sm:$0xff]
      %v859 = vld [vmem:[%s400 + $0x1c0] sm:$0xff]
      %v860 = vld [vmem:[%s400 + $0x1c8] sm:$0xff]
      %v861 = vld [vmem:[%s400 + $0x1d0] sm:$0xff]
      %v862 = vld [vmem:[%s400 + $0x1d8] sm:$0xff]
      %v863 = vld [vmem:[%s400 + $0x1e0] sm:$0xff]
      %v864 = vld [vmem:[%s400 + $0x1e8] sm:$0xff]
      %v865 = vld [vmem:[%s400 + $0x1f0] sm:$0xff]
      %v866 = vld [vmem:[%s400 + $0x1f8] sm:$0xff]
      %867 = vmatprep.subr.mxu0 0.0
      %868 = vmatpush1.msra.mxu0 %v818
      %869 = vmatprep.subr.mxu0 0.0
      %870 = vmatpush1.msra.mxu0 %v817
      %871 = vmatprep.subr.mxu0 0.0
      %872 = vmatpush1.msra.mxu0 %v816
      %873 = vmatprep.subr.mxu0 0.0
      %874 = vmatpush1.msra.mxu0 %v815
      %875 = vmatprep.subr.mxu0 0.0
      %876 = vmatpush1.msra.mxu0 %v814
      %877 = vmatprep.subr.mxu0 0.0
      %878 = vmatpush1.msra.mxu0 %v813
      %879 = vmatprep.subr.mxu0 0.0
      %880 = vmatpush1.msra.mxu0 %v812
      %881 = vmatprep.subr.mxu0 0.0
      %882 = vmatpush1.msra.mxu0 %v811
      %883 = vmatprep.subr.mxu0 0.0
      %884 = vmatpush1.msra.mxu0 %v810
      %885 = vmatprep.subr.mxu0 0.0
      %886 = vmatpush1.msra.mxu0 %v809
      %887 = vmatprep.subr.mxu0 0.0
      %888 = vmatpush1.msra.mxu0 %v808
      %889 = vmatprep.subr.mxu0 0.0
      %890 = vmatpush1.msra.mxu0 %v807
      %891 = vmatprep.subr.mxu0 0.0
      %892 = vmatpush1.msra.mxu0 %v806
      %893 = vmatprep.subr.mxu0 0.0
      %894 = vmatpush1.msra.mxu0 %v805
      %895 = vmatprep.subr.mxu0 0.0
      %896 = vmatpush1.msra.mxu0 %v804
      %897 = vmatprep.subr.mxu0 0.0
      %898 = vmatpush1.msra.mxu0 %v803
      %899 = vmatprep.subr.mxu0 0.0
      %900 = vmatpush2.msra.mxu0 %v834
      %901 = vmatprep.subr.mxu0 0.0
      %902 = vmatpush2.msra.mxu0 %v833
      %903 = vmatprep.subr.mxu0 0.0
      %904 = vmatpush2.msra.mxu0 %v832
      %905 = vmatprep.subr.mxu0 0.0
      %906 = vmatpush2.msra.mxu0 %v831
      %907 = vmatprep.subr.mxu0 0.0
      %908 = vmatpush2.msra.mxu0 %v830
      %909 = vmatprep.subr.mxu0 0.0
      %910 = vmatpush2.msra.mxu0 %v829
      %911 = vmatprep.subr.mxu0 0.0
      %912 = vmatpush2.msra.mxu0 %v828
      %913 = vmatprep.subr.mxu0 0.0
      %914 = vmatpush2.msra.mxu0 %v827
      %915 = vmatprep.subr.mxu0 0.0
      %916 = vmatpush2.msra.mxu0 %v826
      %917 = vmatprep.subr.mxu0 0.0
      %918 = vmatpush2.msra.mxu0 %v825
      %919 = vmatprep.subr.mxu0 0.0
      %920 = vmatpush2.msra.mxu0 %v824
      %921 = vmatprep.subr.mxu0 0.0
      %922 = vmatpush2.msra.mxu0 %v823
      %923 = vmatprep.subr.mxu0 0.0
      %924 = vmatpush2.msra.mxu0 %v822
      %925 = vmatprep.subr.mxu0 0.0
      %926 = vmatpush2.msra.mxu0 %v821
      %927 = vmatprep.subr.mxu0 0.0
      %928 = vmatpush2.msra.mxu0 %v820
      %929 = vmatprep.subr.mxu0 0.0
      %930 = vmatpush2.msra.mxu0 %v819
      %931 = vmatprep.mubr.f32.mxu0 %v800
      %932 = vmatmul.mubr.f32.gmra.mxu0 %v799
      %v933 = vpop.f32.mrf.mxu0
      %v934 = vadd.f32 0.0, %v933
      %v935 = vpop.f32.mrf.mxu0
      %936 = vdwg.mxu0
      %937 = vmatprep.subr.mxu0 0.0
      %938 = vmatpush1.msra.mxu0 %v850
      %939 = vmatprep.subr.mxu0 0.0
      %940 = vmatpush1.msra.mxu0 %v849
      %941 = vmatprep.subr.mxu0 0.0
      %942 = vmatpush1.msra.mxu0 %v848
      %943 = vmatprep.subr.mxu0 0.0
      %944 = vmatpush1.msra.mxu0 %v847
      %945 = vmatprep.subr.mxu0 0.0
      %946 = vmatpush1.msra.mxu0 %v846
      %947 = vmatprep.subr.mxu0 0.0
      %948 = vmatpush1.msra.mxu0 %v845
      %949 = vmatprep.subr.mxu0 0.0
      %950 = vmatpush1.msra.mxu0 %v844
      %951 = vmatprep.subr.mxu0 0.0
      %952 = vmatpush1.msra.mxu0 %v843
      %953 = vmatprep.subr.mxu0 0.0
      %954 = vmatpush1.msra.mxu0 %v842
      %955 = vmatprep.subr.mxu0 0.0
      %956 = vmatpush1.msra.mxu0 %v841
      %957 = vmatprep.subr.mxu0 0.0
      %958 = vmatpush1.msra.mxu0 %v840
      %959 = vmatprep.subr.mxu0 0.0
      %960 = vmatpush1.msra.mxu0 %v839
      %961 = vmatprep.subr.mxu0 0.0
      %962 = vmatpush1.msra.mxu0 %v838
      %963 = vmatprep.subr.mxu0 0.0
      %964 = vmatpush1.msra.mxu0 %v837
      %965 = vmatprep.subr.mxu0 0.0
      %966 = vmatpush1.msra.mxu0 %v836
      %967 = vmatprep.subr.mxu0 0.0
      %968 = vmatpush1.msra.mxu0 %v835
      %969 = vmatprep.subr.mxu0 0.0
      %970 = vmatpush2.msra.mxu0 %v866
      %971 = vmatprep.subr.mxu0 0.0
      %972 = vmatpush2.msra.mxu0 %v865
      %973 = vmatprep.subr.mxu0 0.0
      %974 = vmatpush2.msra.mxu0 %v864
      %975 = vmatprep.subr.mxu0 0.0
      %976 = vmatpush2.msra.mxu0 %v863
      %977 = vmatprep.subr.mxu0 0.0
      %978 = vmatpush2.msra.mxu0 %v862
      %979 = vmatprep.subr.mxu0 0.0
      %980 = vmatpush2.msra.mxu0 %v861
      %981 = vmatprep.subr.mxu0 0.0
      %982 = vmatpush2.msra.mxu0 %v860
      %983 = vmatprep.subr.mxu0 0.0
      %984 = vmatpush2.msra.mxu0 %v859
      %985 = vmatprep.subr.mxu0 0.0
      %986 = vmatpush2.msra.mxu0 %v858
      %987 = vmatprep.subr.mxu0 0.0
      %988 = vmatpush2.msra.mxu0 %v857
      %989 = vmatprep.subr.mxu0 0.0
      %990 = vmatpush2.msra.mxu0 %v856
      %991 = vmatprep.subr.mxu0 0.0
      %992 = vmatpush2.msra.mxu0 %v855
      %993 = vmatprep.subr.mxu0 0.0
      %994 = vmatpush2.msra.mxu0 %v854
      %995 = vmatprep.subr.mxu0 0.0
      %996 = vmatpush2.msra.mxu0 %v853
      %997 = vmatprep.subr.mxu0 0.0
      %998 = vmatpush2.msra.mxu0 %v852
      %999 = vmatprep.subr.mxu0 0.0
      %1000 = vmatpush2.msra.mxu0 %v851
      %1001 = vmatprep.mubr.f32.mxu0 %v802
      %1002 = vmatmul.mubr.f32.gmra.mxu0 %v801
      %v1003 = vpop.f32.mrf.mxu0
      %v1004 = vadd.f32 %v934, %v1003
      %v1005 = vpop.f32.mrf.mxu0
      %1006 = vdwg.mxu0
      %v1007 = vadd.f32 %v776, %v1004
      %vm1008 = vcmask 201728
      %1009 = vst.msk [vmem:[#allocation2] sm:$0x3f] %vm1008, %v1007
      // Predicated region
      $region61: #{dspharm_forward.3} parent=55 // pred_check
        %p1010 = pneg %p408
      $region62: #{dspharm_forward.3} parent=55 // pred_check_branch
        %1012 = sbr.rel (%p1010) target = $region64
      $region63: #{dspharm_forward.3} parent=55 // pred_region
        %v1013 = vld [vmem:[#allocation2] sm:$0x3f]
        %1014 = vst.msk [vmem:[%s406] sm:$0x3f] %vm1008, %v1013
      $region64: #{dspharm_forward.3} parent=55 // pred_fallthru
        _
      %p1015 = scmp.lt.s32.totalorder %s24, 1
      %s1016 = scalar_select %p1015, %s24, 1
      %s1017 = smul.addr %s1016, 8
      %s1018 = scalar_lea.vmem %s9, %s1017
      // Predicated region
      $region65: #{dspharm_forward.3} parent=55 // pred_check
        %p1019 = pneg %p260
      $region66: #{dspharm_forward.3} parent=55 // pred_check_branch
        %1021 = sbr.rel (%p1019) target = $region68
      $region67: #{dspharm_forward.3} parent=55 // pred_region
        _
      $region68: #{dspharm_forward.3} parent=55 // pred_fallthru
        _
    $region56: #{dspharm_forward.3} parent=5 // pred_fallthru
      _
    %p1022 = scmp.le.s32.totalorder 2, %s15
    // Predicated region
    $region69: #{dspharm_forward.3} parent=5 // pred_check
      %p1023 = pneg %p1022
    $region70: #{dspharm_forward.3} parent=5 // pred_check_branch
      %1025 = sbr.rel (%p1023) target = $region72
    $region71: #{dspharm_forward.3} parent=5 // pred_region
      %s1026 = ssub.s32 %s15, 2
      // Predicated region
      $region73: #{dspharm_forward.3} parent=71 // pred_check
        %p1027 = pneg %p266
      $region74: #{dspharm_forward.3} parent=71 // pred_check_branch
        %1029 = sbr.rel (%p1027) target = $region76
      $region75: #{dspharm_forward.3} parent=71 // pred_region
        %p1030 = scmp.lt.s32.totalorder %s26, 1
        %s1031 = scalar_select %p1030, %s26, 1
        %s1032 = smul.addr %s1031, 8
        %s1033 = scalar_lea.vmem %s9, %s1032
      $region76: #{dspharm_forward.3} parent=71 // pred_fallthru
        _
    $region72: #{dspharm_forward.3} parent=5 // pred_fallthru
      _
  $region6: #{dspharm_forward.3} parent=0 // loop_footer
    %s19 = sadd.s32 1, %s15
  $region7: #{dspharm_forward.3} parent=0 // loop_footer_branch
    %14 = sbr.rel target = $region3
  $region8: #{dspharm_forward.3} parent=0 // loop_exit
    _

// kernel: dspharm_forward.4
$region0: #{dspharm_forward.4}
  #allocation0 [shape = 'u32[]', space=smem, size = 0x4, offset = 0x4, fixed_abs, tag = 'smem constant byte address 0x4 - core index']
  #allocation1 [shape = 'u32[144,128]{1,0:T(1,128)}', space=vmem, size = 0x12000, scoped, tag = 'internal scratch']
  %s0 = inlined_call_operand.vmem [shape: f32[6,25], index: 0, kind: input, shape index: {}]
  %s1 = inlined_call_operand.vmem [shape: f32[25,1024], index: 1, kind: input, shape index: {}]
  %s2 = inlined_call_operand.vmem [shape: f32[6,1024], index: 2, kind: output, shape index: {}]
  %s3 = sld [smem:[#allocation0]]
  $region64: #{dspharm_forward.4} parent=0
    _
  %s5 = ssub.s32 1, %s3
  %s6 = scalar_select 0, %s5, %s3
  $region1: #{dspharm_forward.4} parent=0
    #allocation2 [shape = 'u8[131072]{0}', space=vmem, size = 0x20000, scoped, tag = 'input window, operand 1']
    loop: start=0, step=1, limit=4
    $region2: #{dspharm_forward.4} parent=1 // loop_pre_header
      _
    $region3: #{dspharm_forward.4} parent=1 // loop_header
      %s8 = sphi 0, %s12
      %p9 = scmp.ge.s32.totalorder %s8, 4
      %s16 = sphi 0, %s16
      %s18 = sphi 0, %s16
      %s19 = sphi 0, %s18
      %s33 = sphi 0, %s19
      %s39 = sphi 0, %s41
      %s42 = sphi 0, %s39
      %s43 = sphi 0, %s42
      %s59 = sphi 0, %s43
      %s65 = sphi 0, %s67
      %s68 = sphi 0, %s65
      %s69 = sphi 0, %s68
      %s85 = sphi 0, %s69
    $region4: #{dspharm_forward.4} parent=1 // loop_header_branch
      %11 = sbr.rel (%p9) target = $region8
    $region5: #{dspharm_forward.4} parent=1 // loop_body
      %s13 = ssub.s32 %s8, 1
      %s14 = ssub.s32 %s8, 2
      %s15 = sadd.s32 %s8, 1
      %s17 = sadd.s32 %s16, 1
      %p20 = scmp.eq.s32.totalorder %s8, 1
      %p21 = scmp.ne.s32.totalorder %s16, %s18
      %p22 = scmp.eq.s32.totalorder %s8, 0
      %p23 = por %p21, %p22
      %p24 = scmp.ne.s32.totalorder %s16, %s18
      %p25 = scmp.eq.s32.totalorder %s13, 1
      %p26 = por %p24, %p25
      %p27 = scmp.ne.s32.totalorder %s18, %s19
      %p28 = scmp.eq.s32.totalorder %s13, 0
      %p29 = por %p27, %p28
      %p30 = scmp.ne.s32.totalorder %s18, %s19
      %p31 = scmp.eq.s32.totalorder %s14, 1
      %p32 = por %p30, %p31
      %p34 = scmp.ne.s32.totalorder %s19, %s33
      %p35 = scmp.eq.s32.totalorder %s14, 0
      %p36 = por %p34, %p35
      %s37 = ssub.s32 %s8, %s15
      %p38 = scmp.eq.s32.totalorder %s37, 0
      %s40 = sadd.s32 %s39, 1
      %s41 = scalar_select %p38, %s39, %s40
      %p44 = pneg %p38
      %p45 = scmp.eq.s32.totalorder %s8, 1
      %p46 = por %p44, %p45
      %p47 = scmp.ne.s32.totalorder %s39, %s42
      %p48 = scmp.eq.s32.totalorder %s8, 0
      %p49 = por %p47, %p48
      %p50 = scmp.ne.s32.totalorder %s39, %s42
      %p51 = scmp.eq.s32.totalorder %s13, 1
      %p52 = por %p50, %p51
      %p53 = scmp.ne.s32.totalorder %s42, %s43
      %p54 = scmp.eq.s32.totalorder %s13, 0
      %p55 = por %p53, %p54
      %p56 = scmp.ne.s32.totalorder %s42, %s43
      %p57 = scmp.eq.s32.totalorder %s14, 1
      %p58 = por %p56, %p57
      %p60 = scmp.ne.s32.totalorder %s43, %s59
      %p61 = scmp.eq.s32.totalorder %s14, 0
      %p62 = por %p60, %p61
      %s63 = ssub.s32 %s8, %s15
      %p64 = scmp.eq.s32.totalorder %s63, 0
      %s66 = sadd.s32 %s65, 1
      %s67 = scalar_select %p64, %s65, %s66
      %p70 = pneg %p64
      %p71 = scmp.eq.s32.totalorder %s8, 1
      %p72 = por %p70, %p71
      %p73 = scmp.ne.s32.totalorder %s65, %s68
      %p74 = scmp.eq.s32.totalorder %s8, 0
      %p75 = por %p73, %p74
      %p76 = scmp.ne.s32.totalorder %s65, %s68
      %p77 = scmp.eq.s32.totalorder %s13, 1
      %p78 = por %p76, %p77
      %p79 = scmp.ne.s32.totalorder %s68, %s69
      %p80 = scmp.eq.s32.totalorder %s13, 0
      %p81 = por %p79, %p80
      %p82 = scmp.ne.s32.totalorder %s68, %s69
      %p83 = scmp.eq.s32.totalorder %s14, 1
      %p84 = por %p82, %p83
      %p86 = scmp.ne.s32.totalorder %s69, %s85
      %p87 = scmp.eq.s32.totalorder %s14, 0
      %p88 = por %p86, %p87
      %p89 = scmp.le.s32.totalorder 1, %s8
      %p90 = scmp.lt.s32.totalorder %s8, 3
      %p91 = pnand %p89, %p90
      %p92 = pneg %p91
      // Predicated region
      $region9: #{dspharm_forward.4} parent=5 // pred_check
        _
      $region10: #{dspharm_forward.4} parent=5 // pred_check_branch
        %94 = sbr.rel (%p91) target = $region12
      $region11: #{dspharm_forward.4} parent=5 // pred_region
        %s95 = ssub.s32 %s8, 1
        // Predicated region
        $region13: #{dspharm_forward.4} parent=11 // pred_check
          %p96 = pneg %p29
        $region14: #{dspharm_forward.4} parent=11 // pred_check_branch
          %98 = sbr.rel (%p96) target = $region16
        $region15: #{dspharm_forward.4} parent=11 // pred_region
          _
        $region16: #{dspharm_forward.4} parent=11 // pred_fallthru
          _
      $region12: #{dspharm_forward.4} parent=5 // pred_fallthru
        _
      %p99 = scmp.lt.s32.totalorder %s8, 2
      // Predicated region
      $region17: #{dspharm_forward.4} parent=5 // pred_check
        %p100 = pneg %p99
      $region18: #{dspharm_forward.4} parent=5 // pred_check_branch
        %102 = sbr.rel (%p100) target = $region20
      $region19: #{dspharm_forward.4} parent=5 // pred_region
        // Predicated region
        $region21: #{dspharm_forward.4} parent=19 // pred_check
          %p103 = pneg %p49
        $region22: #{dspharm_forward.4} parent=19 // pred_check_branch
          %105 = sbr.rel (%p103) target = $region24
        $region23: #{dspharm_forward.4} parent=19 // pred_region
          %s106 = sand.u32 %s39, 1
          %s107 = sand.u32 %s39, 1
          %s108 = smul.addr %s107, 128
          %s109 = scalar_lea.vmem [#allocation2], %s108
          %s110 = smul.u32 4, %s8
          %s111 = smul.addr %s110, 8
          %s112 = scalar_lea.vmem %s1, %s111
          // Predicated region
          $region25: #{dspharm_forward.4} parent=23 // pred_check
            _
          $region26: #{dspharm_forward.4} parent=23 // pred_check_branch
            %114 = sbr.rel (0) target = $region28
          $region27: #{dspharm_forward.4} parent=23 // pred_region
            // Predicated region
            $region29: #{dspharm_forward.4} parent=27 // pred_check
              _
            $region30: #{dspharm_forward.4} parent=27 // pred_check_branch
              %116 = sbr.rel (0) target = $region32
            $region31: #{dspharm_forward.4} parent=27 // pred_region
              loop: start=0, step=1, limit=1
              $region33: #{dspharm_forward.4} parent=31 // loop_pre_header
                _
              $region34: #{dspharm_forward.4} parent=31 // loop_header
                %s118 = sphi 0, %s122
                %p119 = scmp.ge.s32.totalorder %s118, 1
                %s123 = sphi %s112, %s112
                %s124 = sphi %s109, %s109
              $region35: #{dspharm_forward.4} parent=31 // loop_header_branch
                %121 = sbr.rel (%p119) target = $region39
              $region36: #{dspharm_forward.4} parent=31 // loop_body
                %v125 = vld [vmem:[%s123] sm:$0xff]
                %126 = vst [vmem:[%s124] sm:$0xff] %v125
                %v127 = vld [vmem:[%s123 + $0x8] sm:$0xff]
                %128 = vst [vmem:[%s124 + $0x8] sm:$0xff] %v127
                %v129 = vld [vmem:[%s123 + $0x10] sm:$0xff]
                %130 = vst [vmem:[%s124 + $0x10] sm:$0xff] %v129
                %v131 = vld [vmem:[%s123 + $0x18] sm:$0xff]
                %132 = vst [vmem:[%s124 + $0x18] sm:$0xff] %v131
                %v133 = vld [vmem:[%s123 + $0x40] sm:$0xff]
                %134 = vst [vmem:[%s124 + $0x20] sm:$0xff] %v133
                %v135 = vld [vmem:[%s123 + $0x48] sm:$0xff]
                %136 = vst [vmem:[%s124 + $0x28] sm:$0xff] %v135
                %v137 = vld [vmem:[%s123 + $0x50] sm:$0xff]
                %138 = vst [vmem:[%s124 + $0x30] sm:$0xff] %v137
                %v139 = vld [vmem:[%s123 + $0x58] sm:$0xff]
                %140 = vst [vmem:[%s124 + $0x38] sm:$0xff] %v139
                %v141 = vld [vmem:[%s123 + $0x80] sm:$0xff]
                %142 = vst [vmem:[%s124 + $0x40] sm:$0xff] %v141
                %v143 = vld [vmem:[%s123 + $0x88] sm:$0xff]
                %144 = vst [vmem:[%s124 + $0x48] sm:$0xff] %v143
                %v145 = vld [vmem:[%s123 + $0x90] sm:$0xff]
                %146 = vst [vmem:[%s124 + $0x50] sm:$0xff] %v145
                %v147 = vld [vmem:[%s123 + $0x98] sm:$0xff]
                %148 = vst [vmem:[%s124 + $0x58] sm:$0xff] %v147
                %v149 = vld [vmem:[%s123 + $0xc0] sm:$0xff]
                %150 = vst [vmem:[%s124 + $0x60] sm:$0xff] %v149
                %v151 = vld [vmem:[%s123 + $0xc8] sm:$0xff]
                %152 = vst [vmem:[%s124 + $0x68] sm:$0xff] %v151
                %v153 = vld [vmem:[%s123 + $0xd0] sm:$0xff]
                %154 = vst [vmem:[%s124 + $0x70] sm:$0xff] %v153
                %v155 = vld [vmem:[%s123 + $0xd8] sm:$0xff]
                %156 = vst [vmem:[%s124 + $0x78] sm:$0xff] %v155
              $region37: #{dspharm_forward.4} parent=31 // loop_footer
                %s122 = sadd.s32 1, %s118
              $region38: #{dspharm_forward.4} parent=31 // loop_footer_branch
                %117 = sbr.rel target = $region34
              $region39: #{dspharm_forward.4} parent=31 // loop_exit
                _
            $region32: #{dspharm_forward.4} parent=27 // pred_fallthru
              _
            // Predicated region
            $region40: #{dspharm_forward.4} parent=27 // pred_check
              _
            $region41: #{dspharm_forward.4} parent=27 // pred_check_branch
              %158 = sbr.rel target = $region43
            $region42: #{dspharm_forward.4} parent=27 // pred_region
              _
            $region43: #{dspharm_forward.4} parent=27 // pred_fallthru
              _
          $region28: #{dspharm_forward.4} parent=23 // pred_fallthru
            _
          %159 = vnop
        $region24: #{dspharm_forward.4} parent=19 // pred_fallthru
          _
      $region20: #{dspharm_forward.4} parent=5 // pred_fallthru
        _
      %p160 = scmp.le.s32.totalorder 1, %s8
      %p161 = scmp.lt.s32.totalorder %s8, 3
      %p162 = pnand %p160, %p161
      %p163 = pneg %p162
      // Predicated region
      $region44: #{dspharm_forward.4} parent=5 // pred_check
        _
      $region45: #{dspharm_forward.4} parent=5 // pred_check_branch
        %165 = sbr.rel (%p162) target = $region47
      $region46: #{dspharm_forward.4} parent=5 // pred_region
        %s166 = ssub.s32 %s8, 1
        %s167 = sand.u32 %s42, 1
        %s168 = sand.u32 %s42, 1
        %s169 = smul.addr %s168, 128
        %s170 = scalar_lea.vmem [#allocation2], %s169
        // Predicated region
        $region48: #{dspharm_forward.4} parent=46 // pred_check
          %p171 = pneg %p55
        $region49: #{dspharm_forward.4} parent=46 // pred_check_branch
          %173 = sbr.rel (%p171) target = $region51
        $region50: #{dspharm_forward.4} parent=46 // pred_region
          _
        $region51: #{dspharm_forward.4} parent=46 // pred_fallthru
          _
        %p174 = pneg %p29
        %p175 = pneg %p26
        %s176 = sand.u32 %s42, 1
        %s177 = sand.u32 %s42, 1
        %s178 = smul.addr %s177, 128
        %s179 = scalar_lea.vmem [#allocation2], %s178
        %p180 = pneg %p55
        %p181 = pneg %p52
        %p182 = pneg %p81
        %p183 = pneg %p78
        %s184 = smul.u32 4, %s13
        %p185 = scmp.lt.s32.totalorder %s184, 7
        %s186 = scalar_select %p185, %s184, 7
        %s187 = smul.addr %s186, 8
        %s188 = scalar_lea.vmem %s2, %s187
        %s189 = smul.u32 4, %s13
        %s190 = smul.u32 4, %s13
        %p191 = scmp.lt.s32.totalorder %s190, 7
        %s192 = scalar_select %p191, %s190, 7
        %s193 = smul.addr %s192, 8
        %s194 = scalar_lea.vmem %s2, %s193
        %s195 = smul.u32 4, %s13
        %v196 = vld [vmem:[%s0] sm:$0x3f]
        %v197 = vld [vmem:[%s170] sm:$0xff]
        %v198 = vld [vmem:[%s170 + $0x8] sm:$0xff]
        %v199 = vld [vmem:[%s170 + $0x10] sm:$0xff]
        %v200 = vld [vmem:[%s170 + $0x18] sm:$0xff]
        %v201 = vld [vmem:[%s170 + $0x20] sm:$0xff]
        %v202 = vld [vmem:[%s170 + $0x28] sm:$0xff]
        %v203 = vld [vmem:[%s170 + $0x30] sm:$0xff]
        %v204 = vld [vmem:[%s170 + $0x38] sm:$0xff]
        %v205 = vld [vmem:[%s170 + $0x40] sm:$0xff]
        %v206 = vld [vmem:[%s170 + $0x48] sm:$0xff]
        %v207 = vld [vmem:[%s170 + $0x50] sm:$0xff]
        %v208 = vld [vmem:[%s170 + $0x58] sm:$0xff]
        %v209 = vld [vmem:[%s170 + $0x60] sm:$0x1]
        %v210 = vld [vmem:[%s170 + $0x68] sm:$0x1]
        %v211 = vld [vmem:[%s170 + $0x70] sm:$0x1]
        %v212 = vld [vmem:[%s170 + $0x78] sm:$0x1]
        %vm213 = vcmask 203776
        %v215 = vsel %vm213, %v196, 0
        %vm217 = vcmask 1040384
        %v219 = vsel %vm217, %v209, 0
        %v222 = vsel %vm217, %v210, 0
        %v225 = vsel %vm217, %v211, 0
        %v228 = vsel %vm217, %v212, 0
        %230 = vmatprep.subr.mxu0 0.0
        %231 = vmatpush1.msra.mxu0 0.0
        %232 = vmatprep.subr.mxu0 0.0
        %233 = vmatpush1.msra.mxu0 0.0
        %234 = vmatprep.subr.mxu0 0.0
        %235 = vmatpush1.msra.mxu0 0.0
        %236 = vmatprep.subr.mxu0 0.0
        %237 = vmatpush1.msra.mxu0 0.0
        %238 = vmatprep.subr.mxu0 0.0
        %239 = vmatpush1.msra.mxu0 0.0
        %240 = vmatprep.subr.mxu0 0.0
        %241 = vmatpush1.msra.mxu0 0.0
        %242 = vmatprep.subr.mxu0 0.0
        %243 = vmatpush1.msra.mxu0 0.0
        %244 = vmatprep.subr.mxu0 0.0
        %245 = vmatpush1.msra.mxu0 0.0
        %246 = vmatprep.subr.mxu0 0.0
        %247 = vmatpush1.msra.mxu0 0.0
        %248 = vmatprep.subr.mxu0 0.0
        %249 = vmatpush1.msra.mxu0 0.0
        %250 = vmatprep.subr.mxu0 0.0
        %251 = vmatpush1.msra.mxu0 0.0
        %252 = vmatprep.subr.mxu0 0.0
        %253 = vmatpush1.msra.mxu0 0.0
        %254 = vmatprep.subr.mxu0 %v222
        %255 = vmatpush1.msra.mxu0 %v219
        %256 = vmatprep.subr.mxu0 %v206
        %257 = vmatpush1.msra.mxu0 %v205
        %258 = vmatprep.subr.mxu0 %v202
        %259 = vmatpush1.msra.mxu0 %v201
        %260 = vmatprep.subr.mxu0 %v198
        %261 = vmatpush1.msra.mxu0 %v197
        %262 = vmatprep.subr.mxu0 0.0
        %263 = vmatpush2.msra.mxu0 0.0
        %264 = vmatprep.subr.mxu0 0.0
        %265 = vmatpush2.msra.mxu0 0.0
        %266 = vmatprep.subr.mxu0 0.0
        %267 = vmatpush2.msra.mxu0 0.0
        %268 = vmatprep.subr.mxu0 0.0
        %269 = vmatpush2.msra.mxu0 0.0
        %270 = vmatprep.subr.mxu0 0.0
        %271 = vmatpush2.msra.mxu0 0.0
        %272 = vmatprep.subr.mxu0 0.0
        %273 = vmatpush2.msra.mxu0 0.0
        %274 = vmatprep.subr.mxu0 0.0
        %275 = vmatpush2.msra.mxu0 0.0
        %276 = vmatprep.subr.mxu0 0.0
        %277 = vmatpush2.msra.mxu0 0.0
        %278 = vmatprep.subr.mxu0 0.0
        %279 = vmatpush2.msra.mxu0 0.0
        %280 = vmatprep.subr.mxu0 0.0
        %281 = vmatpush2.msra.mxu0 0.0
        %282 = vmatprep.subr.mxu0 0.0
        %283 = vmatpush2.msra.mxu0 0.0
        %284 = vmatprep.subr.mxu0 0.0
        %285 = vmatpush2.msra.mxu0 0.0
        %286 = vmatprep.subr.mxu0 0.0
        %287 = vmatpush2.msra.mxu0 0.0
        %288 = vmatprep.subr.mxu0 0.0
        %289 = vmatpush2.msra.mxu0 0.0
        %290 = vmatprep.subr.mxu0 0.0
        %291 = vmatpush2.msra.mxu0 0.0
        %292 = vmatprep.subr.mxu0 0.0
        %293 = vmatpush2.msra.mxu0 0.0
        %294 = vmatprep.mubr.f32.mxu0 0.0
        %295 = vmatmul.mubr.f32.gmra.mxu0 %v215
        %v296 = vpop.f32.mrf.mxu0
        %v297 = vadd.f32 0.0, %v296
        %v298 = vpop.f32.mrf.mxu0
        %v299 = vadd.f32 0.0, %v298
        %300 = vdwg.mxu0
        %301 = vmatprep.subr.mxu0 0.0
        %302 = vmatpush1.msra.mxu0 0.0
        %303 = vmatprep.subr.mxu0 0.0
        %304 = vmatpush1.msra.mxu0 0.0
        %305 = vmatprep.subr.mxu0 0.0
        %306 = vmatpush1.msra.mxu0 0.0
        %307 = vmatprep.subr.mxu0 0.0
        %308 = vmatpush1.msra.mxu0 0.0
        %309 = vmatprep.subr.mxu0 0.0
        %310 = vmatpush1.msra.mxu0 0.0
        %311 = vmatprep.subr.mxu0 0.0
        %312 = vmatpush1.msra.mxu0 0.0
        %313 = vmatprep.subr.mxu0 0.0
        %314 = vmatpush1.msra.mxu0 0.0
        %315 = vmatprep.subr.mxu0 0.0
        %316 = vmatpush1.msra.mxu0 0.0
        %317 = vmatprep.subr.mxu0 0.0
        %318 = vmatpush1.msra.mxu0 0.0
        %319 = vmatprep.subr.mxu0 0.0
        %320 = vmatpush1.msra.mxu0 0.0
        %321 = vmatprep.subr.mxu0 0.0
        %322 = vmatpush1.msra.mxu0 0.0
        %323 = vmatprep.subr.mxu0 0.0
        %324 = vmatpush1.msra.mxu0 0.0
        %325 = vmatprep.subr.mxu0 %v228
        %326 = vmatpush1.msra.mxu0 %v225
        %327 = vmatprep.subr.mxu0 %v208
        %328 = vmatpush1.msra.mxu0 %v207
        %329 = vmatprep.subr.mxu0 %v204
        %330 = vmatpush1.msra.mxu0 %v203
        %331 = vmatprep.subr.mxu0 %v200
        %332 = vmatpush1.msra.mxu0 %v199
        %333 = vmatprep.subr.mxu0 0.0
        %334 = vmatpush2.msra.mxu0 0.0
        %335 = vmatprep.subr.mxu0 0.0
        %336 = vmatpush2.msra.mxu0 0.0
        %337 = vmatprep.subr.mxu0 0.0
        %338 = vmatpush2.msra.mxu0 0.0
        %339 = vmatprep.subr.mxu0 0.0
        %340 = vmatpush2.msra.mxu0 0.0
        %341 = vmatprep.subr.mxu0 0.0
        %342 = vmatpush2.msra.mxu0 0.0
        %343 = vmatprep.subr.mxu0 0.0
        %344 = vmatpush2.msra.mxu0 0.0
        %345 = vmatprep.subr.mxu0 0.0
        %346 = vmatpush2.msra.mxu0 0.0
        %347 = vmatprep.subr.mxu0 0.0
        %348 = vmatpush2.msra.mxu0 0.0
        %349 = vmatprep.subr.mxu0 0.0
        %350 = vmatpush2.msra.mxu0 0.0
        %351 = vmatprep.subr.mxu0 0.0
        %352 = vmatpush2.msra.mxu0 0.0
        %353 = vmatprep.subr.mxu0 0.0
        %354 = vmatpush2.msra.mxu0 0.0
        %355 = vmatprep.subr.mxu0 0.0
        %356 = vmatpush2.msra.mxu0 0.0
        %357 = vmatprep.subr.mxu0 0.0
        %358 = vmatpush2.msra.mxu0 0.0
        %359 = vmatprep.subr.mxu0 0.0
        %360 = vmatpush2.msra.mxu0 0.0
        %361 = vmatprep.subr.mxu0 0.0
        %362 = vmatpush2.msra.mxu0 0.0
        %363 = vmatprep.subr.mxu0 0.0
        %364 = vmatpush2.msra.mxu0 0.0
        %365 = vmatprep.mubr.f32.mxu0 0.0
        %366 = vmatmul.mubr.f32.gmra.mxu0 %v215
        %v367 = vpop.f32.mrf.mxu0
        %v368 = vadd.f32 0.0, %v367
        %v369 = vpop.f32.mrf.mxu0
        %v370 = vadd.f32 0.0, %v369
        %371 = vdwg.mxu0
        %372 = vst [vmem:[%s194] sm:$0x3f] %v297
        %373 = vst [vmem:[%s194 + $0x8] sm:$0x3f] %v299
        %374 = vst [vmem:[%s194 + $0x10] sm:$0x3f] %v368
        %375 = vst [vmem:[%s194 + $0x18] sm:$0x3f] %v370
        %s376 = smul.u32 4, %s13
        %p377 = scmp.lt.s32.totalorder %s376, 7
        %s378 = scalar_select %p377, %s376, 7
        %s379 = smul.addr %s378, 8
        %s380 = scalar_lea.vmem %s2, %s379
        // Predicated region
        $region52: #{dspharm_forward.4} parent=46 // pred_check
          %p381 = pneg %p78
        $region53: #{dspharm_forward.4} parent=46 // pred_check_branch
          %383 = sbr.rel (%p381) target = $region55
        $region54: #{dspharm_forward.4} parent=46 // pred_region
          %s384 = smul.u32 4, %s13
        $region55: #{dspharm_forward.4} parent=46 // pred_fallthru
          _
      $region47: #{dspharm_forward.4} parent=5 // pred_fallthru
        _
      %p385 = scmp.le.s32.totalorder 2, %s8
      // Predicated region
      $region56: #{dspharm_forward.4} parent=5 // pred_check
        %p386 = pneg %p385
      $region57: #{dspharm_forward.4} parent=5 // pred_check_branch
        %388 = sbr.rel (%p386) target = $region59
      $region58: #{dspharm_forward.4} parent=5 // pred_region
        %s389 = ssub.s32 %s8, 2
        // Predicated region
        $region60: #{dspharm_forward.4} parent=58 // pred_check
          %p390 = pneg %p84
        $region61: #{dspharm_forward.4} parent=58 // pred_check_branch
          %392 = sbr.rel (%p390) target = $region63
        $region62: #{dspharm_forward.4} parent=58 // pred_region
          %s393 = smul.u32 4, %s14
          %p394 = scmp.lt.s32.totalorder %s393, 7
          %s395 = scalar_select %p394, %s393, 7
          %s396 = smul.addr %s395, 8
          %s397 = scalar_lea.vmem %s2, %s396
        $region63: #{dspharm_forward.4} parent=58 // pred_fallthru
          _
      $region59: #{dspharm_forward.4} parent=5 // pred_fallthru
        _
    $region6: #{dspharm_forward.4} parent=1 // loop_footer
      %s12 = sadd.s32 1, %s8
    $region7: #{dspharm_forward.4} parent=1 // loop_footer_branch
      %7 = sbr.rel target = $region3
    $region8: #{dspharm_forward.4} parent=1 // loop_exit
      _

// kernel: dspharm_forward.5
$region0: #{dspharm_forward.5}
  #allocation0 [shape = 'u32[]', space=smem, size = 0x4, offset = 0x4, fixed_abs, tag = 'smem constant byte address 0x4 - core index']
  #allocation1 [shape = 'u32[144,128]{1,0:T(1,128)}', space=vmem, size = 0x12000, scoped, tag = 'internal scratch']
  #allocation2 [shape = 'f32[1,1]{1,0:T(1,128)S(1)}', space=vmem, size = 0x200, scoped, tag = 'scoped memory for dspharm_forward.5']
  %s0 = inlined_call_operand.vmem [shape: f32[3,1024], index: 0, kind: input, shape index: {}]
  %s1 = inlined_call_operand.vmem [shape: f32[1,1024], index: 1, kind: input, shape index: {}]
  %s2 = inlined_call_operand.vmem [shape: bf16[128,3], index: 2, kind: input, shape index: {}]
  %s3 = inlined_call_operand.vmem [shape: bf16[1,64], index: 3, kind: input, shape index: {}]
  %s4 = inlined_call_operand.vmem [shape: f32[192,1], index: 4, kind: input, shape index: {}]
  %s5 = inlined_call_operand.<no memory space> [shape: f32[1,1], index: 5, kind: input, shape index: {}]
  %s6 = inlined_call_operand.vmem [shape: bf16[16,64], index: 6, kind: input, shape index: {}]
  %s7 = inlined_call_operand.vmem [shape: f32[16,1], index: 7, kind: input, shape index: {}]
  %s8 = inlined_call_operand.vmem [shape: bf16[4,16], index: 8, kind: input, shape index: {}]
  %s9 = inlined_call_operand.vmem [shape: f32[4,1], index: 9, kind: input, shape index: {}]
  %s10 = inlined_call_operand.hbm [shape: bf16[64,1024], index: 10, kind: output, shape index: {0}]
  %s11 = inlined_call_operand.vmem [shape: f32[4,1024], index: 11, kind: output, shape index: {1}]
  %12 = xla_tuple %s10, %s11
  %s13 = sld [smem:[#allocation0]]
  $region81: #{dspharm_forward.5} parent=0
    _
  %s15 = ssub.s32 1, %s13
  %s16 = scalar_select 0, %s15, %s13
  %v17 = vstv %s5
  %18 = vst [vmem:[#allocation2] sm:$0x1] %v17
  $region1: #{dspharm_forward.5} parent=0
    #allocation3 [shape = 'u8[131072]{0}', space=vmem, size = 0x20000, scoped, tag = 'output window, operand 0']
    #allocation4 [shape = 's32[2]{0}', space=sflag, size = 0x8, scoped, tag = 'scoped memory for dspharm_forward.5']
    %19 = vsyncpa [#allocation4], 0
    %s20 = scalar_lea.sflag [#allocation4], 1
    %21 = vsyncpa %s20, 0
    loop: start=0, step=1, limit=4
    $region2: #{dspharm_forward.5} parent=1 // loop_pre_header
      _
    $region3: #{dspharm_forward.5} parent=1 // loop_header
      %s23 = sphi 0, %s27
      %p24 = scmp.ge.s32.totalorder %s23, 4
      %s33 = sphi 0, %s35
      %s36 = sphi 0, %s33
      %s37 = sphi 0, %s36
      %s53 = sphi 0, %s37
      %s59 = sphi 0, %s61
      %s62 = sphi 0, %s59
      %s63 = sphi 0, %s62
      %s79 = sphi 0, %s63
      %s83 = sphi 0, %s83
      %s85 = sphi 0, %s83
      %s86 = sphi 0, %s85
      %s100 = sphi 0, %s86
      %s104 = sphi 0, %s104
      %s106 = sphi 0, %s104
      %s107 = sphi 0, %s106
      %s121 = sphi 0, %s107
      %s125 = sphi 0, %s125
      %s127 = sphi 0, %s125
      %s128 = sphi 0, %s127
      %s142 = sphi 0, %s128
      %s146 = sphi 0, %s146
      %s148 = sphi 0, %s146
      %s149 = sphi 0, %s148
      %s163 = sphi 0, %s149
      %s167 = sphi 0, %s167
      %s169 = sphi 0, %s167
      %s170 = sphi 0, %s169
      %s184 = sphi 0, %s170
      %s188 = sphi 0, %s188
      %s190 = sphi 0, %s188
      %s191 = sphi 0, %s190
      %s205 = sphi 0, %s191
      %s209 = sphi 0, %s209
      %s211 = sphi 0, %s209
      %s212 = sphi 0, %s211
      %s226 = sphi 0, %s212
      %s230 = sphi 0, %s230
      %s232 = sphi 0, %s230
      %s233 = sphi 0, %s232
      %s247 = sphi 0, %s233
      %s253 = sphi 0, %s255
      %s256 = sphi 0, %s253
      %s257 = sphi 0, %s256
      %s273 = sphi 0, %s257
      %s279 = sphi 0, %s281
      %s282 = sphi 0, %s279
      %s283 = sphi 0, %s282
      %s299 = sphi 0, %s283
    $region4: #{dspharm_forward.5} parent=1 // loop_header_branch
      %26 = sbr.rel (%p24) target = $region8
    $region5: #{dspharm_forward.5} parent=1 // loop_body
      %s28 = ssub.s32 %s23, 1
      %s29 = ssub.s32 %s23, 2
      %s30 = sadd.s32 %s23, 1
      %s31 = ssub.s32 %s23, %s30
      %p32 = scmp.eq.s32.totalorder %s31, 0
      %s34 = sadd.s32 %s33, 1
      %s35 = scalar_select %p32, %s33, %s34
      %p38 = pneg %p32
      %p39 = scmp.eq.s32.totalorder %s23, 1
      %p40 = por %p38, %p39
      %p41 = scmp.ne.s32.totalorder %s33, %s36
      %p42 = scmp.eq.s32.totalorder %s23, 0
      %p43 = por %p41, %p42
      %p44 = scmp.ne.s32.totalorder %s33, %s36
      %p45 = scmp.eq.s32.totalorder %s28, 1
      %p46 = por %p44, %p45
      %p47 = scmp.ne.s32.totalorder %s36, %s37
      %p48 = scmp.eq.s32.totalorder %s28, 0
      %p49 = por %p47, %p48
      %p50 = scmp.ne.s32.totalorder %s36, %s37
      %p51 = scmp.eq.s32.totalorder %s29, 1
      %p52 = por %p50, %p51
      %p54 = scmp.ne.s32.totalorder %s37, %s53
      %p55 = scmp.eq.s32.totalorder %s29, 0
      %p56 = por %p54, %p55
      %s57 = ssub.s32 %s23, %s30
      %p58 = scmp.eq.s32.totalorder %s57, 0
      %s60 = sadd.s32 %s59, 1
      %s61 = scalar_select %p58, %s59, %s60
      %p64 = pneg %p58
      %p65 = scmp.eq.s32.totalorder %s23, 1
      %p66 = por %p64, %p65
      %p67 = scmp.ne.s32.totalorder %s59, %s62
      %p68 = scmp.eq.s32.totalorder %s23, 0
      %p69 = por %p67, %p68
      %p70 = scmp.ne.s32.totalorder %s59, %s62
      %p71 = scmp.eq.s32.totalorder %s28, 1
      %p72 = por %p70, %p71
      %p73 = scmp.ne.s32.totalorder %s62, %s63
      %p74 = scmp.eq.s32.totalorder %s28, 0
      %p75 = por %p73, %p74
      %p76 = scmp.ne.s32.totalorder %s62, %s63
      %p77 = scmp.eq.s32.totalorder %s29, 1
      %p78 = por %p76, %p77
      %p80 = scmp.ne.s32.totalorder %s63, %s79
      %p81 = scmp.eq.s32.totalorder %s29, 0
      %p82 = por %p80, %p81
      %s84 = sadd.s32 %s83, 1
      %p87 = scmp.eq.s32.totalorder %s23, 1
      %p88 = scmp.ne.s32.totalorder %s83, %s85
      %p89 = scmp.eq.s32.totalorder %s23, 0
      %p90 = por %p88, %p89
      %p91 = scmp.ne.s32.totalorder %s83, %s85
      %p92 = scmp.eq.s32.totalorder %s28, 1
      %p93 = por %p91, %p92
      %p94 = scmp.ne.s32.totalorder %s85, %s86
      %p95 = scmp.eq.s32.totalorder %s28, 0
      %p96 = por %p94, %p95
      %p97 = scmp.ne.s32.totalorder %s85, %s86
      %p98 = scmp.eq.s32.totalorder %s29, 1
      %p99 = por %p97, %p98
      %p101 = scmp.ne.s32.totalorder %s86, %s100
      %p102 = scmp.eq.s32.totalorder %s29, 0
      %p103 = por %p101, %p102
      %s105 = sadd.s32 %s104, 1
      %p108 = scmp.eq.s32.totalorder %s23, 1
      %p109 = scmp.ne.s32.totalorder %s104, %s106
      %p110 = scmp.eq.s32.totalorder %s23, 0
      %p111 = por %p109, %p110
      %p112 = scmp.ne.s32.totalorder %s104, %s106
      %p113 = scmp.eq.s32.totalorder %s28, 1
      %p114 = por %p112, %p113
      %p115 = scmp.ne.s32.totalorder %s106, %s107
      %p116 = scmp.eq.s32.totalorder %s28, 0
      %p117 = por %p115, %p116
      %p118 = scmp.ne.s32.totalorder %s106, %s107
      %p119 = scmp.eq.s32.totalorder %s29, 1
      %p120 = por %p118, %p119
      %p122 = scmp.ne.s32.totalorder %s107, %s121
      %p123 = scmp.eq.s32.totalorder %s29, 0
      %p124 = por %p122, %p123
      %s126 = sadd.s32 %s125, 1
      %p129 = scmp.eq.s32.totalorder %s23, 1
      %p130 = scmp.ne.s32.totalorder %s125, %s127
      %p131 = scmp.eq.s32.totalorder %s23, 0
      %p132 = por %p130, %p131
      %p133 = scmp.ne.s32.totalorder %s125, %s127
      %p134 = scmp.eq.s32.totalorder %s28, 1
      %p135 = por %p133, %p134
      %p136 = scmp.ne.s32.totalorder %s127, %s128
      %p137 = scmp.eq.s32.totalorder %s28, 0
      %p138 = por %p136, %p137
      %p139 = scmp.ne.s32.totalorder %s127, %s128
      %p140 = scmp.eq.s32.totalorder %s29, 1
      %p141 = por %p139, %p140
      %p143 = scmp.ne.s32.totalorder %s128, %s142
      %p144 = scmp.eq.s32.totalorder %s29, 0
      %p145 = por %p143, %p144
      %s147 = sadd.s32 %s146, 1
      %p150 = scmp.eq.s32.totalorder %s23, 1
      %p151 = scmp.ne.s32.totalorder %s146, %s148
      %p152 = scmp.eq.s32.totalorder %s23, 0
      %p153 = por %p151, %p152
      %p154 = scmp.ne.s32.totalorder %s146, %s148
      %p155 = scmp.eq.s32.totalorder %s28, 1
      %p156 = por %p154, %p155
      %p157 = scmp.ne.s32.totalorder %s148, %s149
      %p158 = scmp.eq.s32.totalorder %s28, 0
      %p159 = por %p157, %p158
      %p160 = scmp.ne.s32.totalorder %s148, %s149
      %p161 = scmp.eq.s32.totalorder %s29, 1
      %p162 = por %p160, %p161
      %p164 = scmp.ne.s32.totalorder %s149, %s163
      %p165 = scmp.eq.s32.totalorder %s29, 0
      %p166 = por %p164, %p165
      %s168 = sadd.s32 %s167, 1
      %p171 = scmp.eq.s32.totalorder %s23, 1
      %p172 = scmp.ne.s32.totalorder %s167, %s169
      %p173 = scmp.eq.s32.totalorder %s23, 0
      %p174 = por %p172, %p173
      %p175 = scmp.ne.s32.totalorder %s167, %s169
      %p176 = scmp.eq.s32.totalorder %s28, 1
      %p177 = por %p175, %p176
      %p178 = scmp.ne.s32.totalorder %s169, %s170
      %p179 = scmp.eq.s32.totalorder %s28, 0
      %p180 = por %p178, %p179
      %p181 = scmp.ne.s32.totalorder %s169, %s170
      %p182 = scmp.eq.s32.totalorder %s29, 1
      %p183 = por %p181, %p182
      %p185 = scmp.ne.s32.totalorder %s170, %s184
      %p186 = scmp.eq.s32.totalorder %s29, 0
      %p187 = por %p185, %p186
      %s189 = sadd.s32 %s188, 1
      %p192 = scmp.eq.s32.totalorder %s23, 1
      %p193 = scmp.ne.s32.totalorder %s188, %s190
      %p194 = scmp.eq.s32.totalorder %s23, 0
      %p195 = por %p193, %p194
      %p196 = scmp.ne.s32.totalorder %s188, %s190
      %p197 = scmp.eq.s32.totalorder %s28, 1
      %p198 = por %p196, %p197
      %p199 = scmp.ne.s32.totalorder %s190, %s191
      %p200 = scmp.eq.s32.totalorder %s28, 0
      %p201 = por %p199, %p200
      %p202 = scmp.ne.s32.totalorder %s190, %s191
      %p203 = scmp.eq.s32.totalorder %s29, 1
      %p204 = por %p202, %p203
      %p206 = scmp.ne.s32.totalorder %s191, %s205
      %p207 = scmp.eq.s32.totalorder %s29, 0
      %p208 = por %p206, %p207
      %s210 = sadd.s32 %s209, 1
      %p213 = scmp.eq.s32.totalorder %s23, 1
      %p214 = scmp.ne.s32.totalorder %s209, %s211
      %p215 = scmp.eq.s32.totalorder %s23, 0
      %p216 = por %p214, %p215
      %p217 = scmp.ne.s32.totalorder %s209, %s211
      %p218 = scmp.eq.s32.totalorder %s28, 1
      %p219 = por %p217, %p218
      %p220 = scmp.ne.s32.totalorder %s211, %s212
      %p221 = scmp.eq.s32.totalorder %s28, 0
      %p222 = por %p220, %p221
      %p223 = scmp.ne.s32.totalorder %s211, %s212
      %p224 = scmp.eq.s32.totalorder %s29, 1
      %p225 = por %p223, %p224
      %p227 = scmp.ne.s32.totalorder %s212, %s226
      %p228 = scmp.eq.s32.totalorder %s29, 0
      %p229 = por %p227, %p228
      %s231 = sadd.s32 %s230, 1
      %p234 = scmp.eq.s32.totalorder %s23, 1
      %p235 = scmp.ne.s32.totalorder %s230, %s232
      %p236 = scmp.eq.s32.totalorder %s23, 0
      %p237 = por %p235, %p236
      %p238 = scmp.ne.s32.totalorder %s230, %s232
      %p239 = scmp.eq.s32.totalorder %s28, 1
      %p240 = por %p238, %p239
      %p241 = scmp.ne.s32.totalorder %s232, %s233
      %p242 = scmp.eq.s32.totalorder %s28, 0
      %p243 = por %p241, %p242
      %p244 = scmp.ne.s32.totalorder %s232, %s233
      %p245 = scmp.eq.s32.totalorder %s29, 1
      %p246 = por %p244, %p245
      %p248 = scmp.ne.s32.totalorder %s233, %s247
      %p249 = scmp.eq.s32.totalorder %s29, 0
      %p250 = por %p248, %p249
      %s251 = ssub.s32 %s23, %s30
      %p252 = scmp.eq.s32.totalorder %s251, 0
      %s254 = sadd.s32 %s253, 1
      %s255 = scalar_select %p252, %s253, %s254
      %p258 = pneg %p252
      %p259 = scmp.eq.s32.totalorder %s23, 1
      %p260 = por %p258, %p259
      %p261 = scmp.ne.s32.totalorder %s253, %s256
      %p262 = scmp.eq.s32.totalorder %s23, 0
      %p263 = por %p261, %p262
      %p264 = scmp.ne.s32.totalorder %s253, %s256
      %p265 = scmp.eq.s32.totalorder %s28, 1
      %p266 = por %p264, %p265
      %p267 = scmp.ne.s32.totalorder %s256, %s257
      %p268 = scmp.eq.s32.totalorder %s28, 0
      %p269 = por %p267, %p268
      %p270 = scmp.ne.s32.totalorder %s256, %s257
      %p271 = scmp.eq.s32.totalorder %s29, 1
      %p272 = por %p270, %p271
      %p274 = scmp.ne.s32.totalorder %s257, %s273
      %p275 = scmp.eq.s32.totalorder %s29, 0
      %p276 = por %p274, %p275
      %s277 = ssub.s32 %s23, %s30
      %p278 = scmp.eq.s32.totalorder %s277, 0
      %s280 = sadd.s32 %s279, 1
      %s281 = scalar_select %p278, %s279, %s280
      %p284 = pneg %p278
      %p285 = scmp.eq.s32.totalorder %s23, 1
      %p286 = por %p284, %p285
      %p287 = scmp.ne.s32.totalorder %s279, %s282
      %p288 = scmp.eq.s32.totalorder %s23, 0
      %p289 = por %p287, %p288
      %p290 = scmp.ne.s32.totalorder %s279, %s282
      %p291 = scmp.eq.s32.totalorder %s28, 1
      %p292 = por %p290, %p291
      %p293 = scmp.ne.s32.totalorder %s282, %s283
      %p294 = scmp.eq.s32.totalorder %s28, 0
      %p295 = por %p293, %p294
      %p296 = scmp.ne.s32.totalorder %s282, %s283
      %p297 = scmp.eq.s32.totalorder %s29, 1
      %p298 = por %p296, %p297
      %p300 = scmp.ne.s32.totalorder %s283, %s299
      %p301 = scmp.eq.s32.totalorder %s29, 0
      %p302 = por %p300, %p301
      %p303 = scmp.le.s32.totalorder 1, %s23
      %p304 = scmp.lt.s32.totalorder %s23, 3
      %p305 = pnand %p303, %p304
      %p306 = pneg %p305
      // Predicated region
      $region9: #{dspharm_forward.5} parent=5 // pred_check
        _
      $region10: #{dspharm_forward.5} parent=5 // pred_check_branch
        %308 = sbr.rel (%p305) target = $region12
      $region11: #{dspharm_forward.5} parent=5 // pred_region
        %s309 = ssub.s32 %s23, 1
        // Predicated region
        $region13: #{dspharm_forward.5} parent=11 // pred_check
          %p310 = pneg %p96
        $region14: #{dspharm_forward.5} parent=11 // pred_check_branch
          %312 = sbr.rel (%p310) target = $region16
        $region15: #{dspharm_forward.5} parent=11 // pred_region
          _
        $region16: #{dspharm_forward.5} parent=11 // pred_fallthru
          _
        // Predicated region
        $region17: #{dspharm_forward.5} parent=11 // pred_check
          %p313 = pneg %p117
        $region18: #{dspharm_forward.5} parent=11 // pred_check_branch
          %315 = sbr.rel (%p313) target = $region20
        $region19: #{dspharm_forward.5} parent=11 // pred_region
          _
        $region20: #{dspharm_forward.5} parent=11 // pred_fallthru
          _
        // Predicated region
        $region21: #{dspharm_forward.5} parent=11 // pred_check
          %p316 = pneg %p138
        $region22: #{dspharm_forward.5} parent=11 // pred_check_branch
          %318 = sbr.rel (%p316) target = $region24
        $region23: #{dspharm_forward.5} parent=11 // pred_region
          _
        $region24: #{dspharm_forward.5} parent=11 // pred_fallthru
          _
        // Predicated region
        $region25: #{dspharm_forward.5} parent=11 // pred_check
          %p319 = pneg %p159
        $region26: #{dspharm_forward.5} parent=11 // pred_check_branch
          %321 = sbr.rel (%p319) target = $region28
        $region27: #{dspharm_forward.5} parent=11 // pred_region
          _
        $region28: #{dspharm_forward.5} parent=11 // pred_fallthru
          _
        // Predicated region
        $region29: #{dspharm_forward.5} parent=11 // pred_check
          %p322 = pneg %p180
        $region30: #{dspharm_forward.5} parent=11 // pred_check_branch
          %324 = sbr.rel (%p322) target = $region32
        $region31: #{dspharm_forward.5} parent=11 // pred_region
          _
        $region32: #{dspharm_forward.5} parent=11 // pred_fallthru
          _
        // Predicated region
        $region33: #{dspharm_forward.5} parent=11 // pred_check
          %p325 = pneg %p201
        $region34: #{dspharm_forward.5} parent=11 // pred_check_branch
          %327 = sbr.rel (%p325) target = $region36
        $region35: #{dspharm_forward.5} parent=11 // pred_region
          _
        $region36: #{dspharm_forward.5} parent=11 // pred_fallthru
          _
        // Predicated region
        $region37: #{dspharm_forward.5} parent=11 // pred_check
          %p328 = pneg %p222
        $region38: #{dspharm_forward.5} parent=11 // pred_check_branch
          %330 = sbr.rel (%p328) target = $region40
        $region39: #{dspharm_forward.5} parent=11 // pred_region
          _
        $region40: #{dspharm_forward.5} parent=11 // pred_fallthru
          _
        // Predicated region
        $region41: #{dspharm_forward.5} parent=11 // pred_check
          %p331 = pneg %p243
        $region42: #{dspharm_forward.5} parent=11 // pred_check_branch
          %333 = sbr.rel (%p331) target = $region44
        $region43: #{dspharm_forward.5} parent=11 // pred_region
          _
        $region44: #{dspharm_forward.5} parent=11 // pred_fallthru
          _
      $region12: #{dspharm_forward.5} parent=5 // pred_fallthru
        _
      %p334 = scmp.lt.s32.totalorder %s23, 2
      // Predicated region
      $region45: #{dspharm_forward.5} parent=5 // pred_check
        %p335 = pneg %p334
      $region46: #{dspharm_forward.5} parent=5 // pred_check_branch
        %337 = sbr.rel (%p335) target = $region48
      $region47: #{dspharm_forward.5} parent=5 // pred_region
        // Predicated region
        $region49: #{dspharm_forward.5} parent=47 // pred_check
          %p338 = pneg %p43
        $region50: #{dspharm_forward.5} parent=47 // pred_check_branch
          %340 = sbr.rel (%p338) target = $region52
        $region51: #{dspharm_forward.5} parent=47 // pred_region
          %s341 = smul.u32 4, %s23
          %p342 = scmp.lt.s32.totalorder %s341, 7
          %s343 = scalar_select %p342, %s341, 7
          %s344 = smul.addr %s343, 4
          %s345 = scalar_lea.vmem %s0, %s344
          %s346 = smul.u32 4, %s23
        $region52: #{dspharm_forward.5} parent=47 // pred_fallthru
          _
        // Predicated region
        $region53: #{dspharm_forward.5} parent=47 // pred_check
          %p347 = pneg %p69
        $region54: #{dspharm_forward.5} parent=47 // pred_check_branch
          %349 = sbr.rel (%p347) target = $region56
        $region55: #{dspharm_forward.5} parent=47 // pred_region
          %s350 = smul.u32 4, %s23
          %p351 = scmp.lt.s32.totalorder %s350, 7
          %s352 = scalar_select %p351, %s350, 7
          %s353 = scalar_lea.vmem %s1, %s352
          %s354 = smul.u32 4, %s23
        $region56: #{dspharm_forward.5} parent=47 // pred_fallthru
          _
      $region48: #{dspharm_forward.5} parent=5 // pred_fallthru
        _
      %p355 = scmp.le.s32.totalorder 1, %s23
      %p356 = scmp.lt.s32.totalorder %s23, 3
      %p357 = pnand %p355, %p356
      %p358 = pneg %p357
      // Predicated region
      $region57: #{dspharm_forward.5} parent=5 // pred_check
        _
      $region58: #{dspharm_forward.5} parent=5 // pred_check_branch
        %360 = sbr.rel (%p357) target = $region60
      $region59: #{dspharm_forward.5} parent=5 // pred_region
        %s361 = ssub.s32 %s23, 1
        %s362 = smul.u32 4, %s28
        %p363 = scmp.lt.s32.totalorder %s362, 7
        %s364 = scalar_select %p363, %s362, 7
        %s365 = smul.addr %s364, 4
        %s366 = scalar_lea.vmem %s0, %s365
        %p367 = pneg %p49
        %p368 = pneg %p46
        %s369 = smul.u32 4, %s28
        %p370 = scmp.lt.s32.totalorder %s369, 7
        %s371 = scalar_select %p370, %s369, 7
        %s372 = scalar_lea.vmem %s1, %s371
        %p373 = pneg %p75
        %p374 = pneg %p72
        %p375 = pneg %p96
        %p376 = pneg %p93
        %p377 = pneg %p117
        %p378 = pneg %p114
        %p379 = pneg %p138
        %p380 = pneg %p135
        %p381 = pneg %p159
        %p382 = pneg %p156
        %p383 = pneg %p180
        %p384 = pneg %p177
        %p385 = pneg %p201
        %p386 = pneg %p198
        %p387 = pneg %p222
        %p388 = pneg %p219
        %p389 = pneg %p243
        %p390 = pneg %p240
        %p391 = pneg %p269
        %p392 = pneg %p266
        %s393 = sand.u32 %s256, 1
        %s394 = scalar_lea.sflag [#allocation4], %s393
        %s395 = sand.u32 %s256, 1
        %s396 = smul.addr %s395, 128
        %s397 = scalar_lea.vmem [#allocation3], %s396
        %p398 = pneg %p295
        %p399 = pneg %p292
        %s400 = smul.u32 4, %s28
        %p401 = scmp.lt.s32.totalorder %s400, 7
        %s402 = scalar_select %p401, %s400, 7
        %s403 = smul.addr %s402, 4
        %s404 = scalar_lea.vmem %s11, %s403
        %s405 = smul.u32 4, %s28
        %p406 = scmp.lt.s32.totalorder %s405, 7
        %s407 = scalar_select %p406, %s405, 7
        %s408 = smul.addr %s407, 4
        %s409 = scalar_lea.vmem %s0, %s408
        %s410 = smul.u32 4, %s28
        %s411 = smul.u32 4, %s28
        %p412 = scmp.lt.s32.totalorder %s411, 7
        %s413 = scalar_select %p412, %s411, 7
        %s414 = scalar_lea.vmem %s1, %s413
        %s415 = smul.u32 4, %s28
        %s416 = smul.u32 4, %s28
        %s417 = smul.u32 4, %s28
        %p418 = scmp.lt.s32.totalorder %s417, 7
        %s419 = scalar_select %p418, %s417, 7
        %s420 = smul.addr %s419, 4
        %s421 = scalar_lea.vmem %s11, %s420
        %s422 = smul.u32 4, %s28
        %v424 = vld [vmem:[%s409] sm:$0x77]
        %v425 = vld [vmem:[%s409 + $0x8] sm:$0x77]
        %v428 = vcombine.high %v424, %v424
        %v429 = vcombine.high %v425, %v425
        %v432 = vpack.c.bf16 %v424, %v424
        %v433 = vpack.c.bf16 %v428, %v428
        %v434 = vpack.c.bf16 %v425, %v425
        %v435 = vpack.c.bf16 %v429, %v429
        %v436 = vld [vmem:[%s2] sm:$0xf]
        %v437 = vld [vmem:[%s2 + $0x4] sm:$0xf]
        %v438 = vld [vmem:[%s2 + $0x8] sm:$0xf]
        %v439 = vld [vmem:[%s2 + $0xc] sm:$0xf]
        %v440 = vld [vmem:[%s2 + $0x10] sm:$0xf]
        %v441 = vld [vmem:[%s2 + $0x14] sm:$0xf]
        %v442 = vld [vmem:[%s2 + $0x18] sm:$0xf]
        %v443 = vld [vmem:[%s2 + $0x1c] sm:$0xf]
        %v444 = vld [vmem:[%s2 + $0x20] sm:$0xf]
        %v445 = vld [vmem:[%s2 + $0x24] sm:$0xf]
        %v446 = vld [vmem:[%s2 + $0x28] sm:$0xf]
        %v447 = vld [vmem:[%s2 + $0x2c] sm:$0xf]
        %v448 = vld [vmem:[%s2 + $0x30] sm:$0xf]
        %v449 = vld [vmem:[%s2 + $0x34] sm:$0xf]
        %v450 = vld [vmem:[%s2 + $0x38] sm:$0xf]
        %v451 = vld [vmem:[%s2 + $0x3c] sm:$0xf]
        %v468 = vunpack.c.l.b16 %v436
        %v469 = vunpack.c.l.b16 %v437
        %v470 = vunpack.c.l.b16 %v438
        %v471 = vunpack.c.l.b16 %v439
        %v472 = vunpack.c.l.b16 %v440
        %v473 = vunpack.c.l.b16 %v441
        %v474 = vunpack.c.l.b16 %v442
        %v475 = vunpack.c.l.b16 %v443
        %v476 = vunpack.c.l.b16 %v444
        %v477 = vunpack.c.l.b16 %v445
        %v478 = vunpack.c.l.b16 %v446
        %v479 = vunpack.c.l.b16 %v447
        %v480 = vunpack.c.l.b16 %v448
        %v481 = vunpack.c.l.b16 %v449
        %v482 = vunpack.c.l.b16 %v450
        %v483 = vunpack.c.l.b16 %v451
        %v484 = vpack.c.b16 %v469, %v468
        %v485 = vpack.c.b16 %v471, %v470
        %v486 = vpack.c.b16 %v473, %v472
        %v487 = vpack.c.b16 %v475, %v474
        %v488 = vpack.c.b16 %v477, %v476
        %v489 = vpack.c.b16 %v479, %v478
        %v490 = vpack.c.b16 %v481, %v480
        %v491 = vpack.c.b16 %v483, %v482
        %vm492 = vcmask 23552
        %v494 = vsel %vm492, %v484, 0
        %v497 = vsel %vm492, %v485, 0
        %v500 = vsel %vm492, %v486, 0
        %v503 = vsel %vm492, %v487, 0
        %v506 = vsel %vm492, %v488, 0
        %v509 = vsel %vm492, %v489, 0
        %v512 = vsel %vm492, %v490, 0
        %v515 = vsel %vm492, %v491, 0
        %vm517 = vcmask 1040384
        %vm518 = vcmask 1041408
        %v519 = vsel %vm517, 4294967295, 65535
        %v520 = vsel %vm518, %v519, 0
        %v522 = vand.u32 %v432, %v520
        %v525 = vand.u32 %v433, %v520
        %v528 = vand.u32 %v434, %v520
        %v531 = vand.u32 %v435, %v520
        %533 = vmatprep.subr.bf16.mxu0 0
        %534 = vmatpush1.bf16.msra.mxu0 0
        %535 = vmatprep.subr.bf16.mxu0 0
        %536 = vmatpush1.bf16.msra.mxu0 0
        %537 = vmatprep.subr.bf16.mxu0 0
        %538 = vmatpush1.bf16.msra.mxu0 0
        %539 = vmatprep.subr.bf16.mxu0 0
        %540 = vmatpush1.bf16.msra.mxu0 0
        %541 = vmatprep.subr.bf16.mxu0 0
        %542 = vmatpush1.bf16.msra.mxu0 0
        %543 = vmatprep.subr.bf16.mxu0 0
        %544 = vmatpush1.bf16.msra.mxu0 0
        %545 = vmatprep.subr.bf16.mxu0 0
        %546 = vmatpush1.bf16.msra.mxu0 0
        %547 = vmatprep.subr.bf16.mxu0 %v525
        %548 = vmatpush1.bf16.msra.mxu0 %v522
        %549 = vmatprep.subr.bf16.mxu0 0
        %550 = vmatpush2.bf16.msra.mxu0 0
        %551 = vmatprep.subr.bf16.mxu0 0
        %552 = vmatpush2.bf16.msra.mxu0 0
        %553 = vmatprep.subr.bf16.mxu0 0
        %554 = vmatpush2.bf16.msra.mxu0 0
        %555 = vmatprep.subr.bf16.mxu0 0
        %556 = vmatpush2.bf16.msra.mxu0 0
        %557 = vmatprep.subr.bf16.mxu0 0
        %558 = vmatpush2.bf16.msra.mxu0 0
        %559 = vmatprep.subr.bf16.mxu0 0
        %560 = vmatpush2.bf16.msra.mxu0 0
        %561 = vmatprep.subr.bf16.mxu0 0
        %562 = vmatpush2.bf16.msra.mxu0 0
        %563 = vmatprep.subr.bf16.mxu0 0
        %564 = vmatpush2.bf16.msra.mxu0 0
        %565 = vmatprep.mubr.bf16.mxu0 0
        %566 = vmatmul.mubr.bf16.gmra.mxu0 %v494
        %v567 = vpop.f32.mrf.mxu0
        %v568 = vadd.f32 0.0, %v567
        %v569 = vpop.f32.mrf.mxu0
        %v570 = vadd.f32 0.0, %v569
        %v571 = vpop.f32.mrf.mxu0
        %v572 = vadd.f32 0.0, %v571
        %v573 = vpop.f32.mrf.mxu0
        %v574 = vadd.f32 0.0, %v573
        %575 = vmatprep.mubr.bf16.mxu0 0
        %576 = vmatmul.mubr.bf16.gmra.mxu0 %v497
        %v577 = vpop.f32.mrf.mxu0
        %v578 = vadd.f32 0.0, %v577
        %v579 = vpop.f32.mrf.mxu0
        %v580 = vadd.f32 0.0, %v579
        %v581 = vpop.f32.mrf.mxu0
        %v582 = vadd.f32 0.0, %v581
        %v583 = vpop.f32.mrf.mxu0
        %v584 = vadd.f32 0.0, %v583
        %585 = vmatprep.mubr.bf16.mxu0 0
        %586 = vmatmul.mubr.bf16.gmra.mxu0 %v500
        %v587 = vpop.f32.mrf.mxu0
        %v588 = vadd.f32 0.0, %v587
        %v589 = vpop.f32.mrf.mxu0
        %v590 = vadd.f32 0.0, %v589
        %v591 = vpop.f32.mrf.mxu0
        %v592 = vadd.f32 0.0, %v591
        %v593 = vpop.f32.mrf.mxu0
        %v594 = vadd.f32 0.0, %v593
        %595 = vmatprep.mubr.bf16.mxu0 0
        %596 = vmatmul.mubr.bf16.gmra.mxu0 %v503
        %v597 = vpop.f32.mrf.mxu0
        %v598 = vadd.f32 0.0, %v597
        %v599 = vpop.f32.mrf.mxu0
        %v600 = vadd.f32 0.0, %v599
        %v601 = vpop.f32.mrf.mxu0
        %v602 = vadd.f32 0.0, %v601
        %v603 = vpop.f32.mrf.mxu0
        %v604 = vadd.f32 0.0, %v603
        %605 = vmatprep.mubr.bf16.mxu0 0
        %606 = vmatmul.mubr.bf16.gmra.mxu0 %v506
        %v607 = vpop.f32.mrf.mxu0
        %v608 = vadd.f32 0.0, %v607
        %v609 = vpop.f32.mrf.mxu0
        %v610 = vadd.f32 0.0, %v609
        %v611 = vpop.f32.mrf.mxu0
        %v612 = vadd.f32 0.0, %v611
        %v613 = vpop.f32.mrf.mxu0
        %v614 = vadd.f32 0.0, %v613
        %615 = vmatprep.mubr.bf16.mxu0 0
        %616 = vmatmul.mubr.bf16.gmra.mxu0 %v509
        %v617 = vpop.f32.mrf.mxu0
        %v618 = vadd.f32 0.0, %v617
        %v619 = vpop.f32.mrf.mxu0
        %v620 = vadd.f32 0.0, %v619
        %v621 = vpop.f32.mrf.mxu0
        %v622 = vadd.f32 0.0, %v621
        %v623 = vpop.f32.mrf.mxu0
        %v624 = vadd.f32 0.0, %v623
        %625 = vmatprep.mubr.bf16.mxu0 0
        %626 = vmatmul.mubr.bf16.gmra.mxu0 %v512
        %v627 = vpop.f32.mrf.mxu0
        %v628 = vadd.f32 0.0, %v627
        %v629 = vpop.f32.mrf.mxu0
        %v630 = vadd.f32 0.0, %v629
        %v631 = vpop.f32.mrf.mxu0
        %v632 = vadd.f32 0.0, %v631
        %v633 = vpop.f32.mrf.mxu0
        %v634 = vadd.f32 0.0, %v633
        %635 = vmatprep.mubr.bf16.mxu0 0
        %636 = vmatmul.mubr.bf16.gmra.mxu0 %v515
        %v637 = vpop.f32.mrf.mxu0
        %v638 = vadd.f32 0.0, %v637
        %v639 = vpop.f32.mrf.mxu0
        %v640 = vadd.f32 0.0, %v639
        %v641 = vpop.f32.mrf.mxu0
        %v642 = vadd.f32 0.0, %v641
        %v643 = vpop.f32.mrf.mxu0
        %v644 = vadd.f32 0.0, %v643
        %645 = vdwg.mxu0
        %646 = vmatprep.subr.bf16.mxu0 0
        %647 = vmatpush1.bf16.msra.mxu0 0
        %648 = vmatprep.subr.bf16.mxu0 0
        %649 = vmatpush1.bf16.msra.mxu0 0
        %650 = vmatprep.subr.bf16.mxu0 0
        %651 = vmatpush1.bf16.msra.mxu0 0
        %652 = vmatprep.subr.bf16.mxu0 0
        %653 = vmatpush1.bf16.msra.mxu0 0
        %654 = vmatprep.subr.bf16.mxu0 0
        %655 = vmatpush1.bf16.msra.mxu0 0
        %656 = vmatprep.subr.bf16.mxu0 0
        %657 = vmatpush1.bf16.msra.mxu0 0
        %658 = vmatprep.subr.bf16.mxu0 0
        %659 = vmatpush1.bf16.msra.mxu0 0
        %660 = vmatprep.subr.bf16.mxu0 %v531
        %661 = vmatpush1.bf16.msra.mxu0 %v528
        %662 = vmatprep.subr.bf16.mxu0 0
        %663 = vmatpush2.bf16.msra.mxu0 0
        %664 = vmatprep.subr.bf16.mxu0 0
        %665 = vmatpush2.bf16.msra.mxu0 0
        %666 = vmatprep.subr.bf16.mxu0 0
        %667 = vmatpush2.bf16.msra.mxu0 0
        %668 = vmatprep.subr.bf16.mxu0 0
        %669 = vmatpush2.bf16.msra.mxu0 0
        %670 = vmatprep.subr.bf16.mxu0 0
        %671 = vmatpush2.bf16.msra.mxu0 0
        %672 = vmatprep.subr.bf16.mxu0 0
        %673 = vmatpush2.bf16.msra.mxu0 0
        %674 = vmatprep.subr.bf16.mxu0 0
        %675 = vmatpush2.bf16.msra.mxu0 0
        %676 = vmatprep.subr.bf16.mxu0 0
        %677 = vmatpush2.bf16.msra.mxu0 0
        %678 = vmatprep.mubr.bf16.mxu0 0
        %679 = vmatmul.mubr.bf16.gmra.mxu0 %v494
        %v680 = vpop.f32.mrf.mxu0
        %v681 = vadd.f32 0.0, %v680
        %v682 = vpop.f32.mrf.mxu0
        %v683 = vadd.f32 0.0, %v682
        %v684 = vpop.f32.mrf.mxu0
        %v685 = vadd.f32 0.0, %v684
        %v686 = vpop.f32.mrf.mxu0
        %v687 = vadd.f32 0.0, %v686
        %688 = vmatprep.mubr.bf16.mxu0 0
        %689 = vmatmul.mubr.bf16.gmra.mxu0 %v497
        %v690 = vpop.f32.mrf.mxu0
        %v691 = vadd.f32 0.0, %v690
        %v692 = vpop.f32.mrf.mxu0
        %v693 = vadd.f32 0.0, %v692
        %v694 = vpop.f32.mrf.mxu0
        %v695 = vadd.f32 0.0, %v694
        %v696 = vpop.f32.mrf.mxu0
        %v697 = vadd.f32 0.0, %v696
        %698 = vmatprep.mubr.bf16.mxu0 0
        %699 = vmatmul.mubr.bf16.gmra.mxu0 %v500
        %v700 = vpop.f32.mrf.mxu0
        %v701 = vadd.f32 0.0, %v700
        %v702 = vpop.f32.mrf.mxu0
        %v703 = vadd.f32 0.0, %v702
        %v704 = vpop.f32.mrf.mxu0
        %v705 = vadd.f32 0.0, %v704
        %v706 = vpop.f32.mrf.mxu0
        %v707 = vadd.f32 0.0, %v706
        %708 = vmatprep.mubr.bf16.mxu0 0
        %709 = vmatmul.mubr.bf16.gmra.mxu0 %v503
        %v710 = vpop.f32.mrf.mxu0
        %v711 = vadd.f32 0.0, %v710
        %v712 = vpop.f32.mrf.mxu0
        %v713 = vadd.f32 0.0, %v712
        %v714 = vpop.f32.mrf.mxu0
        %v715 = vadd.f32 0.0, %v714
        %v716 = vpop.f32.mrf.mxu0
        %v717 = vadd.f32 0.0, %v716
        %718 = vmatprep.mubr.bf16.mxu0 0
        %719 = vmatmul.mubr.bf16.gmra.mxu0 %v506
        %v720 = vpop.f32.mrf.mxu0
        %v721 = vadd.f32 0.0, %v720
        %v722 = vpop.f32.mrf.mxu0
        %v723 = vadd.f32 0.0, %v722
        %v724 = vpop.f32.mrf.mxu0
        %v725 = vadd.f32 0.0, %v724
        %v726 = vpop.f32.mrf.mxu0
        %v727 = vadd.f32 0.0, %v726
        %728 = vmatprep.mubr.bf16.mxu0 0
        %729 = vmatmul.mubr.bf16.gmra.mxu0 %v509
        %v730 = vpop.f32.mrf.mxu0
        %v731 = vadd.f32 0.0, %v730
        %v732 = vpop.f32.mrf.mxu0
        %v733 = vadd.f32 0.0, %v732
        %v734 = vpop.f32.mrf.mxu0
        %v735 = vadd.f32 0.0, %v734
        %v736 = vpop.f32.mrf.mxu0
        %v737 = vadd.f32 0.0, %v736
        %738 = vmatprep.mubr.bf16.mxu0 0
        %739 = vmatmul.mubr.bf16.gmra.mxu0 %v512
        %v740 = vpop.f32.mrf.mxu0
        %v741 = vadd.f32 0.0, %v740
        %v742 = vpop.f32.mrf.mxu0
        %v743 = vadd.f32 0.0, %v742
        %v744 = vpop.f32.mrf.mxu0
        %v745 = vadd.f32 0.0, %v744
        %v746 = vpop.f32.mrf.mxu0
        %v747 = vadd.f32 0.0, %v746
        %748 = vmatprep.mubr.bf16.mxu0 0
        %749 = vmatmul.mubr.bf16.gmra.mxu0 %v515
        %v750 = vpop.f32.mrf.mxu0
        %v751 = vadd.f32 0.0, %v750
        %v752 = vpop.f32.mrf.mxu0
        %v753 = vadd.f32 0.0, %v752
        %v754 = vpop.f32.mrf.mxu0
        %v755 = vadd.f32 0.0, %v754
        %v756 = vpop.f32.mrf.mxu0
        %v757 = vadd.f32 0.0, %v756
        %758 = vdwg.mxu0
        %v759 = vld [vmem:[%s4] sm:$0xff]
        %v760 = vld [vmem:[%s4 + $0x8] sm:$0xff]
        %v761 = vld [vmem:[%s4 + $0x10] sm:$0xff]
        %v762 = vld [vmem:[%s4 + $0x18] sm:$0xff]
        %v763 = vld [vmem:[%s4 + $0x20] sm:$0xff]
        %v764 = vld [vmem:[%s4 + $0x28] sm:$0xff]
        %v765 = vld [vmem:[%s4 + $0x30] sm:$0xff]
        %v766 = vld [vmem:[%s4 + $0x38] sm:$0xff]
        %v767 = vld [vmem:[%s4 + $0x40] sm:$0xff]
        %v768 = vld [vmem:[%s4 + $0x48] sm:$0xff]
        %v769 = vld [vmem:[%s4 + $0x50] sm:$0xff]
        %v770 = vld [vmem:[%s4 + $0x58] sm:$0xff]
        %v771 = vld [vmem:[%s4 + $0x60] sm:$0xff]
        %v772 = vld [vmem:[%s4 + $0x68] sm:$0xff]
        %v773 = vld [vmem:[%s4 + $0x70] sm:$0xff]
        %v774 = vld [vmem:[%s4 + $0x78] sm:$0xff]
        %v775 = vld [vmem:[%s4 + $0x80] sm:$0xff]
        %v776 = vld [vmem:[%s4 + $0x88] sm:$0xff]
        %v777 = vld [vmem:[%s4 + $0x90] sm:$0xff]
        %v778 = vld [vmem:[%s4 + $0x98] sm:$0xff]
        %v779 = vld [vmem:[%s4 + $0xa0] sm:$0xff]
        %v780 = vld [vmem:[%s4 + $0xa8] sm:$0xff]
        %v781 = vld [vmem:[%s4 + $0xb0] sm:$0xff]
        %v782 = vld [vmem:[%s4 + $0xb8] sm:$0xff]
        %v783 = vld [vmem:[%s414] sm:$0xf]
        %785 = vset.pattern.permute.xlu0 0
        %786 = vperm.xlu0 %785, %v767
        %v787 = vpop.permute.xlu0 %786
        %790 = vset.pattern.permute.xlu0 0
        %791 = vperm.xlu0 %790, %v768
        %v792 = vpop.permute.xlu0 %791
        %795 = vset.pattern.permute.xlu0 0
        %796 = vperm.xlu0 %795, %v769
        %v797 = vpop.permute.xlu0 %796
        %800 = vset.pattern.permute.xlu0 0
        %801 = vperm.xlu0 %800, %v770
        %v802 = vpop.permute.xlu0 %801
        %805 = vset.pattern.permute.xlu0 0
        %806 = vperm.xlu0 %805, %v771
        %v807 = vpop.permute.xlu0 %806
        %810 = vset.pattern.permute.xlu0 0
        %811 = vperm.xlu0 %810, %v772
        %v812 = vpop.permute.xlu0 %811
        %815 = vset.pattern.permute.xlu0 0
        %816 = vperm.xlu0 %815, %v773
        %v817 = vpop.permute.xlu0 %816
        %820 = vset.pattern.permute.xlu0 0
        %821 = vperm.xlu0 %820, %v774
        %v822 = vpop.permute.xlu0 %821
        %v825 = vlaneseq
        %v826 = vshrl.u32 %v825, 7
        %v827 = vsub.s32 0, %v826
        %v828 = vrot.slane %v783, %v827
        %v829 = vlaneseq
        %v830 = vshrl.u32 %v829, 7
        %v831 = vsub.s32 1, %v830
        %v832 = vrot.slane %v783, %v831
        %v833 = vlaneseq
        %v834 = vshrl.u32 %v833, 7
        %v835 = vsub.s32 2, %v834
        %v836 = vrot.slane %v783, %v835
        %v837 = vlaneseq
        %v838 = vshrl.u32 %v837, 7
        %v839 = vsub.s32 3, %v838
        %v840 = vrot.slane %v783, %v839
        %v845 = vmul.f32 %v787, %v828
        %v846 = vmul.f32 %v787, %v832
        %v847 = vmul.f32 %v787, %v836
        %v848 = vmul.f32 %v787, %v840
        %v849 = vmul.f32 %v792, %v828
        %v850 = vmul.f32 %v792, %v832
        %v851 = vmul.f32 %v792, %v836
        %v852 = vmul.f32 %v792, %v840
        %v853 = vmul.f32 %v797, %v828
        %v854 = vmul.f32 %v797, %v832
        %v855 = vmul.f32 %v797, %v836
        %v856 = vmul.f32 %v797, %v840
        %v857 = vmul.f32 %v802, %v828
        %v858 = vmul.f32 %v802, %v832
        %v859 = vmul.f32 %v802, %v836
        %v860 = vmul.f32 %v802, %v840
        %v861 = vmul.f32 %v807, %v828
        %v862 = vmul.f32 %v807, %v832
        %v863 = vmul.f32 %v807, %v836
        %v864 = vmul.f32 %v807, %v840
        %v865 = vmul.f32 %v812, %v828
        %v866 = vmul.f32 %v812, %v832
        %v867 = vmul.f32 %v812, %v836
        %v868 = vmul.f32 %v812, %v840
        %v869 = vmul.f32 %v817, %v828
        %v870 = vmul.f32 %v817, %v832
        %v871 = vmul.f32 %v817, %v836
        %v872 = vmul.f32 %v817, %v840
        %v873 = vmul.f32 %v822, %v828
        %v874 = vmul.f32 %v822, %v832
        %v875 = vmul.f32 %v822, %v836
        %v876 = vmul.f32 %v822, %v840
        %v877 = vadd.f32 %v568, %v845
        %v878 = vadd.f32 %v570, %v846
        %v879 = vadd.f32 %v681, %v847
        %v880 = vadd.f32 %v683, %v848
        %v881 = vadd.f32 %v572, %v849
        %v882 = vadd.f32 %v574, %v850
        %v883 = vadd.f32 %v685, %v851
        %v884 = vadd.f32 %v687, %v852
        %v885 = vadd.f32 %v578, %v853
        %v886 = vadd.f32 %v580, %v854
        %v887 = vadd.f32 %v691, %v855
        %v888 = vadd.f32 %v693, %v856
        %v889 = vadd.f32 %v582, %v857
        %v890 = vadd.f32 %v584, %v858
        %v891 = vadd.f32 %v695, %v859
        %v892 = vadd.f32 %v697, %v860
        %v893 = vadd.f32 %v588, %v861
        %v894 = vadd.f32 %v590, %v862
        %v895 = vadd.f32 %v701, %v863
        %v896 = vadd.f32 %v703, %v864
        %v897 = vadd.f32 %v592, %v865
        %v898 = vadd.f32 %v594, %v866
        %v899 = vadd.f32 %v705, %v867
        %v900 = vadd.f32 %v707, %v868
        %v901 = vadd.f32 %v598, %v869
        %v902 = vadd.f32 %v600, %v870
        %v903 = vadd.f32 %v711, %v871
        %v904 = vadd.f32 %v713, %v872
        %v905 = vadd.f32 %v602, %v873
        %v906 = vadd.f32 %v604, %v874
        %v907 = vadd.f32 %v715, %v875
        %v908 = vadd.f32 %v717, %v876
        %910 = vset.pattern.permute.xlu0 0
        %911 = vperm.xlu0 %910, %v759
        %v912 = vpop.permute.xlu0 %911
        %915 = vset.pattern.permute.xlu0 0
        %916 = vperm.xlu0 %915, %v760
        %v917 = vpop.permute.xlu0 %916
        %920 = vset.pattern.permute.xlu0 0
        %921 = vperm.xlu0 %920, %v761
        %v922 = vpop.permute.xlu0 %921
        %925 = vset.pattern.permute.xlu0 0
        %926 = vperm.xlu0 %925, %v762
        %v927 = vpop.permute.xlu0 %926
        %930 = vset.pattern.permute.xlu0 0
        %931 = vperm.xlu0 %930, %v763
        %v932 = vpop.permute.xlu0 %931
        %935 = vset.pattern.permute.xlu0 0
        %936 = vperm.xlu0 %935, %v764
        %v937 = vpop.permute.xlu0 %936
        %940 = vset.pattern.permute.xlu0 0
        %941 = vperm.xlu0 %940, %v765
        %v942 = vpop.permute.xlu0 %941
        %945 = vset.pattern.permute.xlu0 0
        %946 = vperm.xlu0 %945, %v766
        %v947 = vpop.permute.xlu0 %946
        %v949 = vadd.f32 %v877, %v912
        %v950 = vadd.f32 %v878, %v912
        %v951 = vadd.f32 %v879, %v912
        %v952 = vadd.f32 %v880, %v912
        %v953 = vadd.f32 %v881, %v917
        %v954 = vadd.f32 %v882, %v917
        %v955 = vadd.f32 %v883, %v917
        %v956 = vadd.f32 %v884, %v917
        %v957 = vadd.f32 %v885, %v922
        %v958 = vadd.f32 %v886, %v922
        %v959 = vadd.f32 %v887, %v922
        %v960 = vadd.f32 %v888, %v922
        %v961 = vadd.f32 %v889, %v927
        %v962 = vadd.f32 %v890, %v927
        %v963 = vadd.f32 %v891, %v927
        %v964 = vadd.f32 %v892, %v927
        %v965 = vadd.f32 %v893, %v932
        %v966 = vadd.f32 %v894, %v932
        %v967 = vadd.f32 %v895, %v932
        %v968 = vadd.f32 %v896, %v932
        %v969 = vadd.f32 %v897, %v937
        %v970 = vadd.f32 %v898, %v937
        %v971 = vadd.f32 %v899, %v937
        %v972 = vadd.f32 %v900, %v937
        %v973 = vadd.f32 %v901, %v942
        %v974 = vadd.f32 %v902, %v942
        %v975 = vadd.f32 %v903, %v942
        %v976 = vadd.f32 %v904, %v942
        %v977 = vadd.f32 %v905, %v947
        %v978 = vadd.f32 %v906, %v947
        %v979 = vadd.f32 %v907, %v947
        %v980 = vadd.f32 %v908, %v947
        %v981 = vtanh.pop %v949
        %v982 = vtanh.pop %v950
        %v983 = vtanh.pop %v951
        %v984 = vtanh.pop %v952
        %v985 = vtanh.pop %v953
        %v986 = vtanh.pop %v954
        %v987 = vtanh.pop %v955
        %v988 = vtanh.pop %v956
        %v989 = vtanh.pop %v957
        %v990 = vtanh.pop %v958
        %v991 = vtanh.pop %v959
        %v992 = vtanh.pop %v960
        %v993 = vtanh.pop %v961
        %v994 = vtanh.pop %v962
        %v995 = vtanh.pop %v963
        %v996 = vtanh.pop %v964
        %v997 = vtanh.pop %v965
        %v998 = vtanh.pop %v966
        %v999 = vtanh.pop %v967
        %v1000 = vtanh.pop %v968
        %v1001 = vtanh.pop %v969
        %v1002 = vtanh.pop %v970
        %v1003 = vtanh.pop %v971
        %v1004 = vtanh.pop %v972
        %v1005 = vtanh.pop %v973
        %v1006 = vtanh.pop %v974
        %v1007 = vtanh.pop %v975
        %v1008 = vtanh.pop %v976
        %v1009 = vtanh.pop %v977
        %v1010 = vtanh.pop %v978
        %v1011 = vtanh.pop %v979
        %v1012 = vtanh.pop %v980
        %v1013 = vld [vmem:[%s3] sm:$0x1]
        %v1014 = vpack.c.bf16 %v985, %v981
        %v1015 = vpack.c.bf16 %v986, %v982
        %v1016 = vpack.c.bf16 %v987, %v983
        %v1017 = vpack.c.bf16 %v988, %v984
        %v1018 = vpack.c.bf16 %v993, %v989
        %v1019 = vpack.c.bf16 %v994, %v990
        %v1020 = vpack.c.bf16 %v995, %v991
        %v1021 = vpack.c.bf16 %v996, %v992
        %v1022 = vpack.c.bf16 %v1001, %v997
        %v1023 = vpack.c.bf16 %v1002, %v998
        %v1024 = vpack.c.bf16 %v1003, %v999
        %v1025 = vpack.c.bf16 %v1004, %v1000
        %v1026 = vpack.c.bf16 %v1009, %v1005
        %v1027 = vpack.c.bf16 %v1010, %v1006
        %v1028 = vpack.c.bf16 %v1011, %v1007
        %v1029 = vpack.c.bf16 %v1012, %v1008
        %v1030 = vld [vmem:[#allocation2] sm:$0x1]
        %1032 = vset.pattern.permute.xlu0 0
        %1033 = vperm.xlu0 %1032, %v1030
        %v1034 = vpop.permute.xlu0 %1033
        %v1036 = vlaneseq
        %v1037 = vshrl.u32 %v1036, 7
        %v1038 = vsub.s32 0, %v1037
        %v1039 = vrot.slane %v1034, %v1038
        %vm1040 = vcmask 523264
        %v1042 = vsel %vm1040, %v1013, 0
        %1044 = vmatprep.subr.bf16.mxu0 0
        %1045 = vmatpush1.bf16.msra.mxu0 0
        %1046 = vmatprep.subr.bf16.mxu0 0
        %1047 = vmatpush1.bf16.msra.mxu0 0
        %1048 = vmatprep.subr.bf16.mxu0 0
        %1049 = vmatpush1.bf16.msra.mxu0 0
        %1050 = vmatprep.subr.bf16.mxu0 0
        %1051 = vmatpush1.bf16.msra.mxu0 0
        %1052 = vmatprep.subr.bf16.mxu0 %v1027
        %1053 = vmatpush1.bf16.msra.mxu0 %v1026
        %1054 = vmatprep.subr.bf16.mxu0 %v1023
        %1055 = vmatpush1.bf16.msra.mxu0 %v1022
        %1056 = vmatprep.subr.bf16.mxu0 %v1019
        %1057 = vmatpush1.bf16.msra.mxu0 %v1018
        %1058 = vmatprep.subr.bf16.mxu0 %v1015
        %1059 = vmatpush1.bf16.msra.mxu0 %v1014
        %1060 = vmatprep.subr.bf16.mxu0 0
        %1061 = vmatpush2.bf16.msra.mxu0 0
        %1062 = vmatprep.subr.bf16.mxu0 0
        %1063 = vmatpush2.bf16.msra.mxu0 0
        %1064 = vmatprep.subr.bf16.mxu0 0
        %1065 = vmatpush2.bf16.msra.mxu0 0
        %1066 = vmatprep.subr.bf16.mxu0 0
        %1067 = vmatpush2.bf16.msra.mxu0 0
        %1068 = vmatprep.subr.bf16.mxu0 0
        %1069 = vmatpush2.bf16.msra.mxu0 0
        %1070 = vmatprep.subr.bf16.mxu0 0
        %1071 = vmatpush2.bf16.msra.mxu0 0
        %1072 = vmatprep.subr.bf16.mxu0 0
        %1073 = vmatpush2.bf16.msra.mxu0 0
        %1074 = vmatprep.subr.bf16.mxu0 0
        %1075 = vmatpush2.bf16.msra.mxu0 0
        %1076 = vmatprep.mubr.bf16.mxu0 0
        %1077 = vmatmul.mubr.bf16.gmra.mxu0 %v1042
        %v1078 = vpop.f32.mrf.mxu0
        %v1079 = vadd.f32 %v1039, %v1078
        %v1080 = vpop.f32.mrf.mxu0
        %v1081 = vadd.f32 %v1039, %v1080
        %v1082 = vpop.f32.mrf.mxu0
        %v1083 = vpop.f32.mrf.mxu0
        %1084 = vdwg.mxu0
        %1085 = vmatprep.subr.bf16.mxu0 0
        %1086 = vmatpush1.bf16.msra.mxu0 0
        %1087 = vmatprep.subr.bf16.mxu0 0
        %1088 = vmatpush1.bf16.msra.mxu0 0
        %1089 = vmatprep.subr.bf16.mxu0 0
        %1090 = vmatpush1.bf16.msra.mxu0 0
        %1091 = vmatprep.subr.bf16.mxu0 0
        %1092 = vmatpush1.bf16.msra.mxu0 0
        %1093 = vmatprep.subr.bf16.mxu0 %v1029
        %1094 = vmatpush1.bf16.msra.mxu0 %v1028
        %1095 = vmatprep.subr.bf16.mxu0 %v1025
        %1096 = vmatpush1.bf16.msra.mxu0 %v1024
        %1097 = vmatprep.subr.bf16.mxu0 %v1021
        %1098 = vmatpush1.bf16.msra.mxu0 %v1020
        %1099 = vmatprep.subr.bf16.mxu0 %v1017
        %1100 = vmatpush1.bf16.msra.mxu0 %v1016
        %1101 = vmatprep.subr.bf16.mxu0 0
        %1102 = vmatpush2.bf16.msra.mxu0 0
        %1103 = vmatprep.subr.bf16.mxu0 0
        %1104 = vmatpush2.bf16.msra.mxu0 0
        %1105 = vmatprep.subr.bf16.mxu0 0
        %1106 = vmatpush2.bf16.msra.mxu0 0
        %1107 = vmatprep.subr.bf16.mxu0 0
        %1108 = vmatpush2.bf16.msra.mxu0 0
        %1109 = vmatprep.subr.bf16.mxu0 0
        %1110 = vmatpush2.bf16.msra.mxu0 0
        %1111 = vmatprep.subr.bf16.mxu0 0
        %1112 = vmatpush2.bf16.msra.mxu0 0
        %1113 = vmatprep.subr.bf16.mxu0 0
        %1114 = vmatpush2.bf16.msra.mxu0 0
        %1115 = vmatprep.subr.bf16.mxu0 0
        %1116 = vmatpush2.bf16.msra.mxu0 0
        %1117 = vmatprep.mubr.bf16.mxu0 0
        %1118 = vmatmul.mubr.bf16.gmra.mxu0 %v1042
        %v1119 = vpop.f32.mrf.mxu0
        %v1120 = vadd.f32 %v1039, %v1119
        %v1121 = vpop.f32.mrf.mxu0
        %v1122 = vadd.f32 %v1039, %v1121
        %v1123 = vpop.f32.mrf.mxu0
        %v1124 = vpop.f32.mrf.mxu0
        %1125 = vdwg.mxu0
        %v1126 = vxor.u32 %v1079, 2147483648
        %v1127 = vxor.u32 %v1081, 2147483648
        %v1128 = vxor.u32 %v1120, 2147483648
        %v1129 = vxor.u32 %v1122, 2147483648
        %v1130 = vmul.f32 %v1126, 1.442695
        %v1131 = vpow.pop %v1130
        %v1132 = vmul.f32 %v1127, 1.442695
        %v1133 = vpow.pop %v1132
        %v1134 = vmul.f32 %v1128, 1.442695
        %v1135 = vpow.pop %v1134
        %v1136 = vmul.f32 %v1129, 1.442695
        %v1137 = vpow.pop %v1136
        %v1138 = vadd.f32 %v1131, 1.0
        %v1139 = vadd.f32 %v1133, 1.0
        %v1140 = vadd.f32 %v1135, 1.0
        %v1141 = vadd.f32 %v1137, 1.0
        %v1142 = vrcp.pop %v1138
        %v1143 = vmul.f32 1.0, %v1142
        %v1144 = vrcp.pop %v1139
        %v1145 = vmul.f32 1.0, %v1144
        %v1146 = vrcp.pop %v1140
        %v1147 = vmul.f32 1.0, %v1146
        %v1148 = vrcp.pop %v1141
        %v1149 = vmul.f32 1.0, %v1148
        %v1150 = vlaneseq
        %v1151 = vshrl.u32 %v1150, 7
        %v1152 = vsub.s32 0, %v1151
        %v1153 = vrot.slane %v1143, %v1152
        %v1154 = vlaneseq
        %v1155 = vshrl.u32 %v1154, 7
        %v1156 = vsub.s32 0, %v1155
        %v1157 = vrot.slane %v1145, %v1156
        %v1158 = vlaneseq
        %v1159 = vshrl.u32 %v1158, 7
        %v1160 = vsub.s32 0, %v1159
        %v1161 = vrot.slane %v1147, %v1160
        %v1162 = vlaneseq
        %v1163 = vshrl.u32 %v1162, 7
        %v1164 = vsub.s32 0, %v1163
        %v1165 = vrot.slane %v1149, %v1164
        %v1166 = vmul.f32 %v1153, %v608
        %v1167 = vmul.f32 %v1157, %v610
        %v1168 = vmul.f32 %v1161, %v721
        %v1169 = vmul.f32 %v1165, %v723
        %v1170 = vmul.f32 %v1153, %v612
        %v1171 = vmul.f32 %v1157, %v614
        %v1172 = vmul.f32 %v1161, %v725
        %v1173 = vmul.f32 %v1165, %v727
        %v1174 = vmul.f32 %v1153, %v618
        %v1175 = vmul.f32 %v1157, %v620
        %v1176 = vmul.f32 %v1161, %v731
        %v1177 = vmul.f32 %v1165, %v733
        %v1178 = vmul.f32 %v1153, %v622
        %v1179 = vmul.f32 %v1157, %v624
        %v1180 = vmul.f32 %v1161, %v735
        %v1181 = vmul.f32 %v1165, %v737
        %v1182 = vmul.f32 %v1153, %v628
        %v1183 = vmul.f32 %v1157, %v630
        %v1184 = vmul.f32 %v1161, %v741
        %v1185 = vmul.f32 %v1165, %v743
        %v1186 = vmul.f32 %v1153, %v632
        %v1187 = vmul.f32 %v1157, %v634
        %v1188 = vmul.f32 %v1161, %v745
        %v1189 = vmul.f32 %v1165, %v747
        %v1190 = vmul.f32 %v1153, %v638
        %v1191 = vmul.f32 %v1157, %v640
        %v1192 = vmul.f32 %v1161, %v751
        %v1193 = vmul.f32 %v1165, %v753
        %v1194 = vmul.f32 %v1153, %v642
        %v1195 = vmul.f32 %v1157, %v644
        %v1196 = vmul.f32 %v1161, %v755
        %v1197 = vmul.f32 %v1165, %v757
        %1199 = vset.pattern.permute.xlu0 0
        %1200 = vperm.xlu0 %1199, %v775
        %v1201 = vpop.permute.xlu0 %1200
        %1204 = vset.pattern.permute.xlu0 0
        %1205 = vperm.xlu0 %1204, %v776
        %v1206 = vpop.permute.xlu0 %1205
        %1209 = vset.pattern.permute.xlu0 0
        %1210 = vperm.xlu0 %1209, %v777
        %v1211 = vpop.permute.xlu0 %1210
        %1214 = vset.pattern.permute.xlu0 0
        %1215 = vperm.xlu0 %1214, %v778
        %v1216 = vpop.permute.xlu0 %1215
        %1219 = vset.pattern.permute.xlu0 0
        %1220 = vperm.xlu0 %1219, %v779
        %v1221 = vpop.permute.xlu0 %1220
        %1224 = vset.pattern.permute.xlu0 0
        %1225 = vperm.xlu0 %1224, %v780
        %v1226 = vpop.permute.xlu0 %1225
        %1229 = vset.pattern.permute.xlu0 0
        %1230 = vperm.xlu0 %1229, %v781
        %v1231 = vpop.permute.xlu0 %1230
        %1234 = vset.pattern.permute.xlu0 0
        %1235 = vperm.xlu0 %1234, %v782
        %v1236 = vpop.permute.xlu0 %1235
        %v1238 = vadd.f32 %v1166, %v1201
        %v1239 = vadd.f32 %v1167, %v1201
        %v1240 = vadd.f32 %v1168, %v1201
        %v1241 = vadd.f32 %v1169, %v1201
        %v1242 = vadd.f32 %v1170, %v1206
        %v1243 = vadd.f32 %v1171, %v1206
        %v1244 = vadd.f32 %v1172, %v1206
        %v1245 = vadd.f32 %v1173, %v1206
        %v1246 = vadd.f32 %v1174, %v1211
        %v1247 = vadd.f32 %v1175, %v1211
        %v1248 = vadd.f32 %v1176, %v1211
        %v1249 = vadd.f32 %v1177, %v1211
        %v1250 = vadd.f32 %v1178, %v1216
        %v1251 = vadd.f32 %v1179, %v1216
        %v1252 = vadd.f32 %v1180, %v1216
        %v1253 = vadd.f32 %v1181, %v1216
        %v1254 = vadd.f32 %v1182, %v1221
        %v1255 = vadd.f32 %v1183, %v1221
        %v1256 = vadd.f32 %v1184, %v1221
        %v1257 = vadd.f32 %v1185, %v1221
        %v1258 = vadd.f32 %v1186, %v1226
        %v1259 = vadd.f32 %v1187, %v1226
        %v1260 = vadd.f32 %v1188, %v1226
        %v1261 = vadd.f32 %v1189, %v1226
        %v1262 = vadd.f32 %v1190, %v1231
        %v1263 = vadd.f32 %v1191, %v1231
        %v1264 = vadd.f32 %v1192, %v1231
        %v1265 = vadd.f32 %v1193, %v1231
        %v1266 = vadd.f32 %v1194, %v1236
        %v1267 = vadd.f32 %v1195, %v1236
        %v1268 = vadd.f32 %v1196, %v1236
        %v1269 = vadd.f32 %v1197, %v1236
        %v1270 = vmax.f32 %v1238, 0.0
        %v1271 = vmax.f32 %v1239, 0.0
        %v1272 = vmax.f32 %v1240, 0.0
        %v1273 = vmax.f32 %v1241, 0.0
        %v1274 = vmax.f32 %v1242, 0.0
        %v1275 = vmax.f32 %v1243, 0.0
        %v1276 = vmax.f32 %v1244, 0.0
        %v1277 = vmax.f32 %v1245, 0.0
        %v1278 = vmax.f32 %v1246, 0.0
        %v1279 = vmax.f32 %v1247, 0.0
        %v1280 = vmax.f32 %v1248, 0.0
        %v1281 = vmax.f32 %v1249, 0.0
        %v1282 = vmax.f32 %v1250, 0.0
        %v1283 = vmax.f32 %v1251, 0.0
        %v1284 = vmax.f32 %v1252, 0.0
        %v1285 = vmax.f32 %v1253, 0.0
        %v1286 = vmax.f32 %v1254, 0.0
        %v1287 = vmax.f32 %v1255, 0.0
        %v1288 = vmax.f32 %v1256, 0.0
        %v1289 = vmax.f32 %v1257, 0.0
        %v1290 = vmax.f32 %v1258, 0.0
        %v1291 = vmax.f32 %v1259, 0.0
        %v1292 = vmax.f32 %v1260, 0.0
        %v1293 = vmax.f32 %v1261, 0.0
        %v1294 = vmax.f32 %v1262, 0.0
        %v1295 = vmax.f32 %v1263, 0.0
        %v1296 = vmax.f32 %v1264, 0.0
        %v1297 = vmax.f32 %v1265, 0.0
        %v1298 = vmax.f32 %v1266, 0.0
        %v1299 = vmax.f32 %v1267, 0.0
        %v1300 = vmax.f32 %v1268, 0.0
        %v1301 = vmax.f32 %v1269, 0.0
        %v1302 = vpack.c.bf16 %v1274, %v1270
        %v1303 = vpack.c.bf16 %v1275, %v1271
        %v1304 = vpack.c.bf16 %v1276, %v1272
        %v1305 = vpack.c.bf16 %v1277, %v1273
        %v1306 = vpack.c.bf16 %v1282, %v1278
        %v1307 = vpack.c.bf16 %v1283, %v1279
        %v1308 = vpack.c.bf16 %v1284, %v1280
        %v1309 = vpack.c.bf16 %v1285, %v1281
        %v1310 = vpack.c.bf16 %v1290, %v1286
        %v1311 = vpack.c.bf16 %v1291, %v1287
        %v1312 = vpack.c.bf16 %v1292, %v1288
        %v1313 = vpack.c.bf16 %v1293, %v1289
        %v1314 = vpack.c.bf16 %v1298, %v1294
        %v1315 = vpack.c.bf16 %v1299, %v1295
        %v1316 = vpack.c.bf16 %v1300, %v1296
        %v1317 = vpack.c.bf16 %v1301, %v1297
        %v1334 = vunpack.c.l.b16 %v1302
        %v1335 = vunpack.c.l.b16 %v1303
        %v1336 = vunpack.c.l.b16 %v1304
        %v1337 = vunpack.c.l.b16 %v1305
        %v1338 = vunpack.c.h.b16 %v1302
        %v1339 = vunpack.c.h.b16 %v1303
        %v1340 = vunpack.c.h.b16 %v1304
        %v1341 = vunpack.c.h.b16 %v1305
        %v1342 = vunpack.c.l.b16 %v1306
        %v1343 = vunpack.c.l.b16 %v1307
        %v1344 = vunpack.c.l.b16 %v1308
        %v1345 = vunpack.c.l.b16 %v1309
        %v1346 = vunpack.c.h.b16 %v1306
        %v1347 = vunpack.c.h.b16 %v1307
        %v1348 = vunpack.c.h.b16 %v1308
        %v1349 = vunpack.c.h.b16 %v1309
        %v1350 = vunpack.c.l.b16 %v1310
        %v1351 = vunpack.c.l.b16 %v1311
        %v1352 = vunpack.c.l.b16 %v1312
        %v1353 = vunpack.c.l.b16 %v1313
        %v1354 = vunpack.c.h.b16 %v1310
        %v1355 = vunpack.c.h.b16 %v1311
        %v1356 = vunpack.c.h.b16 %v1312
        %v1357 = vunpack.c.h.b16 %v1313
        %v1358 = vunpack.c.l.b16 %v1314
        %v1359 = vunpack.c.l.b16 %v1315
        %v1360 = vunpack.c.l.b16 %v1316
        %v1361 = vunpack.c.l.b16 %v1317
        %v1362 = vunpack.c.h.b16 %v1314
        %v1363 = vunpack.c.h.b16 %v1315
        %v1364 = vunpack.c.h.b16 %v1316
        %v1365 = vunpack.c.h.b16 %v1317
        %v1366 = vpack.c.b16 %v1335, %v1334
        %v1367 = vpack.c.b16 %v1337, %v1336
        %v1368 = vpack.c.b16 %v1339, %v1338
        %v1369 = vpack.c.b16 %v1341, %v1340
        %v1370 = vpack.c.b16 %v1343, %v1342
        %v1371 = vpack.c.b16 %v1345, %v1344
        %v1372 = vpack.c.b16 %v1347, %v1346
        %v1373 = vpack.c.b16 %v1349, %v1348
        %v1374 = vpack.c.b16 %v1351, %v1350
        %v1375 = vpack.c.b16 %v1353, %v1352
        %v1376 = vpack.c.b16 %v1355, %v1354
        %v1377 = vpack.c.b16 %v1357, %v1356
        %v1378 = vpack.c.b16 %v1359, %v1358
        %v1379 = vpack.c.b16 %v1361, %v1360
        %v1380 = vpack.c.b16 %v1363, %v1362
        %v1381 = vpack.c.b16 %v1365, %v1364
        %1398 = vst [vmem:[%s397] sm:$0xff] %v1366
        %1399 = vst [vmem:[%s397 + $0x8] sm:$0xff] %v1367
        %1400 = vst [vmem:[%s397 + $0x10] sm:$0xff] %v1368
        %1401 = vst [vmem:[%s397 + $0x18] sm:$0xff] %v1369
        %1402 = vst [vmem:[%s397 + $0x20] sm:$0xff] %v1370
        %1403 = vst [vmem:[%s397 + $0x28] sm:$0xff] %v1371
        %1404 = vst [vmem:[%s397 + $0x30] sm:$0xff] %v1372
        %1405 = vst [vmem:[%s397 + $0x38] sm:$0xff] %v1373
        %1406 = vst [vmem:[%s397 + $0x40] sm:$0xff] %v1374
        %1407 = vst [vmem:[%s397 + $0x48] sm:$0xff] %v1375
        %1408 = vst [vmem:[%s397 + $0x50] sm:$0xff] %v1376
        %1409 = vst [vmem:[%s397 + $0x58] sm:$0xff] %v1377
        %1410 = vst [vmem:[%s397 + $0x60] sm:$0xff] %v1378
        %1411 = vst [vmem:[%s397 + $0x68] sm:$0xff] %v1379
        %1412 = vst [vmem:[%s397 + $0x70] sm:$0xff] %v1380
        %1413 = vst [vmem:[%s397 + $0x78] sm:$0xff] %v1381
        %v1414 = vld [vmem:[%s6] sm:$0xf]
        %v1415 = vld [vmem:[%s6 + $0x4] sm:$0xf]
        %v1416 = vld [vmem:[%s7] sm:$0xff]
        %v1417 = vld [vmem:[%s7 + $0x8] sm:$0xff]
        %1419 = vset.pattern.permute.xlu0 0
        %1420 = vperm.xlu0 %1419, %v1416
        %v1421 = vpop.permute.xlu0 %1420
        %1424 = vset.pattern.permute.xlu0 0
        %1425 = vperm.xlu0 %1424, %v1417
        %v1426 = vpop.permute.xlu0 %1425
        %v1430 = vunpack.c.l.b16 %v1414
        %v1431 = vunpack.c.l.b16 %v1415
        %v1432 = vpack.c.b16 %v1431, %v1430
        %v1434 = vsel %vm1040, %v1432, 0
        %1436 = vmatprep.subr.bf16.mxu0 0
        %1437 = vmatpush1.bf16.msra.mxu0 0
        %1438 = vmatprep.subr.bf16.mxu0 0
        %1439 = vmatpush1.bf16.msra.mxu0 0
        %1440 = vmatprep.subr.bf16.mxu0 0
        %1441 = vmatpush1.bf16.msra.mxu0 0
        %1442 = vmatprep.subr.bf16.mxu0 0
        %1443 = vmatpush1.bf16.msra.mxu0 0
        %1444 = vmatprep.subr.bf16.mxu0 %v1315
        %1445 = vmatpush1.bf16.msra.mxu0 %v1314
        %1446 = vmatprep.subr.bf16.mxu0 %v1311
        %1447 = vmatpush1.bf16.msra.mxu0 %v1310
        %1448 = vmatprep.subr.bf16.mxu0 %v1307
        %1449 = vmatpush1.bf16.msra.mxu0 %v1306
        %1450 = vmatprep.subr.bf16.mxu0 %v1303
        %1451 = vmatpush1.bf16.msra.mxu0 %v1302
        %1452 = vmatprep.subr.bf16.mxu0 0
        %1453 = vmatpush2.bf16.msra.mxu0 0
        %1454 = vmatprep.subr.bf16.mxu0 0
        %1455 = vmatpush2.bf16.msra.mxu0 0
        %1456 = vmatprep.subr.bf16.mxu0 0
        %1457 = vmatpush2.bf16.msra.mxu0 0
        %1458 = vmatprep.subr.bf16.mxu0 0
        %1459 = vmatpush2.bf16.msra.mxu0 0
        %1460 = vmatprep.subr.bf16.mxu0 0
        %1461 = vmatpush2.bf16.msra.mxu0 0
        %1462 = vmatprep.subr.bf16.mxu0 0
        %1463 = vmatpush2.bf16.msra.mxu0 0
        %1464 = vmatprep.subr.bf16.mxu0 0
        %1465 = vmatpush2.bf16.msra.mxu0 0
        %1466 = vmatprep.subr.bf16.mxu0 0
        %1467 = vmatpush2.bf16.msra.mxu0 0
        %1468 = vmatprep.mubr.bf16.mxu0 0
        %1469 = vmatmul.mubr.bf16.gmra.mxu0 %v1434
        %v1470 = vpop.f32.mrf.mxu0
        %v1471 = vadd.f32 %v1421, %v1470
        %v1472 = vpop.f32.mrf.mxu0
        %v1473 = vadd.f32 %v1421, %v1472
        %v1474 = vpop.f32.mrf.mxu0
        %v1475 = vadd.f32 %v1426, %v1474
        %v1476 = vpop.f32.mrf.mxu0
        %v1477 = vadd.f32 %v1426, %v1476
        %1478 = vdwg.mxu0
        %1479 = vmatprep.subr.bf16.mxu0 0
        %1480 = vmatpush1.bf16.msra.mxu0 0
        %1481 = vmatprep.subr.bf16.mxu0 0
        %1482 = vmatpush1.bf16.msra.mxu0 0
        %1483 = vmatprep.subr.bf16.mxu0 0
        %1484 = vmatpush1.bf16.msra.mxu0 0
        %1485 = vmatprep.subr.bf16.mxu0 0
        %1486 = vmatpush1.bf16.msra.mxu0 0
        %1487 = vmatprep.subr.bf16.mxu0 %v1317
        %1488 = vmatpush1.bf16.msra.mxu0 %v1316
        %1489 = vmatprep.subr.bf16.mxu0 %v1313
        %1490 = vmatpush1.bf16.msra.mxu0 %v1312
        %1491 = vmatprep.subr.bf16.mxu0 %v1309
        %1492 = vmatpush1.bf16.msra.mxu0 %v1308
        %1493 = vmatprep.subr.bf16.mxu0 %v1305
        %1494 = vmatpush1.bf16.msra.mxu0 %v1304
        %1495 = vmatprep.subr.bf16.mxu0 0
        %1496 = vmatpush2.bf16.msra.mxu0 0
        %1497 = vmatprep.subr.bf16.mxu0 0
        %1498 = vmatpush2.bf16.msra.mxu0 0
        %1499 = vmatprep.subr.bf16.mxu0 0
        %1500 = vmatpush2.bf16.msra.mxu0 0
        %1501 = vmatprep.subr.bf16.mxu0 0
        %1502 = vmatpush2.bf16.msra.mxu0 0
        %1503 = vmatprep.subr.bf16.mxu0 0
        %1504 = vmatpush2.bf16.msra.mxu0 0
        %1505 = vmatprep.subr.bf16.mxu0 0
        %1506 = vmatpush2.bf16.msra.mxu0 0
        %1507 = vmatprep.subr.bf16.mxu0 0
        %1508 = vmatpush2.bf16.msra.mxu0 0
        %1509 = vmatprep.subr.bf16.mxu0 0
        %1510 = vmatpush2.bf16.msra.mxu0 0
        %1511 = vmatprep.mubr.bf16.mxu0 0
        %1512 = vmatmul.mubr.bf16.gmra.mxu0 %v1434
        %v1513 = vpop.f32.mrf.mxu0
        %v1514 = vadd.f32 %v1421, %v1513
        %v1515 = vpop.f32.mrf.mxu0
        %v1516 = vadd.f32 %v1421, %v1515
        %v1517 = vpop.f32.mrf.mxu0
        %v1518 = vadd.f32 %v1426, %v1517
        %v1519 = vpop.f32.mrf.mxu0
        %v1520 = vadd.f32 %v1426, %v1519
        %1521 = vdwg.mxu0
        %v1522 = vmax.f32 %v1471, 0.0
        %v1523 = vmax.f32 %v1473, 0.0
        %v1524 = vmax.f32 %v1514, 0.0
        %v1525 = vmax.f32 %v1516, 0.0
        %v1526 = vmax.f32 %v1475, 0.0
        %v1527 = vmax.f32 %v1477, 0.0
        %v1528 = vmax.f32 %v1518, 0.0
        %v1529 = vmax.f32 %v1520, 0.0
        %v1530 = vld [vmem:[%s8] sm:$0x3]
        %v1531 = vpack.c.bf16 %v1526, %v1522
        %v1532 = vpack.c.bf16 %v1527, %v1523
        %v1533 = vpack.c.bf16 %v1528, %v1524
        %v1534 = vpack.c.bf16 %v1529, %v1525
        %v1535 = vld [vmem:[%s9] sm:$0xf]
        %1537 = vset.pattern.permute.xlu0 0
        %1538 = vperm.xlu0 %1537, %v1535
        %v1539 = vpop.permute.xlu0 %1538
        %vm1541 = vcmask 130048
        %v1543 = vsel %vm1541, %v1530, 0
        %1545 = vmatprep.subr.bf16.mxu0 0
        %1546 = vmatpush1.bf16.msra.mxu0 0
        %1547 = vmatprep.subr.bf16.mxu0 0
        %1548 = vmatpush1.bf16.msra.mxu0 0
        %1549 = vmatprep.subr.bf16.mxu0 0
        %1550 = vmatpush1.bf16.msra.mxu0 0
        %1551 = vmatprep.subr.bf16.mxu0 0
        %1552 = vmatpush1.bf16.msra.mxu0 0
        %1553 = vmatprep.subr.bf16.mxu0 0
        %1554 = vmatpush1.bf16.msra.mxu0 0
        %1555 = vmatprep.subr.bf16.mxu0 0
        %1556 = vmatpush1.bf16.msra.mxu0 0
        %1557 = vmatprep.subr.bf16.mxu0 0
        %1558 = vmatpush1.bf16.msra.mxu0 0
        %1559 = vmatprep.subr.bf16.mxu0 %v1532
        %1560 = vmatpush1.bf16.msra.mxu0 %v1531
        %1561 = vmatprep.subr.bf16.mxu0 0
        %1562 = vmatpush2.bf16.msra.mxu0 0
        %1563 = vmatprep.subr.bf16.mxu0 0
        %1564 = vmatpush2.bf16.msra.mxu0 0
        %1565 = vmatprep.subr.bf16.mxu0 0
        %1566 = vmatpush2.bf16.msra.mxu0 0
        %1567 = vmatprep.subr.bf16.mxu0 0
        %1568 = vmatpush2.bf16.msra.mxu0 0
        %1569 = vmatprep.subr.bf16.mxu0 0
        %1570 = vmatpush2.bf16.msra.mxu0 0
        %1571 = vmatprep.subr.bf16.mxu0 0
        %1572 = vmatpush2.bf16.msra.mxu0 0
        %1573 = vmatprep.subr.bf16.mxu0 0
        %1574 = vmatpush2.bf16.msra.mxu0 0
        %1575 = vmatprep.subr.bf16.mxu0 0
        %1576 = vmatpush2.bf16.msra.mxu0 0
        %1577 = vmatprep.mubr.bf16.mxu0 0
        %1578 = vmatmul.mubr.bf16.gmra.mxu0 %v1543
        %v1579 = vpop.f32.mrf.mxu0
        %v1580 = vadd.f32 %v1539, %v1579
        %v1581 = vpop.f32.mrf.mxu0
        %v1582 = vadd.f32 %v1539, %v1581
        %v1583 = vpop.f32.mrf.mxu0
        %v1584 = vpop.f32.mrf.mxu0
        %1585 = vdwg.mxu0
        %1586 = vmatprep.subr.bf16.mxu0 0
        %1587 = vmatpush1.bf16.msra.mxu0 0
        %1588 = vmatprep.subr.bf16.mxu0 0
        %1589 = vmatpush1.bf16.msra.mxu0 0
        %1590 = vmatprep.subr.bf16.mxu0 0
        %1591 = vmatpush1.bf16.msra.mxu0 0
        %1592 = vmatprep.subr.bf16.mxu0 0
        %1593 = vmatpush1.bf16.msra.mxu0 0
        %1594 = vmatprep.subr.bf16.mxu0 0
        %1595 = vmatpush1.bf16.msra.mxu0 0
        %1596 = vmatprep.subr.bf16.mxu0 0
        %1597 = vmatpush1.bf16.msra.mxu0 0
        %1598 = vmatprep.subr.bf16.mxu0 0
        %1599 = vmatpush1.bf16.msra.mxu0 0
        %1600 = vmatprep.subr.bf16.mxu0 %v1534
        %1601 = vmatpush1.bf16.msra.mxu0 %v1533
        %1602 = vmatprep.subr.bf16.mxu0 0
        %1603 = vmatpush2.bf16.msra.mxu0 0
        %1604 = vmatprep.subr.bf16.mxu0 0
        %1605 = vmatpush2.bf16.msra.mxu0 0
        %1606 = vmatprep.subr.bf16.mxu0 0
        %1607 = vmatpush2.bf16.msra.mxu0 0
        %1608 = vmatprep.subr.bf16.mxu0 0
        %1609 = vmatpush2.bf16.msra.mxu0 0
        %1610 = vmatprep.subr.bf16.mxu0 0
        %1611 = vmatpush2.bf16.msra.mxu0 0
        %1612 = vmatprep.subr.bf16.mxu0 0
        %1613 = vmatpush2.bf16.msra.mxu0 0
        %1614 = vmatprep.subr.bf16.mxu0 0
        %1615 = vmatpush2.bf16.msra.mxu0 0
        %1616 = vmatprep.subr.bf16.mxu0 0
        %1617 = vmatpush2.bf16.msra.mxu0 0
        %1618 = vmatprep.mubr.bf16.mxu0 0
        %1619 = vmatmul.mubr.bf16.gmra.mxu0 %v1543
        %v1620 = vpop.f32.mrf.mxu0
        %v1621 = vadd.f32 %v1539, %v1620
        %v1622 = vpop.f32.mrf.mxu0
        %v1623 = vadd.f32 %v1539, %v1622
        %v1624 = vpop.f32.mrf.mxu0
        %v1625 = vpop.f32.mrf.mxu0
        %1626 = vdwg.mxu0
        %v1631 = vcombine.low %v1580, %v1582
        %v1632 = vcombine.low %v1621, %v1623
        %1635 = vst [vmem:[%s421] sm:$0xff] %v1631
        %1636 = vst [vmem:[%s421 + $0x8] sm:$0xff] %v1632
        %s1637 = sand.u32 %s256, 1
        %s1638 = scalar_lea.sflag [#allocation4], %s1637
        %s1639 = sand.u32 %s256, 1
        %s1640 = smul.addr %s1639, 128
        %s1641 = scalar_lea.vmem [#allocation3], %s1640
        %s1642 = smul.u32 4, %s28
        %p1643 = scmp.lt.s32.totalorder %s1642, 7
        %s1644 = scalar_select %p1643, %s1642, 7
        %s1645 = smul.addr %s1644, 4
        %s1646 = scalar_lea.vmem %s11, %s1645
        // Predicated region
        $region61: #{dspharm_forward.5} parent=59 // pred_check
          %p1647 = pneg %p266
        $region62: #{dspharm_forward.5} parent=59 // pred_check_branch
          %1649 = sbr.rel (%p1647) target = $region64
        $region63: #{dspharm_forward.5} parent=59 // pred_region
          %s1650 = smul.u32 4, %s28
          %s1652 = ssub.s32 2048, 2048
          %1653 = vsyncadd %s1638, %s1652
          %s1654 = smul.addr %s1650, 64
          %s1655 = scalar_lea.hbm %s10, %s1654
          %s1656 = sshll.u32 %s1641, 4
          %s1657 = int_to_ptr.vmem [resolvable:$true] %s1656
          %1662 = dma.vmem_to_hbm [thread:$0]  %s1657, 2048, %s1655, %s1638, 256, 512, 16
        $region64: #{dspharm_forward.5} parent=59 // pred_fallthru
          _
        // Predicated region
        $region65: #{dspharm_forward.5} parent=59 // pred_check
          %p1663 = pneg %p292
        $region66: #{dspharm_forward.5} parent=59 // pred_check_branch
          %1665 = sbr.rel (%p1663) target = $region68
        $region67: #{dspharm_forward.5} parent=59 // pred_region
          %s1666 = smul.u32 4, %s28
        $region68: #{dspharm_forward.5} parent=59 // pred_fallthru
          _
      $region60: #{dspharm_forward.5} parent=5 // pred_fallthru
        _
      %p1667 = scmp.le.s32.totalorder 2, %s23
      // Predicated region
      $region69: #{dspharm_forward.5} parent=5 // pred_check
        %p1668 = pneg %p1667
      $region70: #{dspharm_forward.5} parent=5 // pred_check_branch
        %1670 = sbr.rel (%p1668) target = $region72
      $region71: #{dspharm_forward.5} parent=5 // pred_region
        %s1671 = ssub.s32 %s23, 2
        // Predicated region
        $region73: #{dspharm_forward.5} parent=71 // pred_check
          %p1672 = pneg %p272
        $region74: #{dspharm_forward.5} parent=71 // pred_check_branch
          %1674 = sbr.rel (%p1672) target = $region76
        $region75: #{dspharm_forward.5} parent=71 // pred_region
          %s1675 = sand.u32 %s257, 1
          %s1676 = scalar_lea.sflag [#allocation4], %s1675
          %s1677 = sand.u32 %s257, 1
          %s1678 = smul.addr %s1677, 128
          %s1679 = scalar_lea.vmem [#allocation3], %s1678
          %1680 = dma.done %s1676, 2048
        $region76: #{dspharm_forward.5} parent=71 // pred_fallthru
          _
        // Predicated region
        $region77: #{dspharm_forward.5} parent=71 // pred_check
          %p1681 = pneg %p298
        $region78: #{dspharm_forward.5} parent=71 // pred_check_branch
          %1683 = sbr.rel (%p1681) target = $region80
        $region79: #{dspharm_forward.5} parent=71 // pred_region
          %s1684 = smul.u32 4, %s29
          %p1685 = scmp.lt.s32.totalorder %s1684, 7
          %s1686 = scalar_select %p1685, %s1684, 7
          %s1687 = smul.addr %s1686, 4
          %s1688 = scalar_lea.vmem %s11, %s1687
        $region80: #{dspharm_forward.5} parent=71 // pred_fallthru
          _
      $region72: #{dspharm_forward.5} parent=5 // pred_fallthru
        _
    $region6: #{dspharm_forward.5} parent=1 // loop_footer
      %s27 = sadd.s32 1, %s23
    $region7: #{dspharm_forward.5} parent=1 // loop_footer_branch
      %22 = sbr.rel target = $region3
    $region8: #{dspharm_forward.5} parent=1 // loop_exit
      _
    %1689 = vsyncpa [#allocation4], 1
    %s1690 = scalar_lea.sflag [#allocation4], 1
    %1691 = vsyncpa %s1690, 1

</llo_original>
